<compile_context>
chip_gen: v5e
topology: v5e:2x2
jax: 0.10.0
libtpu: 0.0.40
codegen_flags: <defaults>
</compile_context>

<pallas_src>
import functools

import jax
import jax.numpy as jnp
from jax.experimental import pallas as pl
from jax.experimental.pallas import tpu as pltpu

# Model hyper-params (mirrors RNNModel('LSTM', ninp, nout, nhid, nlayers, task))
RNN_TYPE = "LSTM"
NINP = 16
NOUT = 4
NHID = 32
NLAYERS = 2
TASK = "sequence_classification"   # or "sequence_learning"


def _round_up(x, m):
    return (x + m - 1) // m * m


def _lstm_kernel(maxlen_ref, x_ref, len_ref, wcat0_ref, wcatr_ref, b_ref,
                 wdec_ref, bdec_ref, out_ref, h_scr, c_scr, *,
                 nhid, nlayers, gp, tt, apply_sigmoid):
    c_idx = pl.program_id(1)            # time-chunk index (innermost grid dim)
    chunk_base = c_idx * tt
    max_len = maxlen_ref[0]             # SMEM scalar (prefetched)
    bb = x_ref.shape[0]

    @pl.when(c_idx == 0)
    def _():
        h_scr[...] = jnp.zeros_like(h_scr)      # init_hidden(): zeros
        c_scr[...] = jnp.zeros_like(c_scr)

    @pl.when(chunk_base < max_len)              # skip fully-padded time chunks
    def _():
        lens = len_ref[...]                     # (BB, 1) int32
        # Hoist loop-invariant broadcasts out of the unrolled time loop.
        biases = [jnp.broadcast_to(b_ref[pl.ds(l, 1), :], (bb, 4 * gp))
                  for l in range(nlayers)]
        hs = [h_scr[l] for l in range(nlayers)]     # (BB, NHID) f32 each
        cs = [c_scr[l] for l in range(nlayers)]

        for i in range(tt):                     # static -> fully unrolled
            valid = jnp.broadcast_to((chunk_base + i) < lens, (bb, nhid))
            inp = x_ref[:, i, :]                # (BB, NINP) bf16
            for l in range(nlayers):
                h_prev, c_prev = hs[l], cs[l]
                # Fused [x|h] @ [W_ih ; W_hh] matmul, bf16 operands, f32 acc.
                xcat = jnp.concatenate(
                    [inp, h_prev.astype(jnp.bfloat16)], axis=-1)
                w = wcat0_ref[...] if l == 0 else wcatr_ref[l - 1]
                gates = jnp.dot(xcat, w,
                                preferred_element_type=jnp.float32) + biases[l]
                # Gate groups live at 128-lane pitch: slices start on lane
                # block boundaries (torch gate order i, f, g, o).
                i_g = jax.nn.sigmoid(gates[:, 0 * gp:0 * gp + nhid])
                f_g = jax.nn.sigmoid(gates[:, 1 * gp:1 * gp + nhid])
                g_g = jnp.tanh(gates[:, 2 * gp:2 * gp + nhid])
                o_g = jax.nn.sigmoid(gates[:, 3 * gp:3 * gp + nhid])
                c_new = f_g * c_prev + i_g * g_g
                h_new = o_g * jnp.tanh(c_new)
                # pack_padded_sequence semantics: freeze state past the length.
                hs[l] = jnp.where(valid, h_new, h_prev)
                cs[l] = jnp.where(valid, c_new, c_prev)
                inp = hs[l].astype(jnp.bfloat16)

        for l in range(nlayers):                # persist state across chunks
            h_scr[l] = hs[l]
            c_scr[l] = cs[l]

        @pl.when(chunk_base + tt >= max_len)    # last chunk with any valid step
        def _():
            # Frozen top-layer hidden == padded_out[b, lens[b]-1]; fuse decoder.
            logits = jnp.dot(hs[nlayers - 1], wdec_ref[...],
                             preferred_element_type=jnp.float32) + bdec_ref[...]
            if apply_sigmoid:
                logits = jax.nn.sigmoid(logits)
            out_ref[...] = logits.astype(out_ref.dtype)


def rnn_model_forward(x, masks, kparams, *, nhid=NHID, nlayers=NLAYERS,
                      task=TASK, batch_block=None, time_block=None):
    """x: (B, T, NINP) float; masks: (B, T) padding masks (1 = pad, right-padded)."""
    B, T, ninp = x.shape
    gp = _round_up(nhid, 128)                   # gate pitch (lane-aligned)
    nout = kparams["wdec"].shape[1]

    # Batch block: default = whole batch. On v7x with large B, pass
    # batch_block=B//2 to shard the (parallel) batch axis across both TCs.
    bb = B if batch_block is None else batch_block
    assert B % bb == 0, "batch_block must divide B"

    if time_block is None:
        # Double-buffered bf16 x chunk (2*bb*tt*ninp*2 bytes) kept <= ~2 MiB,
        # well under every generation's scoped-VMEM limit (v7x VMEM is only
        # 64 MiB physical). Unroll length capped at 64 steps.
        budget = 2 * 1024 * 1024
        tt = max(8, min(64, (budget // max(4 * bb * ninp, 1)) // 8 * 8))
    else:
        tt = max(8, _round_up(time_block, 8))
    tt = min(tt, _round_up(T, 8))
    t_pad = _round_up(T, tt)

    lengths = (T - masks.sum(axis=1)).astype(jnp.int32)
    max_len = jnp.maximum(jnp.max(lengths), 1).astype(jnp.int32).reshape(1)
    lengths2d = lengths.reshape(B, 1)

    # Batch-major x straight into the kernel (no host-side transpose); bf16
    # halves the x DMA bytes and feeds the MXU its native dtype.
    x_p = x.astype(jnp.bfloat16)
    if t_pad != T:
        x_p = jnp.pad(x_p, ((0, 0), (0, t_pad - T), (0, 0)))

    kernel = functools.partial(
        _lstm_kernel, nhid=nhid, nlayers=nlayers, gp=gp, tt=tt,
        apply_sigmoid=(task == "sequence_classification"))

    out = pl.pallas_call(
        kernel,
        out_shape=jax.ShapeDtypeStruct((B, nout), jnp.float32),
        grid_spec=pltpu.PrefetchScalarGridSpec(
            num_scalar_prefetch=1,                      # max_len -> SMEM
            grid=(B // bb, t_pad // tt),                # (batch blocks, time chunks)
            in_specs=[
                pl.BlockSpec((bb, tt, ninp), lambda bc, c, ml: (bc, c, 0)),   # x
                pl.BlockSpec((bb, 1), lambda bc, c, ml: (bc, 0)),             # lengths
                pl.BlockSpec(kparams["wcat0"].shape, lambda bc, c, ml: (0, 0)),
                pl.BlockSpec(kparams["wcatr"].shape, lambda bc, c, ml: (0, 0, 0)),
                pl.BlockSpec(kparams["b"].shape, lambda bc, c, ml: (0, 0)),
                pl.BlockSpec(kparams["wdec"].shape, lambda bc, c, ml: (0, 0)),
                pl.BlockSpec(kparams["bdec"].shape, lambda bc, c, ml: (0, 0)),
            ],
            out_specs=pl.BlockSpec((bb, nout), lambda bc, c, ml: (bc, 0)),
            scratch_shapes=[
                pltpu.VMEM((nlayers, bb, nhid), jnp.float32),   # h state
                pltpu.VMEM((nlayers, bb, nhid), jnp.float32),   # c state
            ],
        ),
        compiler_params=pltpu.CompilerParams(
            dimension_semantics=("parallel", "arbitrary"),
            vmem_limit_bytes=16 * 1024 * 1024,
        ),
    )(max_len, x_p, lengths2d, kparams["wcat0"], kparams["wcatr"],
      kparams["b"], kparams["wdec"], kparams["bdec"])
    return out


def init_params(key, *, ninp=NINP, nout=NOUT, nhid=NHID, nlayers=NLAYERS):
    """PyTorch-layout LSTM + decoder parameters (matches nn.LSTM / nn.Linear)."""
    k = 1.0 / (nhid ** 0.5)
    keys = jax.random.split(key, 4 * nlayers + 2)

    def unif(kk, shape):
        return jax.random.uniform(kk, shape, jnp.float32, -k, k)

    p = {}
    for l in range(nlayers):
        in_dim = ninp if l == 0 else nhid
        p[f"w_ih_{l}"] = unif(keys[4 * l + 0], (4 * nhid, in_dim))
        p[f"w_hh_{l}"] = unif(keys[4 * l + 1], (4 * nhid, nhid))
        p[f"b_ih_{l}"] = unif(keys[4 * l + 2], (4 * nhid,))
        p[f"b_hh_{l}"] = unif(keys[4 * l + 3], (4 * nhid,))
    p["w_dec"] = unif(keys[-2], (nout, nhid))
    p["b_dec"] = unif(keys[-1], (nout,))
    return p


def pack_params(p, *, nhid=NHID, nlayers=NLAYERS):
    """Repack torch-layout params into the kernel layout:
       - W_ih / W_hh fused along the contraction dim (one matmul per layer),
       - each gate's columns placed at a 128-lane-aligned pitch (gp),
       - matmul weights in bf16 (bias / decoder stay f32)."""
    gp = _round_up(nhid, 128)

    def gate_pad(w):                            # (..., 4*nhid) -> (..., 4*gp)
        parts = jnp.split(w, 4, axis=-1)
        pad = [(0, 0)] * (w.ndim - 1) + [(0, gp - nhid)]
        return jnp.concatenate([jnp.pad(q, pad) for q in parts], axis=-1)

    wcat0 = jnp.concatenate([p["w_ih_0"].T, p["w_hh_0"].T], axis=0)
    wcat0 = gate_pad(wcat0).astype(jnp.bfloat16)            # (ninp+nhid, 4*gp)

    if nlayers > 1:
        wcatr = jnp.stack(
            [jnp.concatenate([p[f"w_ih_{l}"].T, p[f"w_hh_{l}"].T], axis=0)
             for l in range(1, nlayers)], axis=0)
    else:
        wcatr = jnp.zeros((1, 2 * nhid, 4 * nhid), jnp.float32)   # dummy
    wcatr = gate_pad(wcatr).astype(jnp.bfloat16)            # (L-1, 2*nhid, 4*gp)

    b = jnp.stack([p[f"b_ih_{l}"] + p[f"b_hh_{l}"] for l in range(nlayers)], 0)
    b = gate_pad(b).astype(jnp.float32)                     # (L, 4*gp)

    wdec = p["w_dec"].T.astype(jnp.float32)                 # (nhid, nout)
    bdec = p["b_dec"].reshape(1, -1).astype(jnp.float32)    # (1, nout)
    return dict(wcat0=wcat0, wcatr=wcatr, b=b, wdec=wdec, bdec=bdec)


def reference_forward(x, masks, p, *, nhid=NHID, nlayers=NLAYERS, task=TASK):
    """Pure-JAX f32 reference (masked multi-layer LSTM + decoder)."""
    B, T, _ = x.shape
    lengths = (T - masks.sum(axis=1)).astype(jnp.int32)
    h0 = jnp.zeros((nlayers, B, nhid), jnp.float32)
    c0 = jnp.zeros((nlayers, B, nhid), jnp.float32)

    def step(carry, xt_t):
        h, c = carry
        xt, t = xt_t
        valid = (t < lengths)[:, None]
        inp = xt
        hs, cs = [], []
        for l in range(nlayers):
            gates = (inp @ p[f"w_ih_{l}"].T + h[l] @ p[f"w_hh_{l}"].T
                     + p[f"b_ih_{l}"] + p[f"b_hh_{l}"])
            i_g = jax.nn.sigmoid(gates[:, :nhid])
            f_g = jax.nn.sigmoid(gates[:, nhid:2 * nhid])
            g_g = jnp.tanh(gates[:, 2 * nhid:3 * nhid])
            o_g = jax.nn.sigmoid(gates[:, 3 * nhid:])
            c_new = f_g * c[l] + i_g * g_g
            h_new = o_g * jnp.tanh(c_new)
            hs.append(jnp.where(valid, h_new, h[l]))
            cs.append(jnp.where(valid, c_new, c[l]))
            inp = hs[-1]
        return (jnp.stack(hs), jnp.stack(cs)), None

    (h, _), _ = jax.lax.scan(step, (h0, c0),
                             (jnp.swapaxes(x, 0, 1), jnp.arange(T)))
    out = h[-1] @ p["w_dec"].T + p["b_dec"]
    if task == "sequence_classification":
        out = jax.nn.sigmoid(out)
    return out


if __name__ == "__main__":
    key = jax.random.PRNGKey(0)
    kp, kx = jax.random.split(key)
    params = init_params(kp)
    kparams = pack_params(params)

    B, T = 2, 8
    x = jax.random.normal(kx, (B, T, NINP), jnp.float32)
    seq_lengths = jnp.array([8, 5], jnp.int32)
    # padding masks: 1 where padded, 0 where valid (as in the PyTorch module)
    masks = (jnp.arange(T)[None, :] >= seq_lengths[:, None]).astype(jnp.float32)

    out = jax.block_until_ready(rnn_model_forward(x, masks, kparams))
    ref = reference_forward(x, masks, params)

    assert out.shape == (B, NOUT), out.shape
    err = float(jnp.max(jnp.abs(out - ref)))
    assert err < 2e-2, err
    print("KERNEL_OK")
</pallas_src>

<mosaic_0001>
module attributes {stable_mosaic.version = 11 : i64} {
  func.func @_lstm_kernel(%arg0: i32, %arg1: i32, %arg2: memref<1xi32, #tpu.memory_space<smem>>, %arg3: memref<2x8x16xbf16, #tpu.memory_space<vmem>>, %arg4: memref<2x1xi32, #tpu.memory_space<vmem>>, %arg5: memref<48x512xbf16, #tpu.memory_space<vmem>>, %arg6: memref<1x64x512xbf16, #tpu.memory_space<vmem>>, %arg7: memref<2x512xf32, #tpu.memory_space<vmem>>, %arg8: memref<32x4xf32, #tpu.memory_space<vmem>>, %arg9: memref<1x4xf32, #tpu.memory_space<vmem>>, %arg10: memref<2x4xf32, #tpu.memory_space<vmem>>, %arg11: memref<2x2x32xf32, #tpu.memory_space<vmem>>, %arg12: memref<2x2x32xf32, #tpu.memory_space<vmem>>) attributes {dimension_semantics = [#tpu.dimension_semantics<parallel>, #tpu.dimension_semantics<arbitrary>], iteration_bounds = array<i64: 1, 1>, scalar_prefetch = 1 : i64, scratch_operands = 2 : i64, tpu.core_type = #tpu.core_type<tc>, window_params = [{transform_indices = @transform_0, window_bounds = array<i64: 2, 8, 16>}, {transform_indices = @transform_1, window_bounds = array<i64: 2, 1>}, {pipeline_mode = #tpu.pipeline_mode<synchronous>, transform_indices = @transform_2, window_bounds = array<i64: 48, 512>}, {pipeline_mode = #tpu.pipeline_mode<synchronous>, transform_indices = @transform_3, window_bounds = array<i64: 1, 64, 512>}, {pipeline_mode = #tpu.pipeline_mode<synchronous>, transform_indices = @transform_4, window_bounds = array<i64: 2, 512>}, {pipeline_mode = #tpu.pipeline_mode<synchronous>, transform_indices = @transform_5, window_bounds = array<i64: 32, 4>}, {pipeline_mode = #tpu.pipeline_mode<synchronous>, transform_indices = @transform_6, window_bounds = array<i64: 1, 4>}, {transform_indices = @transform_7, window_bounds = array<i64: 2, 4>}]} {
    %c8_i32 = arith.constant 8 : i32
    %0 = arith.muli %arg1, %c8_i32 : i32
    %c0 = arith.constant 0 : index
    %1 = memref.load %arg2[%c0] : memref<1xi32, #tpu.memory_space<smem>>
    %c0_i32 = arith.constant 0 : i32
    %2 = arith.cmpi eq, %arg1, %c0_i32 : i32
    %3 = arith.extui %2 : i1 to i32
    %c0_i32_0 = arith.constant 0 : i32
    %4 = arith.cmpi ne, %3, %c0_i32_0 : i32
    scf.if %4 {
      %cst = arith.constant 0.000000e+00 : f32
      %8 = vector.broadcast %cst : f32 to vector<2x2x32xf32>
      %c0_2 = arith.constant 0 : index
      %c0_3 = arith.constant 0 : index
      %c0_4 = arith.constant 0 : index
      %9 = vector.load %arg11[%c0_2, %c0_3, %c0_4] : memref<2x2x32xf32, #tpu.memory_space<vmem>>, vector<2x2x32xf32>
      tpu.vector_store %arg11[%c0_2, %c0_3, %c0_4], %8 {strides = array<i32>} : memref<2x2x32xf32, #tpu.memory_space<vmem>>, vector<2x2x32xf32>,
      %cst_5 = arith.constant 0.000000e+00 : f32
      %10 = vector.broadcast %cst_5 : f32 to vector<2x2x32xf32>
      %c0_6 = arith.constant 0 : index
      %c0_7 = arith.constant 0 : index
      %c0_8 = arith.constant 0 : index
      %11 = vector.load %arg12[%c0_6, %c0_7, %c0_8] : memref<2x2x32xf32, #tpu.memory_space<vmem>>, vector<2x2x32xf32>
      tpu.vector_store %arg12[%c0_6, %c0_7, %c0_8], %10 {strides = array<i32>} : memref<2x2x32xf32, #tpu.memory_space<vmem>>, vector<2x2x32xf32>,
    } else {
    }
    %5 = arith.cmpi slt, %0, %1 : i32
    %6 = arith.extui %5 : i1 to i32
    %c0_i32_1 = arith.constant 0 : i32
    %7 = arith.cmpi ne, %6, %c0_i32_1 : i32
    scf.if %7 {
      %c0_2 = arith.constant 0 : index
      %c0_3 = arith.constant 0 : index
      %8 = vector.load %arg4[%c0_2, %c0_3] : memref<2x1xi32, #tpu.memory_space<vmem>>, vector<2x1xi32>
      %c0_4 = arith.constant 0 : index
      %c0_5 = arith.constant 0 : index
      %9 = vector.load %arg7[%c0_4, %c0_5] : memref<2x512xf32, #tpu.memory_space<vmem>>, vector<1x512xf32>
      %10 = vector.shape_cast %9 : vector<1x512xf32> to vector<1x512xf32>
      %11 = vector.broadcast %10 : vector<1x512xf32> to vector<2x512xf32>
      %c1 = arith.constant 1 : index
      %c0_6 = arith.constant 0 : index
      %12 = vector.load %arg7[%c1, %c0_6] : memref<2x512xf32, #tpu.memory_space<vmem>>, vector<1x512xf32>
      %13 = vector.shape_cast %12 : vector<1x512xf32> to vector<1x512xf32>
      %14 = vector.broadcast %13 : vector<1x512xf32> to vector<2x512xf32>
      %c0_7 = arith.constant 0 : index
      %c0_8 = arith.constant 0 : index
      %c0_9 = arith.constant 0 : index
      %15 = vector.load %arg11[%c0_7, %c0_8, %c0_9] : memref<2x2x32xf32, #tpu.memory_space<vmem>>, vector<1x2x32xf32>
      %16 = vector.shape_cast %15 : vector<1x2x32xf32> to vector<2x32xf32>
      %c1_10 = arith.constant 1 : index
      %c0_11 = arith.constant 0 : index
      %c0_12 = arith.constant 0 : index
      %17 = vector.load %arg11[%c1_10, %c0_11, %c0_12] : memref<2x2x32xf32, #tpu.memory_space<vmem>>, vector<1x2x32xf32>
      %18 = vector.shape_cast %17 : vector<1x2x32xf32> to vector<2x32xf32>
      %c0_13 = arith.constant 0 : index
      %c0_14 = arith.constant 0 : index
      %c0_15 = arith.constant 0 : index
      %19 = vector.load %arg12[%c0_13, %c0_14, %c0_15] : memref<2x2x32xf32, #tpu.memory_space<vmem>>, vector<1x2x32xf32>
      %20 = vector.shape_cast %19 : vector<1x2x32xf32> to vector<2x32xf32>
      %c1_16 = arith.constant 1 : index
      %c0_17 = arith.constant 0 : index
      %c0_18 = arith.constant 0 : index
      %21 = vector.load %arg12[%c1_16, %c0_17, %c0_18] : memref<2x2x32xf32, #tpu.memory_space<vmem>>, vector<1x2x32xf32>
      %22 = vector.shape_cast %21 : vector<1x2x32xf32> to vector<2x32xf32>
      %c0_i32_19 = arith.constant 0 : i32
      %23 = arith.addi %0, %c0_i32_19 : i32
      %24 = vector.broadcast %23 : i32 to vector<2x1xi32>
      %25 = arith.cmpi slt, %24, %8 : vector<2x1xi32>
      %26 = vector.shape_cast %25 : vector<2x1xi1> to vector<2x1xi1>
      %27 = vector.broadcast %26 : vector<2x1xi1> to vector<2x32xi1>
      %c0_20 = arith.constant 0 : index
      %c0_21 = arith.constant 0 : index
      %c0_22 = arith.constant 0 : index
      %28 = vector.load %arg3[%c0_20, %c0_21, %c0_22] : memref<2x8x16xbf16, #tpu.memory_space<vmem>>, vector<2x1x16xbf16>
      %29 = vector.shape_cast %28 : vector<2x1x16xbf16> to vector<2x16xbf16>
      %30 = arith.truncf %16 : vector<2x32xf32> to vector<2x32xbf16>
      %31 = tpu.concatenate %29, %30 in 1 : vector<2x16xbf16>, vector<2x32xbf16> -> vector<2x48xbf16>
      %c0_23 = arith.constant 0 : index
      %c0_24 = arith.constant 0 : index
      %32 = vector.load %arg5[%c0_23, %c0_24] : memref<48x512xbf16, #tpu.memory_space<vmem>>, vector<48x512xbf16>
      %cst = arith.constant dense<0.000000e+00> : vector<2x512xf32>
      %33 = tpu.matmul %31, %32, %cst {dimension_numbers = #tpu.dot_dimension_numbers<[1], [0], [0], [1], [0, 0, 1, 1], [], []>} : vector<2x48xbf16>, vector<48x512xbf16>, vector<2x512xf32> -> vector<2x512xf32>
      %34 = arith.addf %33, %11 : vector<2x512xf32>
      %35 = vector.extract_strided_slice %34 {offsets = [0, 0], sizes = [2, 32], strides = [1, 1]} : vector<2x512xf32> to vector<2x32xf32>
      %36 = arith.negf %35 : vector<2x32xf32>
      %37 = math.exp %36 : vector<2x32xf32>
      %cst_25 = arith.constant 1.000000e+00 : f32
      %38 = vector.broadcast %cst_25 : f32 to vector<2x32xf32>
      %39 = arith.addf %38, %37 : vector<2x32xf32>
      %40 = arith.divf %38, %39 : vector<2x32xf32>
      %41 = vector.extract_strided_slice %34 {offsets = [0, 128], sizes = [2, 32], strides = [1, 1]} : vector<2x512xf32> to vector<2x32xf32>
      %42 = arith.negf %41 : vector<2x32xf32>
      %43 = math.exp %42 : vector<2x32xf32>
      %cst_26 = arith.constant 1.000000e+00 : f32
      %44 = vector.broadcast %cst_26 : f32 to vector<2x32xf32>
      %45 = arith.addf %44, %43 : vector<2x32xf32>
      %46 = arith.divf %44, %45 : vector<2x32xf32>
      %47 = vector.extract_strided_slice %34 {offsets = [0, 256], sizes = [2, 32], strides = [1, 1]} : vector<2x512xf32> to vector<2x32xf32>
      %48 = math.tanh %47 : vector<2x32xf32>
      %49 = vector.extract_strided_slice %34 {offsets = [0, 384], sizes = [2, 32], strides = [1, 1]} : vector<2x512xf32> to vector<2x32xf32>
      %50 = arith.negf %49 : vector<2x32xf32>
      %51 = math.exp %50 : vector<2x32xf32>
      %cst_27 = arith.constant 1.000000e+00 : f32
      %52 = vector.broadcast %cst_27 : f32 to vector<2x32xf32>
      %53 = arith.addf %52, %51 : vector<2x32xf32>
      %54 = arith.divf %52, %53 : vector<2x32xf32>
      %55 = arith.mulf %46, %20 : vector<2x32xf32>
      %56 = arith.mulf %40, %48 : vector<2x32xf32>
      %57 = arith.addf %55, %56 : vector<2x32xf32>
      %58 = math.tanh %57 : vector<2x32xf32>
      %59 = arith.mulf %54, %58 : vector<2x32xf32>
      %60 = arith.select %27, %59, %16 : vector<2x32xi1>, vector<2x32xf32>
      %61 = arith.select %27, %57, %20 : vector<2x32xi1>, vector<2x32xf32>
      %62 = arith.truncf %60 : vector<2x32xf32> to vector<2x32xbf16>
      %63 = arith.truncf %18 : vector<2x32xf32> to vector<2x32xbf16>
      %64 = tpu.concatenate %62, %63 in 1 : vector<2x32xbf16>, vector<2x32xbf16> -> vector<2x64xbf16>
      %c0_28 = arith.constant 0 : index
      %c0_29 = arith.constant 0 : index
      %c0_30 = arith.constant 0 : index
      %65 = vector.load %arg6[%c0_28, %c0_29, %c0_30] : memref<1x64x512xbf16, #tpu.memory_space<vmem>>, vector<1x64x512xbf16>
      %66 = vector.shape_cast %65 : vector<1x64x512xbf16> to vector<64x512xbf16>
      %cst_31 = arith.constant dense<0.000000e+00> : vector<2x512xf32>
      %67 = tpu.matmul %64, %66, %cst_31 {dimension_numbers = #tpu.dot_dimension_numbers<[1], [0], [0], [1], [0, 0, 1, 1], [], []>} : vector<2x64xbf16>, vector<64x512xbf16>, vector<2x512xf32> -> vector<2x512xf32>
      %68 = arith.addf %67, %14 : vector<2x512xf32>
      %69 = vector.extract_strided_slice %68 {offsets = [0, 0], sizes = [2, 32], strides = [1, 1]} : vector<2x512xf32> to vector<2x32xf32>
      %70 = arith.negf %69 : vector<2x32xf32>
      %71 = math.exp %70 : vector<2x32xf32>
      %cst_32 = arith.constant 1.000000e+00 : f32
      %72 = vector.broadcast %cst_32 : f32 to vector<2x32xf32>
      %73 = arith.addf %72, %71 : vector<2x32xf32>
      %74 = arith.divf %72, %73 : vector<2x32xf32>
      %75 = vector.extract_strided_slice %68 {offsets = [0, 128], sizes = [2, 32], strides = [1, 1]} : vector<2x512xf32> to vector<2x32xf32>
      %76 = arith.negf %75 : vector<2x32xf32>
      %77 = math.exp %76 : vector<2x32xf32>
      %cst_33 = arith.constant 1.000000e+00 : f32
      %78 = vector.broadcast %cst_33 : f32 to vector<2x32xf32>
      %79 = arith.addf %78, %77 : vector<2x32xf32>
      %80 = arith.divf %78, %79 : vector<2x32xf32>
      %81 = vector.extract_strided_slice %68 {offsets = [0, 256], sizes = [2, 32], strides = [1, 1]} : vector<2x512xf32> to vector<2x32xf32>
      %82 = math.tanh %81 : vector<2x32xf32>
      %83 = vector.extract_strided_slice %68 {offsets = [0, 384], sizes = [2, 32], strides = [1, 1]} : vector<2x512xf32> to vector<2x32xf32>
      %84 = arith.negf %83 : vector<2x32xf32>
      %85 = math.exp %84 : vector<2x32xf32>
      %cst_34 = arith.constant 1.000000e+00 : f32
      %86 = vector.broadcast %cst_34 : f32 to vector<2x32xf32>
      %87 = arith.addf %86, %85 : vector<2x32xf32>
      %88 = arith.divf %86, %87 : vector<2x32xf32>
      %89 = arith.mulf %80, %22 : vector<2x32xf32>
      %90 = arith.mulf %74, %82 : vector<2x32xf32>
      %91 = arith.addf %89, %90 : vector<2x32xf32>
      %92 = math.tanh %91 : vector<2x32xf32>
      %93 = arith.mulf %88, %92 : vector<2x32xf32>
      %94 = arith.select %27, %93, %18 : vector<2x32xi1>, vector<2x32xf32>
      %95 = arith.select %27, %91, %22 : vector<2x32xi1>, vector<2x32xf32>
      %c1_i32 = arith.constant 1 : i32
      %96 = arith.addi %0, %c1_i32 : i32
      %97 = vector.broadcast %96 : i32 to vector<2x1xi32>
      %98 = arith.cmpi slt, %97, %8 : vector<2x1xi32>
      %99 = vector.shape_cast %98 : vector<2x1xi1> to vector<2x1xi1>
      %100 = vector.broadcast %99 : vector<2x1xi1> to vector<2x32xi1>
      %c0_35 = arith.constant 0 : index
      %c1_36 = arith.constant 1 : index
      %c0_37 = arith.constant 0 : index
      %101 = vector.load %arg3[%c0_35, %c1_36, %c0_37] : memref<2x8x16xbf16, #tpu.memory_space<vmem>>, vector<2x1x16xbf16>
      %102 = vector.shape_cast %101 : vector<2x1x16xbf16> to vector<2x16xbf16>
      %103 = arith.truncf %60 : vector<2x32xf32> to vector<2x32xbf16>
      %104 = tpu.concatenate %102, %103 in 1 : vector<2x16xbf16>, vector<2x32xbf16> -> vector<2x48xbf16>
      %c0_38 = arith.constant 0 : index
      %c0_39 = arith.constant 0 : index
      %105 = vector.load %arg5[%c0_38, %c0_39] : memref<48x512xbf16, #tpu.memory_space<vmem>>, vector<48x512xbf16>
      %cst_40 = arith.constant dense<0.000000e+00> : vector<2x512xf32>
      %106 = tpu.matmul %104, %105, %cst_40 {dimension_numbers = #tpu.dot_dimension_numbers<[1], [0], [0], [1], [0, 0, 1, 1], [], []>} : vector<2x48xbf16>, vector<48x512xbf16>, vector<2x512xf32> -> vector<2x512xf32>
      %107 = arith.addf %106, %11 : vector<2x512xf32>
      %108 = vector.extract_strided_slice %107 {offsets = [0, 0], sizes = [2, 32], strides = [1, 1]} : vector<2x512xf32> to vector<2x32xf32>
      %109 = arith.negf %108 : vector<2x32xf32>
      %110 = math.exp %109 : vector<2x32xf32>
      %cst_41 = arith.constant 1.000000e+00 : f32
      %111 = vector.broadcast %cst_41 : f32 to vector<2x32xf32>
      %112 = arith.addf %111, %110 : vector<2x32xf32>
      %113 = arith.divf %111, %112 : vector<2x32xf32>
      %114 = vector.extract_strided_slice %107 {offsets = [0, 128], sizes = [2, 32], strides = [1, 1]} : vector<2x512xf32> to vector<2x32xf32>
      %115 = arith.negf %114 : vector<2x32xf32>
      %116 = math.exp %115 : vector<2x32xf32>
      %cst_42 = arith.constant 1.000000e+00 : f32
      %117 = vector.broadcast %cst_42 : f32 to vector<2x32xf32>
      %118 = arith.addf %117, %116 : vector<2x32xf32>
      %119 = arith.divf %117, %118 : vector<2x32xf32>
      %120 = vector.extract_strided_slice %107 {offsets = [0, 256], sizes = [2, 32], strides = [1, 1]} : vector<2x512xf32> to vector<2x32xf32>
      %121 = math.tanh %120 : vector<2x32xf32>
      %122 = vector.extract_strided_slice %107 {offsets = [0, 384], sizes = [2, 32], strides = [1, 1]} : vector<2x512xf32> to vector<2x32xf32>
      %123 = arith.negf %122 : vector<2x32xf32>
      %124 = math.exp %123 : vector<2x32xf32>
      %cst_43 = arith.constant 1.000000e+00 : f32
      %125 = vector.broadcast %cst_43 : f32 to vector<2x32xf32>
      %126 = arith.addf %125, %124 : vector<2x32xf32>
      %127 = arith.divf %125, %126 : vector<2x32xf32>
      %128 = arith.mulf %119, %61 : vector<2x32xf32>
      %129 = arith.mulf %113, %121 : vector<2x32xf32>
      %130 = arith.addf %128, %129 : vector<2x32xf32>
      %131 = math.tanh %130 : vector<2x32xf32>
      %132 = arith.mulf %127, %131 : vector<2x32xf32>
      %133 = arith.select %100, %132, %60 : vector<2x32xi1>, vector<2x32xf32>
      %134 = arith.select %100, %130, %61 : vector<2x32xi1>, vector<2x32xf32>
      %135 = arith.truncf %133 : vector<2x32xf32> to vector<2x32xbf16>
      %136 = arith.truncf %94 : vector<2x32xf32> to vector<2x32xbf16>
      %137 = tpu.concatenate %135, %136 in 1 : vector<2x32xbf16>, vector<2x32xbf16> -> vector<2x64xbf16>
      %c0_44 = arith.constant 0 : index
      %c0_45 = arith.constant 0 : index
      %c0_46 = arith.constant 0 : index
      %138 = vector.load %arg6[%c0_44, %c0_45, %c0_46] : memref<1x64x512xbf16, #tpu.memory_space<vmem>>, vector<1x64x512xbf16>
      %139 = vector.shape_cast %138 : vector<1x64x512xbf16> to vector<64x512xbf16>
      %cst_47 = arith.constant dense<0.000000e+00> : vector<2x512xf32>
      %140 = tpu.matmul %137, %139, %cst_47 {dimension_numbers = #tpu.dot_dimension_numbers<[1], [0], [0], [1], [0, 0, 1, 1], [], []>} : vector<2x64xbf16>, vector<64x512xbf16>, vector<2x512xf32> -> vector<2x512xf32>
      %141 = arith.addf %140, %14 : vector<2x512xf32>
      %142 = vector.extract_strided_slice %141 {offsets = [0, 0], sizes = [2, 32], strides = [1, 1]} : vector<2x512xf32> to vector<2x32xf32>
      %143 = arith.negf %142 : vector<2x32xf32>
      %144 = math.exp %143 : vector<2x32xf32>
      %cst_48 = arith.constant 1.000000e+00 : f32
      %145 = vector.broadcast %cst_48 : f32 to vector<2x32xf32>
      %146 = arith.addf %145, %144 : vector<2x32xf32>
      %147 = arith.divf %145, %146 : vector<2x32xf32>
      %148 = vector.extract_strided_slice %141 {offsets = [0, 128], sizes = [2, 32], strides = [1, 1]} : vector<2x512xf32> to vector<2x32xf32>
      %149 = arith.negf %148 : vector<2x32xf32>
      %150 = math.exp %149 : vector<2x32xf32>
      %cst_49 = arith.constant 1.000000e+00 : f32
      %151 = vector.broadcast %cst_49 : f32 to vector<2x32xf32>
      %152 = arith.addf %151, %150 : vector<2x32xf32>
      %153 = arith.divf %151, %152 : vector<2x32xf32>
      %154 = vector.extract_strided_slice %141 {offsets = [0, 256], sizes = [2, 32], strides = [1, 1]} : vector<2x512xf32> to vector<2x32xf32>
      %155 = math.tanh %154 : vector<2x32xf32>
      %156 = vector.extract_strided_slice %141 {offsets = [0, 384], sizes = [2, 32], strides = [1, 1]} : vector<2x512xf32> to vector<2x32xf32>
      %157 = arith.negf %156 : vector<2x32xf32>
      %158 = math.exp %157 : vector<2x32xf32>
      %cst_50 = arith.constant 1.000000e+00 : f32
      %159 = vector.broadcast %cst_50 : f32 to vector<2x32xf32>
      %160 = arith.addf %159, %158 : vector<2x32xf32>
      %161 = arith.divf %159, %160 : vector<2x32xf32>
      %162 = arith.mulf %153, %95 : vector<2x32xf32>
      %163 = arith.mulf %147, %155 : vector<2x32xf32>
      %164 = arith.addf %162, %163 : vector<2x32xf32>
      %165 = math.tanh %164 : vector<2x32xf32>
      %166 = arith.mulf %161, %165 : vector<2x32xf32>
      %167 = arith.select %100, %166, %94 : vector<2x32xi1>, vector<2x32xf32>
      %168 = arith.select %100, %164, %95 : vector<2x32xi1>, vector<2x32xf32>
      %c2_i32 = arith.constant 2 : i32
      %169 = arith.addi %0, %c2_i32 : i32
      %170 = vector.broadcast %169 : i32 to vector<2x1xi32>
      %171 = arith.cmpi slt, %170, %8 : vector<2x1xi32>
      %172 = vector.shape_cast %171 : vector<2x1xi1> to vector<2x1xi1>
      %173 = vector.broadcast %172 : vector<2x1xi1> to vector<2x32xi1>
      %c0_51 = arith.constant 0 : index
      %c2 = arith.constant 2 : index
      %c0_52 = arith.constant 0 : index
      %174 = vector.load %arg3[%c0_51, %c2, %c0_52] : memref<2x8x16xbf16, #tpu.memory_space<vmem>>, vector<2x1x16xbf16>
      %175 = vector.shape_cast %174 : vector<2x1x16xbf16> to vector<2x16xbf16>
      %176 = arith.truncf %133 : vector<2x32xf32> to vector<2x32xbf16>
      %177 = tpu.concatenate %175, %176 in 1 : vector<2x16xbf16>, vector<2x32xbf16> -> vector<2x48xbf16>
      %c0_53 = arith.constant 0 : index
      %c0_54 = arith.constant 0 : index
      %178 = vector.load %arg5[%c0_53, %c0_54] : memref<48x512xbf16, #tpu.memory_space<vmem>>, vector<48x512xbf16>
      %cst_55 = arith.constant dense<0.000000e+00> : vector<2x512xf32>
      %179 = tpu.matmul %177, %178, %cst_55 {dimension_numbers = #tpu.dot_dimension_numbers<[1], [0], [0], [1], [0, 0, 1, 1], [], []>} : vector<2x48xbf16>, vector<48x512xbf16>, vector<2x512xf32> -> vector<2x512xf32>
      %180 = arith.addf %179, %11 : vector<2x512xf32>
      %181 = vector.extract_strided_slice %180 {offsets = [0, 0], sizes = [2, 32], strides = [1, 1]} : vector<2x512xf32> to vector<2x32xf32>
      %182 = arith.negf %181 : vector<2x32xf32>
      %183 = math.exp %182 : vector<2x32xf32>
      %cst_56 = arith.constant 1.000000e+00 : f32
      %184 = vector.broadcast %cst_56 : f32 to vector<2x32xf32>
      %185 = arith.addf %184, %183 : vector<2x32xf32>
      %186 = arith.divf %184, %185 : vector<2x32xf32>
      %187 = vector.extract_strided_slice %180 {offsets = [0, 128], sizes = [2, 32], strides = [1, 1]} : vector<2x512xf32> to vector<2x32xf32>
      %188 = arith.negf %187 : vector<2x32xf32>
      %189 = math.exp %188 : vector<2x32xf32>
      %cst_57 = arith.constant 1.000000e+00 : f32
      %190 = vector.broadcast %cst_57 : f32 to vector<2x32xf32>
      %191 = arith.addf %190, %189 : vector<2x32xf32>
      %192 = arith.divf %190, %191 : vector<2x32xf32>
      %193 = vector.extract_strided_slice %180 {offsets = [0, 256], sizes = [2, 32], strides = [1, 1]} : vector<2x512xf32> to vector<2x32xf32>
      %194 = math.tanh %193 : vector<2x32xf32>
      %195 = vector.extract_strided_slice %180 {offsets = [0, 384], sizes = [2, 32], strides = [1, 1]} : vector<2x512xf32> to vector<2x32xf32>
      %196 = arith.negf %195 : vector<2x32xf32>
      %197 = math.exp %196 : vector<2x32xf32>
      %cst_58 = arith.constant 1.000000e+00 : f32
      %198 = vector.broadcast %cst_58 : f32 to vector<2x32xf32>
      %199 = arith.addf %198, %197 : vector<2x32xf32>
      %200 = arith.divf %198, %199 : vector<2x32xf32>
      %201 = arith.mulf %192, %134 : vector<2x32xf32>
      %202 = arith.mulf %186, %194 : vector<2x32xf32>
      %203 = arith.addf %201, %202 : vector<2x32xf32>
      %204 = math.tanh %203 : vector<2x32xf32>
      %205 = arith.mulf %200, %204 : vector<2x32xf32>
      %206 = arith.select %173, %205, %133 : vector<2x32xi1>, vector<2x32xf32>
      %207 = arith.select %173, %203, %134 : vector<2x32xi1>, vector<2x32xf32>
      %208 = arith.truncf %206 : vector<2x32xf32> to vector<2x32xbf16>
      %209 = arith.truncf %167 : vector<2x32xf32> to vector<2x32xbf16>
      %210 = tpu.concatenate %208, %209 in 1 : vector<2x32xbf16>, vector<2x32xbf16> -> vector<2x64xbf16>
      %c0_59 = arith.constant 0 : index
      %c0_60 = arith.constant 0 : index
      %c0_61 = arith.constant 0 : index
      %211 = vector.load %arg6[%c0_59, %c0_60, %c0_61] : memref<1x64x512xbf16, #tpu.memory_space<vmem>>, vector<1x64x512xbf16>
      %212 = vector.shape_cast %211 : vector<1x64x512xbf16> to vector<64x512xbf16>
      %cst_62 = arith.constant dense<0.000000e+00> : vector<2x512xf32>
      %213 = tpu.matmul %210, %212, %cst_62 {dimension_numbers = #tpu.dot_dimension_numbers<[1], [0], [0], [1], [0, 0, 1, 1], [], []>} : vector<2x64xbf16>, vector<64x512xbf16>, vector<2x512xf32> -> vector<2x512xf32>
      %214 = arith.addf %213, %14 : vector<2x512xf32>
      %215 = vector.extract_strided_slice %214 {offsets = [0, 0], sizes = [2, 32], strides = [1, 1]} : vector<2x512xf32> to vector<2x32xf32>
      %216 = arith.negf %215 : vector<2x32xf32>
      %217 = math.exp %216 : vector<2x32xf32>
      %cst_63 = arith.constant 1.000000e+00 : f32
      %218 = vector.broadcast %cst_63 : f32 to vector<2x32xf32>
      %219 = arith.addf %218, %217 : vector<2x32xf32>
      %220 = arith.divf %218, %219 : vector<2x32xf32>
      %221 = vector.extract_strided_slice %214 {offsets = [0, 128], sizes = [2, 32], strides = [1, 1]} : vector<2x512xf32> to vector<2x32xf32>
      %222 = arith.negf %221 : vector<2x32xf32>
      %223 = math.exp %222 : vector<2x32xf32>
      %cst_64 = arith.constant 1.000000e+00 : f32
      %224 = vector.broadcast %cst_64 : f32 to vector<2x32xf32>
      %225 = arith.addf %224, %223 : vector<2x32xf32>
      %226 = arith.divf %224, %225 : vector<2x32xf32>
      %227 = vector.extract_strided_slice %214 {offsets = [0, 256], sizes = [2, 32], strides = [1, 1]} : vector<2x512xf32> to vector<2x32xf32>
      %228 = math.tanh %227 : vector<2x32xf32>
      %229 = vector.extract_strided_slice %214 {offsets = [0, 384], sizes = [2, 32], strides = [1, 1]} : vector<2x512xf32> to vector<2x32xf32>
      %230 = arith.negf %229 : vector<2x32xf32>
      %231 = math.exp %230 : vector<2x32xf32>
      %cst_65 = arith.constant 1.000000e+00 : f32
      %232 = vector.broadcast %cst_65 : f32 to vector<2x32xf32>
      %233 = arith.addf %232, %231 : vector<2x32xf32>
      %234 = arith.divf %232, %233 : vector<2x32xf32>
      %235 = arith.mulf %226, %168 : vector<2x32xf32>
      %236 = arith.mulf %220, %228 : vector<2x32xf32>
      %237 = arith.addf %235, %236 : vector<2x32xf32>
      %238 = math.tanh %237 : vector<2x32xf32>
      %239 = arith.mulf %234, %238 : vector<2x32xf32>
      %240 = arith.select %173, %239, %167 : vector<2x32xi1>, vector<2x32xf32>
      %241 = arith.select %173, %237, %168 : vector<2x32xi1>, vector<2x32xf32>
      %c3_i32 = arith.constant 3 : i32
      %242 = arith.addi %0, %c3_i32 : i32
      %243 = vector.broadcast %242 : i32 to vector<2x1xi32>
      %244 = arith.cmpi slt, %243, %8 : vector<2x1xi32>
      %245 = vector.shape_cast %244 : vector<2x1xi1> to vector<2x1xi1>
      %246 = vector.broadcast %245 : vector<2x1xi1> to vector<2x32xi1>
      %c0_66 = arith.constant 0 : index
      %c3 = arith.constant 3 : index
      %c0_67 = arith.constant 0 : index
      %247 = vector.load %arg3[%c0_66, %c3, %c0_67] : memref<2x8x16xbf16, #tpu.memory_space<vmem>>, vector<2x1x16xbf16>
      %248 = vector.shape_cast %247 : vector<2x1x16xbf16> to vector<2x16xbf16>
      %249 = arith.truncf %206 : vector<2x32xf32> to vector<2x32xbf16>
      %250 = tpu.concatenate %248, %249 in 1 : vector<2x16xbf16>, vector<2x32xbf16> -> vector<2x48xbf16>
      %c0_68 = arith.constant 0 : index
      %c0_69 = arith.constant 0 : index
      %251 = vector.load %arg5[%c0_68, %c0_69] : memref<48x512xbf16, #tpu.memory_space<vmem>>, vector<48x512xbf16>
      %cst_70 = arith.constant dense<0.000000e+00> : vector<2x512xf32>
      %252 = tpu.matmul %250, %251, %cst_70 {dimension_numbers = #tpu.dot_dimension_numbers<[1], [0], [0], [1], [0, 0, 1, 1], [], []>} : vector<2x48xbf16>, vector<48x512xbf16>, vector<2x512xf32> -> vector<2x512xf32>
      %253 = arith.addf %252, %11 : vector<2x512xf32>
      %254 = vector.extract_strided_slice %253 {offsets = [0, 0], sizes = [2, 32], strides = [1, 1]} : vector<2x512xf32> to vector<2x32xf32>
      %255 = arith.negf %254 : vector<2x32xf32>
      %256 = math.exp %255 : vector<2x32xf32>
      %cst_71 = arith.constant 1.000000e+00 : f32
      %257 = vector.broadcast %cst_71 : f32 to vector<2x32xf32>
      %258 = arith.addf %257, %256 : vector<2x32xf32>
      %259 = arith.divf %257, %258 : vector<2x32xf32>
      %260 = vector.extract_strided_slice %253 {offsets = [0, 128], sizes = [2, 32], strides = [1, 1]} : vector<2x512xf32> to vector<2x32xf32>
      %261 = arith.negf %260 : vector<2x32xf32>
      %262 = math.exp %261 : vector<2x32xf32>
      %cst_72 = arith.constant 1.000000e+00 : f32
      %263 = vector.broadcast %cst_72 : f32 to vector<2x32xf32>
      %264 = arith.addf %263, %262 : vector<2x32xf32>
      %265 = arith.divf %263, %264 : vector<2x32xf32>
      %266 = vector.extract_strided_slice %253 {offsets = [0, 256], sizes = [2, 32], strides = [1, 1]} : vector<2x512xf32> to vector<2x32xf32>
      %267 = math.tanh %266 : vector<2x32xf32>
      %268 = vector.extract_strided_slice %253 {offsets = [0, 384], sizes = [2, 32], strides = [1, 1]} : vector<2x512xf32> to vector<2x32xf32>
      %269 = arith.negf %268 : vector<2x32xf32>
      %270 = math.exp %269 : vector<2x32xf32>
      %cst_73 = arith.constant 1.000000e+00 : f32
      %271 = vector.broadcast %cst_73 : f32 to vector<2x32xf32>
      %272 = arith.addf %271, %270 : vector<2x32xf32>
      %273 = arith.divf %271, %272 : vector<2x32xf32>
      %274 = arith.mulf %265, %207 : vector<2x32xf32>
      %275 = arith.mulf %259, %267 : vector<2x32xf32>
      %276 = arith.addf %274, %275 : vector<2x32xf32>
      %277 = math.tanh %276 : vector<2x32xf32>
      %278 = arith.mulf %273, %277 : vector<2x32xf32>
      %279 = arith.select %246, %278, %206 : vector<2x32xi1>, vector<2x32xf32>
      %280 = arith.select %246, %276, %207 : vector<2x32xi1>, vector<2x32xf32>
      %281 = arith.truncf %279 : vector<2x32xf32> to vector<2x32xbf16>
      %282 = arith.truncf %240 : vector<2x32xf32> to vector<2x32xbf16>
      %283 = tpu.concatenate %281, %282 in 1 : vector<2x32xbf16>, vector<2x32xbf16> -> vector<2x64xbf16>
      %c0_74 = arith.constant 0 : index
      %c0_75 = arith.constant 0 : index
      %c0_76 = arith.constant 0 : index
      %284 = vector.load %arg6[%c0_74, %c0_75, %c0_76] : memref<1x64x512xbf16, #tpu.memory_space<vmem>>, vector<1x64x512xbf16>
      %285 = vector.shape_cast %284 : vector<1x64x512xbf16> to vector<64x512xbf16>
      %cst_77 = arith.constant dense<0.000000e+00> : vector<2x512xf32>
      %286 = tpu.matmul %283, %285, %cst_77 {dimension_numbers = #tpu.dot_dimension_numbers<[1], [0], [0], [1], [0, 0, 1, 1], [], []>} : vector<2x64xbf16>, vector<64x512xbf16>, vector<2x512xf32> -> vector<2x512xf32>
      %287 = arith.addf %286, %14 : vector<2x512xf32>
      %288 = vector.extract_strided_slice %287 {offsets = [0, 0], sizes = [2, 32], strides = [1, 1]} : vector<2x512xf32> to vector<2x32xf32>
      %289 = arith.negf %288 : vector<2x32xf32>
      %290 = math.exp %289 : vector<2x32xf32>
      %cst_78 = arith.constant 1.000000e+00 : f32
      %291 = vector.broadcast %cst_78 : f32 to vector<2x32xf32>
      %292 = arith.addf %291, %290 : vector<2x32xf32>
      %293 = arith.divf %291, %292 : vector<2x32xf32>
      %294 = vector.extract_strided_slice %287 {offsets = [0, 128], sizes = [2, 32], strides = [1, 1]} : vector<2x512xf32> to vector<2x32xf32>
      %295 = arith.negf %294 : vector<2x32xf32>
      %296 = math.exp %295 : vector<2x32xf32>
      %cst_79 = arith.constant 1.000000e+00 : f32
      %297 = vector.broadcast %cst_79 : f32 to vector<2x32xf32>
      %298 = arith.addf %297, %296 : vector<2x32xf32>
      %299 = arith.divf %297, %298 : vector<2x32xf32>
      %300 = vector.extract_strided_slice %287 {offsets = [0, 256], sizes = [2, 32], strides = [1, 1]} : vector<2x512xf32> to vector<2x32xf32>
      %301 = math.tanh %300 : vector<2x32xf32>
      %302 = vector.extract_strided_slice %287 {offsets = [0, 384], sizes = [2, 32], strides = [1, 1]} : vector<2x512xf32> to vector<2x32xf32>
      %303 = arith.negf %302 : vector<2x32xf32>
      %304 = math.exp %303 : vector<2x32xf32>
      %cst_80 = arith.constant 1.000000e+00 : f32
      %305 = vector.broadcast %cst_80 : f32 to vector<2x32xf32>
      %306 = arith.addf %305, %304 : vector<2x32xf32>
      %307 = arith.divf %305, %306 : vector<2x32xf32>
      %308 = arith.mulf %299, %241 : vector<2x32xf32>
      %309 = arith.mulf %293, %301 : vector<2x32xf32>
      %310 = arith.addf %308, %309 : vector<2x32xf32>
      %311 = math.tanh %310 : vector<2x32xf32>
      %312 = arith.mulf %307, %311 : vector<2x32xf32>
      %313 = arith.select %246, %312, %240 : vector<2x32xi1>, vector<2x32xf32>
      %314 = arith.select %246, %310, %241 : vector<2x32xi1>, vector<2x32xf32>
      %c4_i32 = arith.constant 4 : i32
      %315 = arith.addi %0, %c4_i32 : i32
      %316 = vector.broadcast %315 : i32 to vector<2x1xi32>
      %317 = arith.cmpi slt, %316, %8 : vector<2x1xi32>
      %318 = vector.shape_cast %317 : vector<2x1xi1> to vector<2x1xi1>
      %319 = vector.broadcast %318 : vector<2x1xi1> to vector<2x32xi1>
      %c0_81 = arith.constant 0 : index
      %c4 = arith.constant 4 : index
      %c0_82 = arith.constant 0 : index
      %320 = vector.load %arg3[%c0_81, %c4, %c0_82] : memref<2x8x16xbf16, #tpu.memory_space<vmem>>, vector<2x1x16xbf16>
      %321 = vector.shape_cast %320 : vector<2x1x16xbf16> to vector<2x16xbf16>
      %322 = arith.truncf %279 : vector<2x32xf32> to vector<2x32xbf16>
      %323 = tpu.concatenate %321, %322 in 1 : vector<2x16xbf16>, vector<2x32xbf16> -> vector<2x48xbf16>
      %c0_83 = arith.constant 0 : index
      %c0_84 = arith.constant 0 : index
      %324 = vector.load %arg5[%c0_83, %c0_84] : memref<48x512xbf16, #tpu.memory_space<vmem>>, vector<48x512xbf16>
      %cst_85 = arith.constant dense<0.000000e+00> : vector<2x512xf32>
      %325 = tpu.matmul %323, %324, %cst_85 {dimension_numbers = #tpu.dot_dimension_numbers<[1], [0], [0], [1], [0, 0, 1, 1], [], []>} : vector<2x48xbf16>, vector<48x512xbf16>, vector<2x512xf32> -> vector<2x512xf32>
      %326 = arith.addf %325, %11 : vector<2x512xf32>
      %327 = vector.extract_strided_slice %326 {offsets = [0, 0], sizes = [2, 32], strides = [1, 1]} : vector<2x512xf32> to vector<2x32xf32>
      %328 = arith.negf %327 : vector<2x32xf32>
      %329 = math.exp %328 : vector<2x32xf32>
      %cst_86 = arith.constant 1.000000e+00 : f32
      %330 = vector.broadcast %cst_86 : f32 to vector<2x32xf32>
      %331 = arith.addf %330, %329 : vector<2x32xf32>
      %332 = arith.divf %330, %331 : vector<2x32xf32>
      %333 = vector.extract_strided_slice %326 {offsets = [0, 128], sizes = [2, 32], strides = [1, 1]} : vector<2x512xf32> to vector<2x32xf32>
      %334 = arith.negf %333 : vector<2x32xf32>
      %335 = math.exp %334 : vector<2x32xf32>
      %cst_87 = arith.constant 1.000000e+00 : f32
      %336 = vector.broadcast %cst_87 : f32 to vector<2x32xf32>
      %337 = arith.addf %336, %335 : vector<2x32xf32>
      %338 = arith.divf %336, %337 : vector<2x32xf32>
      %339 = vector.extract_strided_slice %326 {offsets = [0, 256], sizes = [2, 32], strides = [1, 1]} : vector<2x512xf32> to vector<2x32xf32>
      %340 = math.tanh %339 : vector<2x32xf32>
      %341 = vector.extract_strided_slice %326 {offsets = [0, 384], sizes = [2, 32], strides = [1, 1]} : vector<2x512xf32> to vector<2x32xf32>
      %342 = arith.negf %341 : vector<2x32xf32>
      %343 = math.exp %342 : vector<2x32xf32>
      %cst_88 = arith.constant 1.000000e+00 : f32
      %344 = vector.broadcast %cst_88 : f32 to vector<2x32xf32>
      %345 = arith.addf %344, %343 : vector<2x32xf32>
      %346 = arith.divf %344, %345 : vector<2x32xf32>
      %347 = arith.mulf %338, %280 : vector<2x32xf32>
      %348 = arith.mulf %332, %340 : vector<2x32xf32>
      %349 = arith.addf %347, %348 : vector<2x32xf32>
      %350 = math.tanh %349 : vector<2x32xf32>
      %351 = arith.mulf %346, %350 : vector<2x32xf32>
      %352 = arith.select %319, %351, %279 : vector<2x32xi1>, vector<2x32xf32>
      %353 = arith.select %319, %349, %280 : vector<2x32xi1>, vector<2x32xf32>
      %354 = arith.truncf %352 : vector<2x32xf32> to vector<2x32xbf16>
      %355 = arith.truncf %313 : vector<2x32xf32> to vector<2x32xbf16>
      %356 = tpu.concatenate %354, %355 in 1 : vector<2x32xbf16>, vector<2x32xbf16> -> vector<2x64xbf16>
      %c0_89 = arith.constant 0 : index
      %c0_90 = arith.constant 0 : index
      %c0_91 = arith.constant 0 : index
      %357 = vector.load %arg6[%c0_89, %c0_90, %c0_91] : memref<1x64x512xbf16, #tpu.memory_space<vmem>>, vector<1x64x512xbf16>
      %358 = vector.shape_cast %357 : vector<1x64x512xbf16> to vector<64x512xbf16>
      %cst_92 = arith.constant dense<0.000000e+00> : vector<2x512xf32>
      %359 = tpu.matmul %356, %358, %cst_92 {dimension_numbers = #tpu.dot_dimension_numbers<[1], [0], [0], [1], [0, 0, 1, 1], [], []>} : vector<2x64xbf16>, vector<64x512xbf16>, vector<2x512xf32> -> vector<2x512xf32>
      %360 = arith.addf %359, %14 : vector<2x512xf32>
      %361 = vector.extract_strided_slice %360 {offsets = [0, 0], sizes = [2, 32], strides = [1, 1]} : vector<2x512xf32> to vector<2x32xf32>
      %362 = arith.negf %361 : vector<2x32xf32>
      %363 = math.exp %362 : vector<2x32xf32>
      %cst_93 = arith.constant 1.000000e+00 : f32
      %364 = vector.broadcast %cst_93 : f32 to vector<2x32xf32>
      %365 = arith.addf %364, %363 : vector<2x32xf32>
      %366 = arith.divf %364, %365 : vector<2x32xf32>
      %367 = vector.extract_strided_slice %360 {offsets = [0, 128], sizes = [2, 32], strides = [1, 1]} : vector<2x512xf32> to vector<2x32xf32>
      %368 = arith.negf %367 : vector<2x32xf32>
      %369 = math.exp %368 : vector<2x32xf32>
      %cst_94 = arith.constant 1.000000e+00 : f32
      %370 = vector.broadcast %cst_94 : f32 to vector<2x32xf32>
      %371 = arith.addf %370, %369 : vector<2x32xf32>
      %372 = arith.divf %370, %371 : vector<2x32xf32>
      %373 = vector.extract_strided_slice %360 {offsets = [0, 256], sizes = [2, 32], strides = [1, 1]} : vector<2x512xf32> to vector<2x32xf32>
      %374 = math.tanh %373 : vector<2x32xf32>
      %375 = vector.extract_strided_slice %360 {offsets = [0, 384], sizes = [2, 32], strides = [1, 1]} : vector<2x512xf32> to vector<2x32xf32>
      %376 = arith.negf %375 : vector<2x32xf32>
      %377 = math.exp %376 : vector<2x32xf32>
      %cst_95 = arith.constant 1.000000e+00 : f32
      %378 = vector.broadcast %cst_95 : f32 to vector<2x32xf32>
      %379 = arith.addf %378, %377 : vector<2x32xf32>
      %380 = arith.divf %378, %379 : vector<2x32xf32>
      %381 = arith.mulf %372, %314 : vector<2x32xf32>
      %382 = arith.mulf %366, %374 : vector<2x32xf32>
      %383 = arith.addf %381, %382 : vector<2x32xf32>
      %384 = math.tanh %383 : vector<2x32xf32>
      %385 = arith.mulf %380, %384 : vector<2x32xf32>
      %386 = arith.select %319, %385, %313 : vector<2x32xi1>, vector<2x32xf32>
      %387 = arith.select %319, %383, %314 : vector<2x32xi1>, vector<2x32xf32>
      %c5_i32 = arith.constant 5 : i32
      %388 = arith.addi %0, %c5_i32 : i32
      %389 = vector.broadcast %388 : i32 to vector<2x1xi32>
      %390 = arith.cmpi slt, %389, %8 : vector<2x1xi32>
      %391 = vector.shape_cast %390 : vector<2x1xi1> to vector<2x1xi1>
      %392 = vector.broadcast %391 : vector<2x1xi1> to vector<2x32xi1>
      %c0_96 = arith.constant 0 : index
      %c5 = arith.constant 5 : index
      %c0_97 = arith.constant 0 : index
      %393 = vector.load %arg3[%c0_96, %c5, %c0_97] : memref<2x8x16xbf16, #tpu.memory_space<vmem>>, vector<2x1x16xbf16>
      %394 = vector.shape_cast %393 : vector<2x1x16xbf16> to vector<2x16xbf16>
      %395 = arith.truncf %352 : vector<2x32xf32> to vector<2x32xbf16>
      %396 = tpu.concatenate %394, %395 in 1 : vector<2x16xbf16>, vector<2x32xbf16> -> vector<2x48xbf16>
      %c0_98 = arith.constant 0 : index
      %c0_99 = arith.constant 0 : index
      %397 = vector.load %arg5[%c0_98, %c0_99] : memref<48x512xbf16, #tpu.memory_space<vmem>>, vector<48x512xbf16>
      %cst_100 = arith.constant dense<0.000000e+00> : vector<2x512xf32>
      %398 = tpu.matmul %396, %397, %cst_100 {dimension_numbers = #tpu.dot_dimension_numbers<[1], [0], [0], [1], [0, 0, 1, 1], [], []>} : vector<2x48xbf16>, vector<48x512xbf16>, vector<2x512xf32> -> vector<2x512xf32>
      %399 = arith.addf %398, %11 : vector<2x512xf32>
      %400 = vector.extract_strided_slice %399 {offsets = [0, 0], sizes = [2, 32], strides = [1, 1]} : vector<2x512xf32> to vector<2x32xf32>
      %401 = arith.negf %400 : vector<2x32xf32>
      %402 = math.exp %401 : vector<2x32xf32>
      %cst_101 = arith.constant 1.000000e+00 : f32
      %403 = vector.broadcast %cst_101 : f32 to vector<2x32xf32>
      %404 = arith.addf %403, %402 : vector<2x32xf32>
      %405 = arith.divf %403, %404 : vector<2x32xf32>
      %406 = vector.extract_strided_slice %399 {offsets = [0, 128], sizes = [2, 32], strides = [1, 1]} : vector<2x512xf32> to vector<2x32xf32>
      %407 = arith.negf %406 : vector<2x32xf32>
      %408 = math.exp %407 : vector<2x32xf32>
      %cst_102 = arith.constant 1.000000e+00 : f32
      %409 = vector.broadcast %cst_102 : f32 to vector<2x32xf32>
      %410 = arith.addf %409, %408 : vector<2x32xf32>
      %411 = arith.divf %409, %410 : vector<2x32xf32>
      %412 = vector.extract_strided_slice %399 {offsets = [0, 256], sizes = [2, 32], strides = [1, 1]} : vector<2x512xf32> to vector<2x32xf32>
      %413 = math.tanh %412 : vector<2x32xf32>
      %414 = vector.extract_strided_slice %399 {offsets = [0, 384], sizes = [2, 32], strides = [1, 1]} : vector<2x512xf32> to vector<2x32xf32>
      %415 = arith.negf %414 : vector<2x32xf32>
      %416 = math.exp %415 : vector<2x32xf32>
      %cst_103 = arith.constant 1.000000e+00 : f32
      %417 = vector.broadcast %cst_103 : f32 to vector<2x32xf32>
      %418 = arith.addf %417, %416 : vector<2x32xf32>
      %419 = arith.divf %417, %418 : vector<2x32xf32>
      %420 = arith.mulf %411, %353 : vector<2x32xf32>
      %421 = arith.mulf %405, %413 : vector<2x32xf32>
      %422 = arith.addf %420, %421 : vector<2x32xf32>
      %423 = math.tanh %422 : vector<2x32xf32>
      %424 = arith.mulf %419, %423 : vector<2x32xf32>
      %425 = arith.select %392, %424, %352 : vector<2x32xi1>, vector<2x32xf32>
      %426 = arith.select %392, %422, %353 : vector<2x32xi1>, vector<2x32xf32>
      %427 = arith.truncf %425 : vector<2x32xf32> to vector<2x32xbf16>
      %428 = arith.truncf %386 : vector<2x32xf32> to vector<2x32xbf16>
      %429 = tpu.concatenate %427, %428 in 1 : vector<2x32xbf16>, vector<2x32xbf16> -> vector<2x64xbf16>
      %c0_104 = arith.constant 0 : index
      %c0_105 = arith.constant 0 : index
      %c0_106 = arith.constant 0 : index
      %430 = vector.load %arg6[%c0_104, %c0_105, %c0_106] : memref<1x64x512xbf16, #tpu.memory_space<vmem>>, vector<1x64x512xbf16>
      %431 = vector.shape_cast %430 : vector<1x64x512xbf16> to vector<64x512xbf16>
      %cst_107 = arith.constant dense<0.000000e+00> : vector<2x512xf32>
      %432 = tpu.matmul %429, %431, %cst_107 {dimension_numbers = #tpu.dot_dimension_numbers<[1], [0], [0], [1], [0, 0, 1, 1], [], []>} : vector<2x64xbf16>, vector<64x512xbf16>, vector<2x512xf32> -> vector<2x512xf32>
      %433 = arith.addf %432, %14 : vector<2x512xf32>
      %434 = vector.extract_strided_slice %433 {offsets = [0, 0], sizes = [2, 32], strides = [1, 1]} : vector<2x512xf32> to vector<2x32xf32>
      %435 = arith.negf %434 : vector<2x32xf32>
      %436 = math.exp %435 : vector<2x32xf32>
      %cst_108 = arith.constant 1.000000e+00 : f32
      %437 = vector.broadcast %cst_108 : f32 to vector<2x32xf32>
      %438 = arith.addf %437, %436 : vector<2x32xf32>
      %439 = arith.divf %437, %438 : vector<2x32xf32>
      %440 = vector.extract_strided_slice %433 {offsets = [0, 128], sizes = [2, 32], strides = [1, 1]} : vector<2x512xf32> to vector<2x32xf32>
      %441 = arith.negf %440 : vector<2x32xf32>
      %442 = math.exp %441 : vector<2x32xf32>
      %cst_109 = arith.constant 1.000000e+00 : f32
      %443 = vector.broadcast %cst_109 : f32 to vector<2x32xf32>
      %444 = arith.addf %443, %442 : vector<2x32xf32>
      %445 = arith.divf %443, %444 : vector<2x32xf32>
      %446 = vector.extract_strided_slice %433 {offsets = [0, 256], sizes = [2, 32], strides = [1, 1]} : vector<2x512xf32> to vector<2x32xf32>
      %447 = math.tanh %446 : vector<2x32xf32>
      %448 = vector.extract_strided_slice %433 {offsets = [0, 384], sizes = [2, 32], strides = [1, 1]} : vector<2x512xf32> to vector<2x32xf32>
      %449 = arith.negf %448 : vector<2x32xf32>
      %450 = math.exp %449 : vector<2x32xf32>
      %cst_110 = arith.constant 1.000000e+00 : f32
      %451 = vector.broadcast %cst_110 : f32 to vector<2x32xf32>
      %452 = arith.addf %451, %450 : vector<2x32xf32>
      %453 = arith.divf %451, %452 : vector<2x32xf32>
      %454 = arith.mulf %445, %387 : vector<2x32xf32>
      %455 = arith.mulf %439, %447 : vector<2x32xf32>
      %456 = arith.addf %454, %455 : vector<2x32xf32>
      %457 = math.tanh %456 : vector<2x32xf32>
      %458 = arith.mulf %453, %457 : vector<2x32xf32>
      %459 = arith.select %392, %458, %386 : vector<2x32xi1>, vector<2x32xf32>
      %460 = arith.select %392, %456, %387 : vector<2x32xi1>, vector<2x32xf32>
      %c6_i32 = arith.constant 6 : i32
      %461 = arith.addi %0, %c6_i32 : i32
      %462 = vector.broadcast %461 : i32 to vector<2x1xi32>
      %463 = arith.cmpi slt, %462, %8 : vector<2x1xi32>
      %464 = vector.shape_cast %463 : vector<2x1xi1> to vector<2x1xi1>
      %465 = vector.broadcast %464 : vector<2x1xi1> to vector<2x32xi1>
      %c0_111 = arith.constant 0 : index
      %c6 = arith.constant 6 : index
      %c0_112 = arith.constant 0 : index
      %466 = vector.load %arg3[%c0_111, %c6, %c0_112] : memref<2x8x16xbf16, #tpu.memory_space<vmem>>, vector<2x1x16xbf16>
      %467 = vector.shape_cast %466 : vector<2x1x16xbf16> to vector<2x16xbf16>
      %468 = arith.truncf %425 : vector<2x32xf32> to vector<2x32xbf16>
      %469 = tpu.concatenate %467, %468 in 1 : vector<2x16xbf16>, vector<2x32xbf16> -> vector<2x48xbf16>
      %c0_113 = arith.constant 0 : index
      %c0_114 = arith.constant 0 : index
      %470 = vector.load %arg5[%c0_113, %c0_114] : memref<48x512xbf16, #tpu.memory_space<vmem>>, vector<48x512xbf16>
      %cst_115 = arith.constant dense<0.000000e+00> : vector<2x512xf32>
      %471 = tpu.matmul %469, %470, %cst_115 {dimension_numbers = #tpu.dot_dimension_numbers<[1], [0], [0], [1], [0, 0, 1, 1], [], []>} : vector<2x48xbf16>, vector<48x512xbf16>, vector<2x512xf32> -> vector<2x512xf32>
      %472 = arith.addf %471, %11 : vector<2x512xf32>
      %473 = vector.extract_strided_slice %472 {offsets = [0, 0], sizes = [2, 32], strides = [1, 1]} : vector<2x512xf32> to vector<2x32xf32>
      %474 = arith.negf %473 : vector<2x32xf32>
      %475 = math.exp %474 : vector<2x32xf32>
      %cst_116 = arith.constant 1.000000e+00 : f32
      %476 = vector.broadcast %cst_116 : f32 to vector<2x32xf32>
      %477 = arith.addf %476, %475 : vector<2x32xf32>
      %478 = arith.divf %476, %477 : vector<2x32xf32>
      %479 = vector.extract_strided_slice %472 {offsets = [0, 128], sizes = [2, 32], strides = [1, 1]} : vector<2x512xf32> to vector<2x32xf32>
      %480 = arith.negf %479 : vector<2x32xf32>
      %481 = math.exp %480 : vector<2x32xf32>
      %cst_117 = arith.constant 1.000000e+00 : f32
      %482 = vector.broadcast %cst_117 : f32 to vector<2x32xf32>
      %483 = arith.addf %482, %481 : vector<2x32xf32>
      %484 = arith.divf %482, %483 : vector<2x32xf32>
      %485 = vector.extract_strided_slice %472 {offsets = [0, 256], sizes = [2, 32], strides = [1, 1]} : vector<2x512xf32> to vector<2x32xf32>
      %486 = math.tanh %485 : vector<2x32xf32>
      %487 = vector.extract_strided_slice %472 {offsets = [0, 384], sizes = [2, 32], strides = [1, 1]} : vector<2x512xf32> to vector<2x32xf32>
      %488 = arith.negf %487 : vector<2x32xf32>
      %489 = math.exp %488 : vector<2x32xf32>
      %cst_118 = arith.constant 1.000000e+00 : f32
      %490 = vector.broadcast %cst_118 : f32 to vector<2x32xf32>
      %491 = arith.addf %490, %489 : vector<2x32xf32>
      %492 = arith.divf %490, %491 : vector<2x32xf32>
      %493 = arith.mulf %484, %426 : vector<2x32xf32>
      %494 = arith.mulf %478, %486 : vector<2x32xf32>
      %495 = arith.addf %493, %494 : vector<2x32xf32>
      %496 = math.tanh %495 : vector<2x32xf32>
      %497 = arith.mulf %492, %496 : vector<2x32xf32>
      %498 = arith.select %465, %497, %425 : vector<2x32xi1>, vector<2x32xf32>
      %499 = arith.select %465, %495, %426 : vector<2x32xi1>, vector<2x32xf32>
      %500 = arith.truncf %498 : vector<2x32xf32> to vector<2x32xbf16>
      %501 = arith.truncf %459 : vector<2x32xf32> to vector<2x32xbf16>
      %502 = tpu.concatenate %500, %501 in 1 : vector<2x32xbf16>, vector<2x32xbf16> -> vector<2x64xbf16>
      %c0_119 = arith.constant 0 : index
      %c0_120 = arith.constant 0 : index
      %c0_121 = arith.constant 0 : index
      %503 = vector.load %arg6[%c0_119, %c0_120, %c0_121] : memref<1x64x512xbf16, #tpu.memory_space<vmem>>, vector<1x64x512xbf16>
      %504 = vector.shape_cast %503 : vector<1x64x512xbf16> to vector<64x512xbf16>
      %cst_122 = arith.constant dense<0.000000e+00> : vector<2x512xf32>
      %505 = tpu.matmul %502, %504, %cst_122 {dimension_numbers = #tpu.dot_dimension_numbers<[1], [0], [0], [1], [0, 0, 1, 1], [], []>} : vector<2x64xbf16>, vector<64x512xbf16>, vector<2x512xf32> -> vector<2x512xf32>
      %506 = arith.addf %505, %14 : vector<2x512xf32>
      %507 = vector.extract_strided_slice %506 {offsets = [0, 0], sizes = [2, 32], strides = [1, 1]} : vector<2x512xf32> to vector<2x32xf32>
      %508 = arith.negf %507 : vector<2x32xf32>
      %509 = math.exp %508 : vector<2x32xf32>
      %cst_123 = arith.constant 1.000000e+00 : f32
      %510 = vector.broadcast %cst_123 : f32 to vector<2x32xf32>
      %511 = arith.addf %510, %509 : vector<2x32xf32>
      %512 = arith.divf %510, %511 : vector<2x32xf32>
      %513 = vector.extract_strided_slice %506 {offsets = [0, 128], sizes = [2, 32], strides = [1, 1]} : vector<2x512xf32> to vector<2x32xf32>
      %514 = arith.negf %513 : vector<2x32xf32>
      %515 = math.exp %514 : vector<2x32xf32>
      %cst_124 = arith.constant 1.000000e+00 : f32
      %516 = vector.broadcast %cst_124 : f32 to vector<2x32xf32>
      %517 = arith.addf %516, %515 : vector<2x32xf32>
      %518 = arith.divf %516, %517 : vector<2x32xf32>
      %519 = vector.extract_strided_slice %506 {offsets = [0, 256], sizes = [2, 32], strides = [1, 1]} : vector<2x512xf32> to vector<2x32xf32>
      %520 = math.tanh %519 : vector<2x32xf32>
      %521 = vector.extract_strided_slice %506 {offsets = [0, 384], sizes = [2, 32], strides = [1, 1]} : vector<2x512xf32> to vector<2x32xf32>
      %522 = arith.negf %521 : vector<2x32xf32>
      %523 = math.exp %522 : vector<2x32xf32>
      %cst_125 = arith.constant 1.000000e+00 : f32
      %524 = vector.broadcast %cst_125 : f32 to vector<2x32xf32>
      %525 = arith.addf %524, %523 : vector<2x32xf32>
      %526 = arith.divf %524, %525 : vector<2x32xf32>
      %527 = arith.mulf %518, %460 : vector<2x32xf32>
      %528 = arith.mulf %512, %520 : vector<2x32xf32>
      %529 = arith.addf %527, %528 : vector<2x32xf32>
      %530 = math.tanh %529 : vector<2x32xf32>
      %531 = arith.mulf %526, %530 : vector<2x32xf32>
      %532 = arith.select %465, %531, %459 : vector<2x32xi1>, vector<2x32xf32>
      %533 = arith.select %465, %529, %460 : vector<2x32xi1>, vector<2x32xf32>
      %c7_i32 = arith.constant 7 : i32
      %534 = arith.addi %0, %c7_i32 : i32
      %535 = vector.broadcast %534 : i32 to vector<2x1xi32>
      %536 = arith.cmpi slt, %535, %8 : vector<2x1xi32>
      %537 = vector.shape_cast %536 : vector<2x1xi1> to vector<2x1xi1>
      %538 = vector.broadcast %537 : vector<2x1xi1> to vector<2x32xi1>
      %c0_126 = arith.constant 0 : index
      %c7 = arith.constant 7 : index
      %c0_127 = arith.constant 0 : index
      %539 = vector.load %arg3[%c0_126, %c7, %c0_127] : memref<2x8x16xbf16, #tpu.memory_space<vmem>>, vector<2x1x16xbf16>
      %540 = vector.shape_cast %539 : vector<2x1x16xbf16> to vector<2x16xbf16>
      %541 = arith.truncf %498 : vector<2x32xf32> to vector<2x32xbf16>
      %542 = tpu.concatenate %540, %541 in 1 : vector<2x16xbf16>, vector<2x32xbf16> -> vector<2x48xbf16>
      %c0_128 = arith.constant 0 : index
      %c0_129 = arith.constant 0 : index
      %543 = vector.load %arg5[%c0_128, %c0_129] : memref<48x512xbf16, #tpu.memory_space<vmem>>, vector<48x512xbf16>
      %cst_130 = arith.constant dense<0.000000e+00> : vector<2x512xf32>
      %544 = tpu.matmul %542, %543, %cst_130 {dimension_numbers = #tpu.dot_dimension_numbers<[1], [0], [0], [1], [0, 0, 1, 1], [], []>} : vector<2x48xbf16>, vector<48x512xbf16>, vector<2x512xf32> -> vector<2x512xf32>
      %545 = arith.addf %544, %11 : vector<2x512xf32>
      %546 = vector.extract_strided_slice %545 {offsets = [0, 0], sizes = [2, 32], strides = [1, 1]} : vector<2x512xf32> to vector<2x32xf32>
      %547 = arith.negf %546 : vector<2x32xf32>
      %548 = math.exp %547 : vector<2x32xf32>
      %cst_131 = arith.constant 1.000000e+00 : f32
      %549 = vector.broadcast %cst_131 : f32 to vector<2x32xf32>
      %550 = arith.addf %549, %548 : vector<2x32xf32>
      %551 = arith.divf %549, %550 : vector<2x32xf32>
      %552 = vector.extract_strided_slice %545 {offsets = [0, 128], sizes = [2, 32], strides = [1, 1]} : vector<2x512xf32> to vector<2x32xf32>
      %553 = arith.negf %552 : vector<2x32xf32>
      %554 = math.exp %553 : vector<2x32xf32>
      %cst_132 = arith.constant 1.000000e+00 : f32
      %555 = vector.broadcast %cst_132 : f32 to vector<2x32xf32>
      %556 = arith.addf %555, %554 : vector<2x32xf32>
      %557 = arith.divf %555, %556 : vector<2x32xf32>
      %558 = vector.extract_strided_slice %545 {offsets = [0, 256], sizes = [2, 32], strides = [1, 1]} : vector<2x512xf32> to vector<2x32xf32>
      %559 = math.tanh %558 : vector<2x32xf32>
      %560 = vector.extract_strided_slice %545 {offsets = [0, 384], sizes = [2, 32], strides = [1, 1]} : vector<2x512xf32> to vector<2x32xf32>
      %561 = arith.negf %560 : vector<2x32xf32>
      %562 = math.exp %561 : vector<2x32xf32>
      %cst_133 = arith.constant 1.000000e+00 : f32
      %563 = vector.broadcast %cst_133 : f32 to vector<2x32xf32>
      %564 = arith.addf %563, %562 : vector<2x32xf32>
      %565 = arith.divf %563, %564 : vector<2x32xf32>
      %566 = arith.mulf %557, %499 : vector<2x32xf32>
      %567 = arith.mulf %551, %559 : vector<2x32xf32>
      %568 = arith.addf %566, %567 : vector<2x32xf32>
      %569 = math.tanh %568 : vector<2x32xf32>
      %570 = arith.mulf %565, %569 : vector<2x32xf32>
      %571 = arith.select %538, %570, %498 : vector<2x32xi1>, vector<2x32xf32>
      %572 = arith.select %538, %568, %499 : vector<2x32xi1>, vector<2x32xf32>
      %573 = arith.truncf %571 : vector<2x32xf32> to vector<2x32xbf16>
      %574 = arith.truncf %532 : vector<2x32xf32> to vector<2x32xbf16>
      %575 = tpu.concatenate %573, %574 in 1 : vector<2x32xbf16>, vector<2x32xbf16> -> vector<2x64xbf16>
      %c0_134 = arith.constant 0 : index
      %c0_135 = arith.constant 0 : index
      %c0_136 = arith.constant 0 : index
      %576 = vector.load %arg6[%c0_134, %c0_135, %c0_136] : memref<1x64x512xbf16, #tpu.memory_space<vmem>>, vector<1x64x512xbf16>
      %577 = vector.shape_cast %576 : vector<1x64x512xbf16> to vector<64x512xbf16>
      %cst_137 = arith.constant dense<0.000000e+00> : vector<2x512xf32>
      %578 = tpu.matmul %575, %577, %cst_137 {dimension_numbers = #tpu.dot_dimension_numbers<[1], [0], [0], [1], [0, 0, 1, 1], [], []>} : vector<2x64xbf16>, vector<64x512xbf16>, vector<2x512xf32> -> vector<2x512xf32>
      %579 = arith.addf %578, %14 : vector<2x512xf32>
      %580 = vector.extract_strided_slice %579 {offsets = [0, 0], sizes = [2, 32], strides = [1, 1]} : vector<2x512xf32> to vector<2x32xf32>
      %581 = arith.negf %580 : vector<2x32xf32>
      %582 = math.exp %581 : vector<2x32xf32>
      %cst_138 = arith.constant 1.000000e+00 : f32
      %583 = vector.broadcast %cst_138 : f32 to vector<2x32xf32>
      %584 = arith.addf %583, %582 : vector<2x32xf32>
      %585 = arith.divf %583, %584 : vector<2x32xf32>
      %586 = vector.extract_strided_slice %579 {offsets = [0, 128], sizes = [2, 32], strides = [1, 1]} : vector<2x512xf32> to vector<2x32xf32>
      %587 = arith.negf %586 : vector<2x32xf32>
      %588 = math.exp %587 : vector<2x32xf32>
      %cst_139 = arith.constant 1.000000e+00 : f32
      %589 = vector.broadcast %cst_139 : f32 to vector<2x32xf32>
      %590 = arith.addf %589, %588 : vector<2x32xf32>
      %591 = arith.divf %589, %590 : vector<2x32xf32>
      %592 = vector.extract_strided_slice %579 {offsets = [0, 256], sizes = [2, 32], strides = [1, 1]} : vector<2x512xf32> to vector<2x32xf32>
      %593 = math.tanh %592 : vector<2x32xf32>
      %594 = vector.extract_strided_slice %579 {offsets = [0, 384], sizes = [2, 32], strides = [1, 1]} : vector<2x512xf32> to vector<2x32xf32>
      %595 = arith.negf %594 : vector<2x32xf32>
      %596 = math.exp %595 : vector<2x32xf32>
      %cst_140 = arith.constant 1.000000e+00 : f32
      %597 = vector.broadcast %cst_140 : f32 to vector<2x32xf32>
      %598 = arith.addf %597, %596 : vector<2x32xf32>
      %599 = arith.divf %597, %598 : vector<2x32xf32>
      %600 = arith.mulf %591, %533 : vector<2x32xf32>
      %601 = arith.mulf %585, %593 : vector<2x32xf32>
      %602 = arith.addf %600, %601 : vector<2x32xf32>
      %603 = math.tanh %602 : vector<2x32xf32>
      %604 = arith.mulf %599, %603 : vector<2x32xf32>
      %605 = arith.select %538, %604, %532 : vector<2x32xi1>, vector<2x32xf32>
      %606 = arith.select %538, %602, %533 : vector<2x32xi1>, vector<2x32xf32>
      %c0_141 = arith.constant 0 : index
      %c0_142 = arith.constant 0 : index
      %c0_143 = arith.constant 0 : index
      %607 = vector.load %arg11[%c0_141, %c0_142, %c0_143] : memref<2x2x32xf32, #tpu.memory_space<vmem>>, vector<1x2x32xf32>
      %608 = vector.shape_cast %607 : vector<1x2x32xf32> to vector<2x32xf32>
      %609 = vector.shape_cast %571 : vector<2x32xf32> to vector<1x2x32xf32>
      tpu.vector_store %arg11[%c0_141, %c0_142, %c0_143], %609 {strides = array<i32>} : memref<2x2x32xf32, #tpu.memory_space<vmem>>, vector<1x2x32xf32>,
      %c0_144 = arith.constant 0 : index
      %c0_145 = arith.constant 0 : index
      %c0_146 = arith.constant 0 : index
      %610 = vector.load %arg12[%c0_144, %c0_145, %c0_146] : memref<2x2x32xf32, #tpu.memory_space<vmem>>, vector<1x2x32xf32>
      %611 = vector.shape_cast %610 : vector<1x2x32xf32> to vector<2x32xf32>
      %612 = vector.shape_cast %572 : vector<2x32xf32> to vector<1x2x32xf32>
      tpu.vector_store %arg12[%c0_144, %c0_145, %c0_146], %612 {strides = array<i32>} : memref<2x2x32xf32, #tpu.memory_space<vmem>>, vector<1x2x32xf32>,
      %c1_147 = arith.constant 1 : index
      %c0_148 = arith.constant 0 : index
      %c0_149 = arith.constant 0 : index
      %613 = vector.load %arg11[%c1_147, %c0_148, %c0_149] : memref<2x2x32xf32, #tpu.memory_space<vmem>>, vector<1x2x32xf32>
      %614 = vector.shape_cast %613 : vector<1x2x32xf32> to vector<2x32xf32>
      %615 = vector.shape_cast %605 : vector<2x32xf32> to vector<1x2x32xf32>
      tpu.vector_store %arg11[%c1_147, %c0_148, %c0_149], %615 {strides = array<i32>} : memref<2x2x32xf32, #tpu.memory_space<vmem>>, vector<1x2x32xf32>,
      %c1_150 = arith.constant 1 : index
      %c0_151 = arith.constant 0 : index
      %c0_152 = arith.constant 0 : index
      %616 = vector.load %arg12[%c1_150, %c0_151, %c0_152] : memref<2x2x32xf32, #tpu.memory_space<vmem>>, vector<1x2x32xf32>
      %617 = vector.shape_cast %616 : vector<1x2x32xf32> to vector<2x32xf32>
      %618 = vector.shape_cast %606 : vector<2x32xf32> to vector<1x2x32xf32>
      tpu.vector_store %arg12[%c1_150, %c0_151, %c0_152], %618 {strides = array<i32>} : memref<2x2x32xf32, #tpu.memory_space<vmem>>, vector<1x2x32xf32>,
      %c8_i32_153 = arith.constant 8 : i32
      %619 = arith.addi %0, %c8_i32_153 : i32
      %620 = arith.cmpi sge, %619, %1 : i32
      %621 = arith.extui %620 : i1 to i32
      %c0_i32_154 = arith.constant 0 : i32
      %622 = arith.cmpi ne, %621, %c0_i32_154 : i32
      scf.if %622 {
        %c0_155 = arith.constant 0 : index
        %c0_156 = arith.constant 0 : index
        %623 = vector.load %arg8[%c0_155, %c0_156] : memref<32x4xf32, #tpu.memory_space<vmem>>, vector<32x4xf32>
        %cst_157 = arith.constant dense<0.000000e+00> : vector<2x4xf32>
        %624 = tpu.matmul %605, %623, %cst_157 {dimension_numbers = #tpu.dot_dimension_numbers<[1], [0], [0], [1], [0, 0, 1, 1], [], []>} : vector<2x32xf32>, vector<32x4xf32>, vector<2x4xf32> -> vector<2x4xf32>
        %c0_158 = arith.constant 0 : index
        %c0_159 = arith.constant 0 : index
        %625 = vector.load %arg9[%c0_158, %c0_159] : memref<1x4xf32, #tpu.memory_space<vmem>>, vector<1x4xf32>
        %626 = vector.broadcast %625 : vector<1x4xf32> to vector<2x4xf32>
        %627 = arith.addf %624, %626 : vector<2x4xf32>
        %628 = arith.negf %627 : vector<2x4xf32>
        %629 = math.exp %628 : vector<2x4xf32>
        %cst_160 = arith.constant 1.000000e+00 : f32
        %630 = vector.broadcast %cst_160 : f32 to vector<2x4xf32>
        %631 = arith.addf %630, %629 : vector<2x4xf32>
        %632 = arith.divf %630, %631 : vector<2x4xf32>
        %c0_161 = arith.constant 0 : index
        %c0_162 = arith.constant 0 : index
        %633 = vector.load %arg10[%c0_161, %c0_162] : memref<2x4xf32, #tpu.memory_space<vmem>>, vector<2x4xf32>
        tpu.vector_store %arg10[%c0_161, %c0_162], %632 {strides = array<i32>} : memref<2x4xf32, #tpu.memory_space<vmem>>, vector<2x4xf32>,
      } else {
      }
    } else {
    }
    return
  }
  func.func @transform_0(%arg0: i32, %arg1: i32, %arg2: memref<1xi32, #tpu.memory_space<smem>>) -> (i32, i32, i32) {
    %c0_i32 = arith.constant 0 : i32
    %c0_i32_0 = arith.constant 0 : i32
    return %arg0, %arg1, %c0_i32 : i32, i32, i32
  }
  func.func @transform_1(%arg0: i32, %arg1: i32, %arg2: memref<1xi32, #tpu.memory_space<smem>>) -> (i32, i32) {
    %c0_i32 = arith.constant 0 : i32
    %c0_i32_0 = arith.constant 0 : i32
    return %arg0, %c0_i32 : i32, i32
  }
  func.func @transform_2(%arg0: i32, %arg1: i32, %arg2: memref<1xi32, #tpu.memory_space<smem>>) -> (i32, i32) {
    %c0_i32 = arith.constant 0 : i32
    %c0_i32_0 = arith.constant 0 : i32
    %c0_i32_1 = arith.constant 0 : i32
    return %c0_i32, %c0_i32_0 : i32, i32
  }
  func.func @transform_3(%arg0: i32, %arg1: i32, %arg2: memref<1xi32, #tpu.memory_space<smem>>) -> (i32, i32, i32) {
    %c0_i32 = arith.constant 0 : i32
    %c0_i32_0 = arith.constant 0 : i32
    %c0_i32_1 = arith.constant 0 : i32
    %c0_i32_2 = arith.constant 0 : i32
    return %c0_i32, %c0_i32_0, %c0_i32_1 : i32, i32, i32
  }
  func.func @transform_4(%arg0: i32, %arg1: i32, %arg2: memref<1xi32, #tpu.memory_space<smem>>) -> (i32, i32) {
    %c0_i32 = arith.constant 0 : i32
    %c0_i32_0 = arith.constant 0 : i32
    %c0_i32_1 = arith.constant 0 : i32
    return %c0_i32, %c0_i32_0 : i32, i32
  }
  func.func @transform_5(%arg0: i32, %arg1: i32, %arg2: memref<1xi32, #tpu.memory_space<smem>>) -> (i32, i32) {
    %c0_i32 = arith.constant 0 : i32
    %c0_i32_0 = arith.constant 0 : i32
    %c0_i32_1 = arith.constant 0 : i32
    return %c0_i32, %c0_i32_0 : i32, i32
  }
  func.func @transform_6(%arg0: i32, %arg1: i32, %arg2: memref<1xi32, #tpu.memory_space<smem>>) -> (i32, i32) {
    %c0_i32 = arith.constant 0 : i32
    %c0_i32_0 = arith.constant 0 : i32
    %c0_i32_1 = arith.constant 0 : i32
    return %c0_i32, %c0_i32_0 : i32, i32
  }
  func.func @transform_7(%arg0: i32, %arg1: i32, %arg2: memref<1xi32, #tpu.memory_space<smem>>) -> (i32, i32) {
    %c0_i32 = arith.constant 0 : i32
    %c0_i32_0 = arith.constant 0 : i32
    return %arg0, %c0_i32 : i32, i32
  }
}

</mosaic_0001>

<llo_original>
// kernel: tpu_custom_call.1
$region0: #{tpu_custom_call.1}
  #allocation0 [shape = 'u32[]', space=smem, size = 0x4, offset = 0x4, fixed_abs, tag = 'smem constant byte address 0x4 - core index']
  #allocation1 [shape = 'u32[72,128]{1,0:T(1,128)}', space=vmem, size = 0x9000, scoped, tag = 'internal scratch']
  #allocation2 [shape = 'f32[2,2,32]{2,1,0:T(2,128)}', space=vmem, size = 0x800, scoped, tag = 'scratch operand']
  #allocation3 [shape = 'f32[2,2,32]{2,1,0:T(2,128)}', space=vmem, size = 0x800, scoped, tag = 'scratch operand']
  #allocation4 [shape = 's32[1]{0}', space=sflag, size = 0x4, scoped, tag = 'scoped memory for tpu_custom_call.1']
  #allocation5 [shape = 's32[1]{0:T(128)S(6)}', space=smem, size = 0x200, scoped, tag = 'prefetched SMEM operand 0']
  %s0 = inlined_call_operand.<no memory space> [shape: s32[1], index: 0, kind: input, shape index: {}]
  %s1 = inlined_call_operand.vmem [shape: bf16[2,8,16], index: 1, kind: input, shape index: {}]
  %s2 = inlined_call_operand.vmem [shape: s32[2,1], index: 2, kind: input, shape index: {}]
  %s3 = inlined_call_operand.hbm [shape: bf16[48,512], index: 3, kind: input, shape index: {}]
  %s4 = inlined_call_operand.hbm [shape: bf16[1,64,512], index: 4, kind: input, shape index: {}]
  %s5 = inlined_call_operand.vmem [shape: f32[2,512], index: 5, kind: input, shape index: {}]
  %s6 = inlined_call_operand.vmem [shape: f32[32,4], index: 6, kind: input, shape index: {}]
  %s7 = inlined_call_operand.vmem [shape: f32[1,4], index: 7, kind: input, shape index: {}]
  %s8 = inlined_call_operand.hbm [shape: f32[2,4], index: 8, kind: output, shape index: {}]
  %s9 = sld [smem:[#allocation0]]
  $region58: #{tpu_custom_call.1} parent=0
    _
  %s11 = ssub.s32 1, %s9
  %s12 = scalar_select 0, %s11, %s9
  %13 = sst [smem:[#allocation5]] %s0
  $region1: #{tpu_custom_call.1} parent=0
    #allocation6 [shape = 'u8[49152]{0}', space=vmem, size = 0xc000, scoped, tag = 'input window, operand 3, single buffered']
    #allocation7 [shape = 's32[1]{0}', space=sflag, size = 0x4, scoped, tag = 'scoped memory for tpu_custom_call.1']
    #allocation8 [shape = 's32[1]{0}', space=sflag, size = 0x4, scoped, tag = 'scoped memory for tpu_custom_call.1']
    #allocation9 [shape = 'u8[65536]{0}', space=vmem, size = 0x10000, scoped, tag = 'input window, operand 4, single buffered']
    #allocation10 [shape = 's32[1]{0}', space=sflag, size = 0x4, scoped, tag = 'scoped memory for tpu_custom_call.1']
    #allocation11 [shape = 'u8[1024]{0}', space=vmem, size = 0x400, scoped, tag = 'output window, operand 0, single buffered']
    %14 = vsyncpa [#allocation7], 0
    %15 = vsyncpa [#allocation10], 0
    %16 = vsyncpa [#allocation8], 0
    // Predicated region
    $region2: #{tpu_custom_call.1} parent=1 // pred_check
      _
    $region3: #{tpu_custom_call.1} parent=1 // pred_check_branch
      %18 = sbr.rel (0) target = $region5
    $region4: #{tpu_custom_call.1} parent=1 // pred_region
      _
    $region5: #{tpu_custom_call.1} parent=1 // pred_fallthru
      _
    // Predicated region
    $region6: #{tpu_custom_call.1} parent=1 // pred_check
      _
    $region7: #{tpu_custom_call.1} parent=1 // pred_check_branch
      %20 = sbr.rel (0) target = $region9
    $region8: #{tpu_custom_call.1} parent=1 // pred_region
      _
    $region9: #{tpu_custom_call.1} parent=1 // pred_fallthru
      _
    // Predicated region
    $region10: #{tpu_custom_call.1} parent=1 // pred_check
      _
    $region11: #{tpu_custom_call.1} parent=1 // pred_check_branch
      %22 = sbr.rel (0) target = $region13
    $region12: #{tpu_custom_call.1} parent=1 // pred_region
      %24 = vsyncadd [#allocation7], 0
      %s25 = sshll.u32 %s3, 4
      %s26 = int_to_ptr.hbm [resolvable:$true] %s25
      %s27 = sshll.u32 [#allocation6], 4
      %s28 = int_to_ptr.vmem [resolvable:$true] %s27
      %33 = dma.hbm_to_vmem [thread:$0]  %s26, 1536, %s28, [#allocation7], 256, 256, 16
    $region13: #{tpu_custom_call.1} parent=1 // pred_fallthru
      _
    // Predicated region
    $region14: #{tpu_custom_call.1} parent=1 // pred_check
      _
    $region15: #{tpu_custom_call.1} parent=1 // pred_check_branch
      %35 = sbr.rel (0) target = $region17
    $region16: #{tpu_custom_call.1} parent=1 // pred_region
      %37 = vsyncadd [#allocation10], 0
      %s38 = sshll.u32 %s4, 4
      %s39 = int_to_ptr.hbm [resolvable:$true] %s38
      %s40 = sshll.u32 [#allocation9], 4
      %s41 = int_to_ptr.vmem [resolvable:$true] %s40
      %46 = dma.hbm_to_vmem [thread:$0]  %s39, 2048, %s41, [#allocation10], 256, 256, 16
    $region17: #{tpu_custom_call.1} parent=1 // pred_fallthru
      _
    // Predicated region
    $region18: #{tpu_custom_call.1} parent=1 // pred_check
      _
    $region19: #{tpu_custom_call.1} parent=1 // pred_check_branch
      %48 = sbr.rel (0) target = $region21
    $region20: #{tpu_custom_call.1} parent=1 // pred_region
      _
    $region21: #{tpu_custom_call.1} parent=1 // pred_fallthru
      _
    // Predicated region
    $region22: #{tpu_custom_call.1} parent=1 // pred_check
      _
    $region23: #{tpu_custom_call.1} parent=1 // pred_check_branch
      %50 = sbr.rel (0) target = $region25
    $region24: #{tpu_custom_call.1} parent=1 // pred_region
      _
    $region25: #{tpu_custom_call.1} parent=1 // pred_fallthru
      _
    // Predicated region
    $region26: #{tpu_custom_call.1} parent=1 // pred_check
      _
    $region27: #{tpu_custom_call.1} parent=1 // pred_check_branch
      %52 = sbr.rel (0) target = $region29
    $region28: #{tpu_custom_call.1} parent=1 // pred_region
      _
    $region29: #{tpu_custom_call.1} parent=1 // pred_fallthru
      _
    // Predicated region
    $region30: #{tpu_custom_call.1} parent=1 // pred_check
      _
    $region31: #{tpu_custom_call.1} parent=1 // pred_check_branch
      %54 = sbr.rel (0) target = $region33
    $region32: #{tpu_custom_call.1} parent=1 // pred_region
      %56 = dma.done [#allocation7], 1536
    $region33: #{tpu_custom_call.1} parent=1 // pred_fallthru
      _
    // Predicated region
    $region34: #{tpu_custom_call.1} parent=1 // pred_check
      _
    $region35: #{tpu_custom_call.1} parent=1 // pred_check_branch
      %58 = sbr.rel (0) target = $region37
    $region36: #{tpu_custom_call.1} parent=1 // pred_region
      %60 = dma.done [#allocation10], 2048
    $region37: #{tpu_custom_call.1} parent=1 // pred_fallthru
      _
    %s62 = smul.u32 0, 8
    %s63 = sld [smem:[#allocation5]]
    %p64 = scmp.eq.s32.totalorder 0, 0
    // Predicated region
    $region38: #{tpu_custom_call.1} parent=1 // pred_check
      %p65 = pneg %p64
    $region39: #{tpu_custom_call.1} parent=1 // pred_check_branch
      %67 = sbr.rel (%p65) target = $region41
    $region40: #{tpu_custom_call.1} parent=1 // pred_region
      %vm68 = vcmask 254976
      %69 = vst.msk [vmem:[#allocation2] sm:$0x3] %vm68, 0.0
      %70 = vst.msk [vmem:[#allocation2 + $0x2] sm:$0x3] %vm68, 0.0
      %71 = vst.msk [vmem:[#allocation3] sm:$0x3] %vm68, 0.0
      %72 = vst.msk [vmem:[#allocation3 + $0x2] sm:$0x3] %vm68, 0.0
    $region41: #{tpu_custom_call.1} parent=1 // pred_fallthru
      _
    %p73 = scmp.lt.s32.totalorder %s62, %s63
    // Predicated region
    $region42: #{tpu_custom_call.1} parent=1 // pred_check
      %p74 = pneg %p73
    $region43: #{tpu_custom_call.1} parent=1 // pred_check_branch
      %76 = sbr.rel (%p74) target = $region45
    $region44: #{tpu_custom_call.1} parent=1 // pred_region
      %v77 = vld [vmem:[%s2] sm:$0x3]
      %v78 = vld [vmem:[%s5] ss:$2 sm:$0xf]
      %v80 = vperm.slane %v78, 0
      %v81 = vperm.slane %v78, 1
      %v82 = vperm.slane %v78, 2
      %v83 = vperm.slane %v78, 3
      %s88 = scalar_lea.vmem %s5, 1
      %v89 = vld [vmem:[%s88] ss:$2 sm:$0xf]
      %v91 = vperm.slane %v89, 0
      %v92 = vperm.slane %v89, 1
      %v93 = vperm.slane %v89, 2
      %v94 = vperm.slane %v89, 3
      %v99 = vld [vmem:[#allocation2] sm:$0x3]
      %s100 = scalar_lea.vmem [#allocation2], 2
      %v101 = vld [vmem:[%s100] sm:$0x3]
      %v102 = vld [vmem:[#allocation3] sm:$0x3]
      %s103 = scalar_lea.vmem [#allocation3], 2
      %v104 = vld [vmem:[%s103] sm:$0x3]
      %v105 = vstv %s62
      %vm106 = vcmp.lt.s32.totalorder %v105, %v77
      %v107 = vsel %vm106, 1, 0
      %108 = vset.pattern.permute.xlu0 0
      %109 = vperm.xlu0 %108, %v107
      %v110 = vpop.permute.xlu0 %109
      %vm111 = vcmp.eq.s32.totalorder %v110, 1
      %v112 = vld [vmem:[%s1] sm:$0x1]
      %v113 = vld [vmem:[%s1 + $0x4] sm:$0x1]
      %v114 = vpack.c.bf16 %v99, %v99
      %v117 = vunpack.c.l.b16 %v112
      %v118 = vunpack.c.l.b16 %v113
      %v119 = vpack.c.b16 %v117, %v117
      %v120 = vpack.c.b16 %v118, %v118
      %v121 = vunpack.c.l.b16 %v119
      %v122 = vunpack.c.l.b16 %v120
      %v123 = vrot.slane %v122, 7
      %vm124 = vcmask 1041409
      %v125 = vsel %vm124, %v123, %v121
      %v126 = vpack.c.b16 %v125, %v125
      %v128 = vunpack.c.l.b16 %v114
      %v129 = vpack.c.b16 %v128, %v128
      %130 = vrot.lane.b32.xlu0 %v129, 16
      %v131 = vpop.permute.xlu0 %130
      %vm132 = vcmask 130048
      %v135 = vsel %vm132, %v126, %v131
      %v136 = vld [vmem:[#allocation6] sm:$0xff]
      %v137 = vld [vmem:[#allocation6 + $0x8] sm:$0xff]
      %v138 = vld [vmem:[#allocation6 + $0x10] sm:$0xff]
      %v139 = vld [vmem:[#allocation6 + $0x18] sm:$0xff]
      %v140 = vld [vmem:[#allocation6 + $0x20] sm:$0xff]
      %v141 = vld [vmem:[#allocation6 + $0x28] sm:$0xff]
      %v142 = vld [vmem:[#allocation6 + $0x30] sm:$0xff]
      %v143 = vld [vmem:[#allocation6 + $0x38] sm:$0xff]
      %v144 = vld [vmem:[#allocation6 + $0x40] sm:$0xff]
      %v145 = vld [vmem:[#allocation6 + $0x48] sm:$0xff]
      %v146 = vld [vmem:[#allocation6 + $0x50] sm:$0xff]
      %v147 = vld [vmem:[#allocation6 + $0x58] sm:$0xff]
      %v160 = vunpack.c.l.b16 %v136
      %v161 = vunpack.c.h.b16 %v136
      %v162 = vunpack.c.l.b16 %v137
      %v163 = vunpack.c.h.b16 %v137
      %v164 = vunpack.c.l.b16 %v138
      %v165 = vunpack.c.h.b16 %v138
      %v166 = vunpack.c.l.b16 %v139
      %v167 = vunpack.c.h.b16 %v139
      %v168 = vunpack.c.l.b16 %v140
      %v169 = vunpack.c.h.b16 %v140
      %v170 = vunpack.c.l.b16 %v141
      %v171 = vunpack.c.h.b16 %v141
      %v172 = vunpack.c.l.b16 %v142
      %v173 = vunpack.c.h.b16 %v142
      %v174 = vunpack.c.l.b16 %v143
      %v175 = vunpack.c.h.b16 %v143
      %v176 = vunpack.c.l.b16 %v144
      %v177 = vunpack.c.h.b16 %v144
      %v178 = vunpack.c.l.b16 %v145
      %v179 = vunpack.c.h.b16 %v145
      %v180 = vunpack.c.l.b16 %v146
      %v181 = vunpack.c.h.b16 %v146
      %v182 = vunpack.c.l.b16 %v147
      %v183 = vunpack.c.h.b16 %v147
      %v184 = vpack.c.b16 %v164, %v160
      %v185 = vpack.c.b16 %v165, %v161
      %v186 = vpack.c.b16 %v166, %v162
      %v187 = vpack.c.b16 %v167, %v163
      %v188 = vpack.c.b16 %v172, %v168
      %v189 = vpack.c.b16 %v173, %v169
      %v190 = vpack.c.b16 %v174, %v170
      %v191 = vpack.c.b16 %v175, %v171
      %v192 = vpack.c.b16 %v180, %v176
      %v193 = vpack.c.b16 %v181, %v177
      %v194 = vpack.c.b16 %v182, %v178
      %v195 = vpack.c.b16 %v183, %v179
      %vm208 = vcmask 392192
      %v209 = vsel %vm208, %v135, 0
      %211 = vmatpush.bf16.msra.mxu0 0
      %212 = vmatpush.bf16.msra.mxu0 0
      %213 = vmatpush.bf16.msra.mxu0 0
      %214 = vmatpush.bf16.msra.mxu0 0
      %215 = vmatpush.bf16.msra.mxu0 0
      %216 = vmatpush.bf16.msra.mxu0 %v192
      %217 = vmatpush.bf16.msra.mxu0 %v188
      %218 = vmatpush.bf16.msra.mxu0 %v184
      %219 = vmatmul.bf16.gmra.mxu0 %v209
      %v220 = vpop.f32.mrf.mxu0
      %v221 = vadd.f32 %v80, %v220
      %v222 = vpop.f32.mrf.mxu0
      %223 = vdwg.mxu0
      %224 = vmatpush.bf16.msra.mxu0 0
      %225 = vmatpush.bf16.msra.mxu0 0
      %226 = vmatpush.bf16.msra.mxu0 0
      %227 = vmatpush.bf16.msra.mxu0 0
      %228 = vmatpush.bf16.msra.mxu0 0
      %229 = vmatpush.bf16.msra.mxu0 %v193
      %230 = vmatpush.bf16.msra.mxu0 %v189
      %231 = vmatpush.bf16.msra.mxu0 %v185
      %232 = vmatmul.bf16.gmra.mxu0 %v209
      %v233 = vpop.f32.mrf.mxu0
      %v234 = vadd.f32 %v81, %v233
      %v235 = vpop.f32.mrf.mxu0
      %236 = vdwg.mxu0
      %237 = vmatpush.bf16.msra.mxu0 0
      %238 = vmatpush.bf16.msra.mxu0 0
      %239 = vmatpush.bf16.msra.mxu0 0
      %240 = vmatpush.bf16.msra.mxu0 0
      %241 = vmatpush.bf16.msra.mxu0 0
      %242 = vmatpush.bf16.msra.mxu0 %v194
      %243 = vmatpush.bf16.msra.mxu0 %v190
      %244 = vmatpush.bf16.msra.mxu0 %v186
      %245 = vmatmul.bf16.gmra.mxu0 %v209
      %v246 = vpop.f32.mrf.mxu0
      %v247 = vadd.f32 %v82, %v246
      %v248 = vpop.f32.mrf.mxu0
      %249 = vdwg.mxu0
      %250 = vmatpush.bf16.msra.mxu0 0
      %251 = vmatpush.bf16.msra.mxu0 0
      %252 = vmatpush.bf16.msra.mxu0 0
      %253 = vmatpush.bf16.msra.mxu0 0
      %254 = vmatpush.bf16.msra.mxu0 0
      %255 = vmatpush.bf16.msra.mxu0 %v195
      %256 = vmatpush.bf16.msra.mxu0 %v191
      %257 = vmatpush.bf16.msra.mxu0 %v187
      %258 = vmatmul.bf16.gmra.mxu0 %v209
      %v259 = vpop.f32.mrf.mxu0
      %v260 = vadd.f32 %v83, %v259
      %v261 = vpop.f32.mrf.mxu0
      %262 = vdwg.mxu0
      %v263 = vxor.u32 %v221, 2147483648
      %v264 = vmul.f32 %v263, 1.442695
      %v265 = vpow.pop %v264
      %v266 = vadd.f32 %v265, 1.0
      %v267 = vrcp.pop %v266
      %v268 = vmul.f32 %v266, %v267
      %v269 = vsub.f32 1.0, %v268
      %v270 = vmul.f32 %v267, %v269
      %v271 = vadd.f32 %v267, %v270
      %vm272 = vweird.f32 %v266
      %vm273 = vweird.f32 %v267
      %vm274 = vmor %vm272, %vm273
      %v275 = vsel %vm274, %v267, %v271
      %v276 = vand.u32 2147483647, %v266
      %vm277 = vcmp.eq.f32.partialorder %v276, 8.507059e+37
      %v278 = vand.u32 %v266, 2147483648
      %v279 = vor.u32 1.1754944e-38, %v278
      %v280 = vsel %vm277, %v279, %v275
      %v281 = vmul.f32 1.0, %v280
      %v282 = vxor.u32 %v234, 2147483648
      %v283 = vmul.f32 %v282, 1.442695
      %v284 = vpow.pop %v283
      %v285 = vadd.f32 %v284, 1.0
      %v286 = vrcp.pop %v285
      %v287 = vmul.f32 %v285, %v286
      %v288 = vsub.f32 1.0, %v287
      %v289 = vmul.f32 %v286, %v288
      %v290 = vadd.f32 %v286, %v289
      %vm291 = vweird.f32 %v285
      %vm292 = vweird.f32 %v286
      %vm293 = vmor %vm291, %vm292
      %v294 = vsel %vm293, %v286, %v290
      %v295 = vand.u32 2147483647, %v285
      %vm296 = vcmp.eq.f32.partialorder %v295, 8.507059e+37
      %v297 = vand.u32 %v285, 2147483648
      %v298 = vor.u32 1.1754944e-38, %v297
      %v299 = vsel %vm296, %v298, %v294
      %v300 = vmul.f32 1.0, %v299
      %v301 = vtanh.pop %v247
      %v302 = vxor.u32 %v260, 2147483648
      %v303 = vmul.f32 %v302, 1.442695
      %v304 = vpow.pop %v303
      %v305 = vadd.f32 %v304, 1.0
      %v306 = vrcp.pop %v305
      %v307 = vmul.f32 %v305, %v306
      %v308 = vsub.f32 1.0, %v307
      %v309 = vmul.f32 %v306, %v308
      %v310 = vadd.f32 %v306, %v309
      %vm311 = vweird.f32 %v305
      %vm312 = vweird.f32 %v306
      %vm313 = vmor %vm311, %vm312
      %v314 = vsel %vm313, %v306, %v310
      %v315 = vand.u32 2147483647, %v305
      %vm316 = vcmp.eq.f32.partialorder %v315, 8.507059e+37
      %v317 = vand.u32 %v305, 2147483648
      %v318 = vor.u32 1.1754944e-38, %v317
      %v319 = vsel %vm316, %v318, %v314
      %v320 = vmul.f32 1.0, %v319
      %v321 = vmul.f32 %v300, %v102
      %v322 = vmul.f32 %v281, %v301
      %v323 = vadd.f32 %v321, %v322
      %v324 = vtanh.pop %v323
      %v325 = vmul.f32 %v320, %v324
      %v326 = vsel %vm111, %v325, %v99
      %v327 = vsel %vm111, %v323, %v102
      %v328 = vpack.c.bf16 %v326, %v326
      %v329 = vpack.c.bf16 %v101, %v101
      %v331 = vunpack.c.l.b16 %v329
      %v332 = vpack.c.b16 %v331, %v331
      %333 = vrot.lane.b32.xlu0 %v332, 32
      %v334 = vpop.permute.xlu0 %333
      %vm335 = vcmask 261120
      %v338 = vsel %vm335, %v328, %v334
      %v339 = vld [vmem:[#allocation9] sm:$0xff]
      %v340 = vld [vmem:[#allocation9 + $0x8] sm:$0xff]
      %v341 = vld [vmem:[#allocation9 + $0x10] sm:$0xff]
      %v342 = vld [vmem:[#allocation9 + $0x18] sm:$0xff]
      %v343 = vld [vmem:[#allocation9 + $0x20] sm:$0xff]
      %v344 = vld [vmem:[#allocation9 + $0x28] sm:$0xff]
      %v345 = vld [vmem:[#allocation9 + $0x30] sm:$0xff]
      %v346 = vld [vmem:[#allocation9 + $0x38] sm:$0xff]
      %v347 = vld [vmem:[#allocation9 + $0x40] sm:$0xff]
      %v348 = vld [vmem:[#allocation9 + $0x48] sm:$0xff]
      %v349 = vld [vmem:[#allocation9 + $0x50] sm:$0xff]
      %v350 = vld [vmem:[#allocation9 + $0x58] sm:$0xff]
      %v351 = vld [vmem:[#allocation9 + $0x60] sm:$0xff]
      %v352 = vld [vmem:[#allocation9 + $0x68] sm:$0xff]
      %v353 = vld [vmem:[#allocation9 + $0x70] sm:$0xff]
      %v354 = vld [vmem:[#allocation9 + $0x78] sm:$0xff]
      %v371 = vunpack.c.l.b16 %v339
      %v372 = vunpack.c.h.b16 %v339
      %v373 = vunpack.c.l.b16 %v340
      %v374 = vunpack.c.h.b16 %v340
      %v375 = vunpack.c.l.b16 %v341
      %v376 = vunpack.c.h.b16 %v341
      %v377 = vunpack.c.l.b16 %v342
      %v378 = vunpack.c.h.b16 %v342
      %v379 = vunpack.c.l.b16 %v343
      %v380 = vunpack.c.h.b16 %v343
      %v381 = vunpack.c.l.b16 %v344
      %v382 = vunpack.c.h.b16 %v344
      %v383 = vunpack.c.l.b16 %v345
      %v384 = vunpack.c.h.b16 %v345
      %v385 = vunpack.c.l.b16 %v346
      %v386 = vunpack.c.h.b16 %v346
      %v387 = vunpack.c.l.b16 %v347
      %v388 = vunpack.c.h.b16 %v347
      %v389 = vunpack.c.l.b16 %v348
      %v390 = vunpack.c.h.b16 %v348
      %v391 = vunpack.c.l.b16 %v349
      %v392 = vunpack.c.h.b16 %v349
      %v393 = vunpack.c.l.b16 %v350
      %v394 = vunpack.c.h.b16 %v350
      %v395 = vunpack.c.l.b16 %v351
      %v396 = vunpack.c.h.b16 %v351
      %v397 = vunpack.c.l.b16 %v352
      %v398 = vunpack.c.h.b16 %v352
      %v399 = vunpack.c.l.b16 %v353
      %v400 = vunpack.c.h.b16 %v353
      %v401 = vunpack.c.l.b16 %v354
      %v402 = vunpack.c.h.b16 %v354
      %v403 = vpack.c.b16 %v375, %v371
      %v404 = vpack.c.b16 %v376, %v372
      %v405 = vpack.c.b16 %v377, %v373
      %v406 = vpack.c.b16 %v378, %v374
      %v407 = vpack.c.b16 %v383, %v379
      %v408 = vpack.c.b16 %v384, %v380
      %v409 = vpack.c.b16 %v385, %v381
      %v410 = vpack.c.b16 %v386, %v382
      %v411 = vpack.c.b16 %v391, %v387
      %v412 = vpack.c.b16 %v392, %v388
      %v413 = vpack.c.b16 %v393, %v389
      %v414 = vpack.c.b16 %v394, %v390
      %v415 = vpack.c.b16 %v399, %v395
      %v416 = vpack.c.b16 %v400, %v396
      %v417 = vpack.c.b16 %v401, %v397
      %v418 = vpack.c.b16 %v402, %v398
      %vm435 = vcmask 523264
      %v436 = vsel %vm435, %v338, 0
      %438 = vmatpush.bf16.msra.mxu0 0
      %439 = vmatpush.bf16.msra.mxu0 0
      %440 = vmatpush.bf16.msra.mxu0 0
      %441 = vmatpush.bf16.msra.mxu0 0
      %442 = vmatpush.bf16.msra.mxu0 %v415
      %443 = vmatpush.bf16.msra.mxu0 %v411
      %444 = vmatpush.bf16.msra.mxu0 %v407
      %445 = vmatpush.bf16.msra.mxu0 %v403
      %446 = vmatmul.bf16.gmra.mxu0 %v436
      %v447 = vpop.f32.mrf.mxu0
      %v448 = vadd.f32 %v91, %v447
      %v449 = vpop.f32.mrf.mxu0
      %450 = vdwg.mxu0
      %451 = vmatpush.bf16.msra.mxu0 0
      %452 = vmatpush.bf16.msra.mxu0 0
      %453 = vmatpush.bf16.msra.mxu0 0
      %454 = vmatpush.bf16.msra.mxu0 0
      %455 = vmatpush.bf16.msra.mxu0 %v416
      %456 = vmatpush.bf16.msra.mxu0 %v412
      %457 = vmatpush.bf16.msra.mxu0 %v408
      %458 = vmatpush.bf16.msra.mxu0 %v404
      %459 = vmatmul.bf16.gmra.mxu0 %v436
      %v460 = vpop.f32.mrf.mxu0
      %v461 = vadd.f32 %v92, %v460
      %v462 = vpop.f32.mrf.mxu0
      %463 = vdwg.mxu0
      %464 = vmatpush.bf16.msra.mxu0 0
      %465 = vmatpush.bf16.msra.mxu0 0
      %466 = vmatpush.bf16.msra.mxu0 0
      %467 = vmatpush.bf16.msra.mxu0 0
      %468 = vmatpush.bf16.msra.mxu0 %v417
      %469 = vmatpush.bf16.msra.mxu0 %v413
      %470 = vmatpush.bf16.msra.mxu0 %v409
      %471 = vmatpush.bf16.msra.mxu0 %v405
      %472 = vmatmul.bf16.gmra.mxu0 %v436
      %v473 = vpop.f32.mrf.mxu0
      %v474 = vadd.f32 %v93, %v473
      %v475 = vpop.f32.mrf.mxu0
      %476 = vdwg.mxu0
      %477 = vmatpush.bf16.msra.mxu0 0
      %478 = vmatpush.bf16.msra.mxu0 0
      %479 = vmatpush.bf16.msra.mxu0 0
      %480 = vmatpush.bf16.msra.mxu0 0
      %481 = vmatpush.bf16.msra.mxu0 %v418
      %482 = vmatpush.bf16.msra.mxu0 %v414
      %483 = vmatpush.bf16.msra.mxu0 %v410
      %484 = vmatpush.bf16.msra.mxu0 %v406
      %485 = vmatmul.bf16.gmra.mxu0 %v436
      %v486 = vpop.f32.mrf.mxu0
      %v487 = vadd.f32 %v94, %v486
      %v488 = vpop.f32.mrf.mxu0
      %489 = vdwg.mxu0
      %v490 = vxor.u32 %v448, 2147483648
      %v491 = vmul.f32 %v490, 1.442695
      %v492 = vpow.pop %v491
      %v493 = vadd.f32 %v492, 1.0
      %v494 = vrcp.pop %v493
      %v495 = vmul.f32 %v493, %v494
      %v496 = vsub.f32 1.0, %v495
      %v497 = vmul.f32 %v494, %v496
      %v498 = vadd.f32 %v494, %v497
      %vm499 = vweird.f32 %v493
      %vm500 = vweird.f32 %v494
      %vm501 = vmor %vm499, %vm500
      %v502 = vsel %vm501, %v494, %v498
      %v503 = vand.u32 2147483647, %v493
      %vm504 = vcmp.eq.f32.partialorder %v503, 8.507059e+37
      %v505 = vand.u32 %v493, 2147483648
      %v506 = vor.u32 1.1754944e-38, %v505
      %v507 = vsel %vm504, %v506, %v502
      %v508 = vmul.f32 1.0, %v507
      %v509 = vxor.u32 %v461, 2147483648
      %v510 = vmul.f32 %v509, 1.442695
      %v511 = vpow.pop %v510
      %v512 = vadd.f32 %v511, 1.0
      %v513 = vrcp.pop %v512
      %v514 = vmul.f32 %v512, %v513
      %v515 = vsub.f32 1.0, %v514
      %v516 = vmul.f32 %v513, %v515
      %v517 = vadd.f32 %v513, %v516
      %vm518 = vweird.f32 %v512
      %vm519 = vweird.f32 %v513
      %vm520 = vmor %vm518, %vm519
      %v521 = vsel %vm520, %v513, %v517
      %v522 = vand.u32 2147483647, %v512
      %vm523 = vcmp.eq.f32.partialorder %v522, 8.507059e+37
      %v524 = vand.u32 %v512, 2147483648
      %v525 = vor.u32 1.1754944e-38, %v524
      %v526 = vsel %vm523, %v525, %v521
      %v527 = vmul.f32 1.0, %v526
      %v528 = vtanh.pop %v474
      %v529 = vxor.u32 %v487, 2147483648
      %v530 = vmul.f32 %v529, 1.442695
      %v531 = vpow.pop %v530
      %v532 = vadd.f32 %v531, 1.0
      %v533 = vrcp.pop %v532
      %v534 = vmul.f32 %v532, %v533
      %v535 = vsub.f32 1.0, %v534
      %v536 = vmul.f32 %v533, %v535
      %v537 = vadd.f32 %v533, %v536
      %vm538 = vweird.f32 %v532
      %vm539 = vweird.f32 %v533
      %vm540 = vmor %vm538, %vm539
      %v541 = vsel %vm540, %v533, %v537
      %v542 = vand.u32 2147483647, %v532
      %vm543 = vcmp.eq.f32.partialorder %v542, 8.507059e+37
      %v544 = vand.u32 %v532, 2147483648
      %v545 = vor.u32 1.1754944e-38, %v544
      %v546 = vsel %vm543, %v545, %v541
      %v547 = vmul.f32 1.0, %v546
      %v548 = vmul.f32 %v527, %v104
      %v549 = vmul.f32 %v508, %v528
      %v550 = vadd.f32 %v548, %v549
      %v551 = vtanh.pop %v550
      %v552 = vmul.f32 %v547, %v551
      %v553 = vsel %vm111, %v552, %v101
      %v554 = vsel %vm111, %v550, %v104
      %s555 = sadd.s32 %s62, 1
      %v556 = vstv %s555
      %vm557 = vcmp.lt.s32.totalorder %v556, %v77
      %v558 = vsel %vm557, 1, 0
      %559 = vset.pattern.permute.xlu0 0
      %560 = vperm.xlu0 %559, %v558
      %v561 = vpop.permute.xlu0 %560
      %vm562 = vcmp.eq.s32.totalorder %v561, 1
      %vm563 = vcmask 1042434
      %v564 = vsel %vm563, %v123, %v121
      %v565 = vpack.c.b16 %v564, %v564
      %v567 = vunpack.c.l.b16 %v328
      %v568 = vpack.c.b16 %v567, %v567
      %v570 = vshrl.u32 %v568, 16
      %v572 = vrot.slane %v570, 7
      %v573 = vshll.u32 %v568, 16
      %v575 = vor.u32 %v572, %v573
      %576 = vrot.lane.b32.xlu0 %v575, 16
      %v577 = vpop.permute.xlu0 %576
      %v580 = vsel %vm132, %v565, %v577
      %v581 = vshrl.u32 %v580, 16
      %v583 = vshll.u32 %v580, 16
      %v585 = vrot.slane %v583, 1
      %v586 = vor.u32 %v581, %v585
      %v588 = vsel %vm208, %v586, 0
      %590 = vmatpush.bf16.msra.mxu0 0
      %591 = vmatpush.bf16.msra.mxu0 0
      %592 = vmatpush.bf16.msra.mxu0 0
      %593 = vmatpush.bf16.msra.mxu0 0
      %594 = vmatpush.bf16.msra.mxu0 0
      %595 = vmatpush.bf16.msra.mxu0 %v192
      %596 = vmatpush.bf16.msra.mxu0 %v188
      %597 = vmatpush.bf16.msra.mxu0 %v184
      %598 = vmatmul.bf16.gmra.mxu0 %v588
      %v599 = vpop.f32.mrf.mxu0
      %v600 = vadd.f32 %v80, %v599
      %v601 = vpop.f32.mrf.mxu0
      %602 = vdwg.mxu0
      %603 = vmatpush.bf16.msra.mxu0 0
      %604 = vmatpush.bf16.msra.mxu0 0
      %605 = vmatpush.bf16.msra.mxu0 0
      %606 = vmatpush.bf16.msra.mxu0 0
      %607 = vmatpush.bf16.msra.mxu0 0
      %608 = vmatpush.bf16.msra.mxu0 %v193
      %609 = vmatpush.bf16.msra.mxu0 %v189
      %610 = vmatpush.bf16.msra.mxu0 %v185
      %611 = vmatmul.bf16.gmra.mxu0 %v588
      %v612 = vpop.f32.mrf.mxu0
      %v613 = vadd.f32 %v81, %v612
      %v614 = vpop.f32.mrf.mxu0
      %615 = vdwg.mxu0
      %616 = vmatpush.bf16.msra.mxu0 0
      %617 = vmatpush.bf16.msra.mxu0 0
      %618 = vmatpush.bf16.msra.mxu0 0
      %619 = vmatpush.bf16.msra.mxu0 0
      %620 = vmatpush.bf16.msra.mxu0 0
      %621 = vmatpush.bf16.msra.mxu0 %v194
      %622 = vmatpush.bf16.msra.mxu0 %v190
      %623 = vmatpush.bf16.msra.mxu0 %v186
      %624 = vmatmul.bf16.gmra.mxu0 %v588
      %v625 = vpop.f32.mrf.mxu0
      %v626 = vadd.f32 %v82, %v625
      %v627 = vpop.f32.mrf.mxu0
      %628 = vdwg.mxu0
      %629 = vmatpush.bf16.msra.mxu0 0
      %630 = vmatpush.bf16.msra.mxu0 0
      %631 = vmatpush.bf16.msra.mxu0 0
      %632 = vmatpush.bf16.msra.mxu0 0
      %633 = vmatpush.bf16.msra.mxu0 0
      %634 = vmatpush.bf16.msra.mxu0 %v195
      %635 = vmatpush.bf16.msra.mxu0 %v191
      %636 = vmatpush.bf16.msra.mxu0 %v187
      %637 = vmatmul.bf16.gmra.mxu0 %v588
      %v638 = vpop.f32.mrf.mxu0
      %v639 = vadd.f32 %v83, %v638
      %v640 = vpop.f32.mrf.mxu0
      %641 = vdwg.mxu0
      %v642 = vxor.u32 %v600, 2147483648
      %v643 = vmul.f32 %v642, 1.442695
      %v644 = vpow.pop %v643
      %v645 = vadd.f32 %v644, 1.0
      %v646 = vrcp.pop %v645
      %v647 = vmul.f32 %v645, %v646
      %v648 = vsub.f32 1.0, %v647
      %v649 = vmul.f32 %v646, %v648
      %v650 = vadd.f32 %v646, %v649
      %vm651 = vweird.f32 %v645
      %vm652 = vweird.f32 %v646
      %vm653 = vmor %vm651, %vm652
      %v654 = vsel %vm653, %v646, %v650
      %v655 = vand.u32 2147483647, %v645
      %vm656 = vcmp.eq.f32.partialorder %v655, 8.507059e+37
      %v657 = vand.u32 %v645, 2147483648
      %v658 = vor.u32 1.1754944e-38, %v657
      %v659 = vsel %vm656, %v658, %v654
      %v660 = vmul.f32 1.0, %v659
      %v661 = vxor.u32 %v613, 2147483648
      %v662 = vmul.f32 %v661, 1.442695
      %v663 = vpow.pop %v662
      %v664 = vadd.f32 %v663, 1.0
      %v665 = vrcp.pop %v664
      %v666 = vmul.f32 %v664, %v665
      %v667 = vsub.f32 1.0, %v666
      %v668 = vmul.f32 %v665, %v667
      %v669 = vadd.f32 %v665, %v668
      %vm670 = vweird.f32 %v664
      %vm671 = vweird.f32 %v665
      %vm672 = vmor %vm670, %vm671
      %v673 = vsel %vm672, %v665, %v669
      %v674 = vand.u32 2147483647, %v664
      %vm675 = vcmp.eq.f32.partialorder %v674, 8.507059e+37
      %v676 = vand.u32 %v664, 2147483648
      %v677 = vor.u32 1.1754944e-38, %v676
      %v678 = vsel %vm675, %v677, %v673
      %v679 = vmul.f32 1.0, %v678
      %v680 = vtanh.pop %v626
      %v681 = vxor.u32 %v639, 2147483648
      %v682 = vmul.f32 %v681, 1.442695
      %v683 = vpow.pop %v682
      %v684 = vadd.f32 %v683, 1.0
      %v685 = vrcp.pop %v684
      %v686 = vmul.f32 %v684, %v685
      %v687 = vsub.f32 1.0, %v686
      %v688 = vmul.f32 %v685, %v687
      %v689 = vadd.f32 %v685, %v688
      %vm690 = vweird.f32 %v684
      %vm691 = vweird.f32 %v685
      %vm692 = vmor %vm690, %vm691
      %v693 = vsel %vm692, %v685, %v689
      %v694 = vand.u32 2147483647, %v684
      %vm695 = vcmp.eq.f32.partialorder %v694, 8.507059e+37
      %v696 = vand.u32 %v684, 2147483648
      %v697 = vor.u32 1.1754944e-38, %v696
      %v698 = vsel %vm695, %v697, %v693
      %v699 = vmul.f32 1.0, %v698
      %v700 = vmul.f32 %v679, %v327
      %v701 = vmul.f32 %v660, %v680
      %v702 = vadd.f32 %v700, %v701
      %v703 = vtanh.pop %v702
      %v704 = vmul.f32 %v699, %v703
      %v705 = vsel %vm562, %v704, %v326
      %v706 = vsel %vm562, %v702, %v327
      %v707 = vpack.c.bf16 %v705, %v705
      %v708 = vpack.c.bf16 %v553, %v553
      %v710 = vunpack.c.l.b16 %v708
      %v711 = vpack.c.b16 %v710, %v710
      %712 = vrot.lane.b32.xlu0 %v711, 32
      %v713 = vpop.permute.xlu0 %712
      %v716 = vsel %vm335, %v707, %v713
      %v717 = vsel %vm435, %v716, 0
      %719 = vmatpush.bf16.msra.mxu0 0
      %720 = vmatpush.bf16.msra.mxu0 0
      %721 = vmatpush.bf16.msra.mxu0 0
      %722 = vmatpush.bf16.msra.mxu0 0
      %723 = vmatpush.bf16.msra.mxu0 %v415
      %724 = vmatpush.bf16.msra.mxu0 %v411
      %725 = vmatpush.bf16.msra.mxu0 %v407
      %726 = vmatpush.bf16.msra.mxu0 %v403
      %727 = vmatmul.bf16.gmra.mxu0 %v717
      %v728 = vpop.f32.mrf.mxu0
      %v729 = vadd.f32 %v91, %v728
      %v730 = vpop.f32.mrf.mxu0
      %731 = vdwg.mxu0
      %732 = vmatpush.bf16.msra.mxu0 0
      %733 = vmatpush.bf16.msra.mxu0 0
      %734 = vmatpush.bf16.msra.mxu0 0
      %735 = vmatpush.bf16.msra.mxu0 0
      %736 = vmatpush.bf16.msra.mxu0 %v416
      %737 = vmatpush.bf16.msra.mxu0 %v412
      %738 = vmatpush.bf16.msra.mxu0 %v408
      %739 = vmatpush.bf16.msra.mxu0 %v404
      %740 = vmatmul.bf16.gmra.mxu0 %v717
      %v741 = vpop.f32.mrf.mxu0
      %v742 = vadd.f32 %v92, %v741
      %v743 = vpop.f32.mrf.mxu0
      %744 = vdwg.mxu0
      %745 = vmatpush.bf16.msra.mxu0 0
      %746 = vmatpush.bf16.msra.mxu0 0
      %747 = vmatpush.bf16.msra.mxu0 0
      %748 = vmatpush.bf16.msra.mxu0 0
      %749 = vmatpush.bf16.msra.mxu0 %v417
      %750 = vmatpush.bf16.msra.mxu0 %v413
      %751 = vmatpush.bf16.msra.mxu0 %v409
      %752 = vmatpush.bf16.msra.mxu0 %v405
      %753 = vmatmul.bf16.gmra.mxu0 %v717
      %v754 = vpop.f32.mrf.mxu0
      %v755 = vadd.f32 %v93, %v754
      %v756 = vpop.f32.mrf.mxu0
      %757 = vdwg.mxu0
      %758 = vmatpush.bf16.msra.mxu0 0
      %759 = vmatpush.bf16.msra.mxu0 0
      %760 = vmatpush.bf16.msra.mxu0 0
      %761 = vmatpush.bf16.msra.mxu0 0
      %762 = vmatpush.bf16.msra.mxu0 %v418
      %763 = vmatpush.bf16.msra.mxu0 %v414
      %764 = vmatpush.bf16.msra.mxu0 %v410
      %765 = vmatpush.bf16.msra.mxu0 %v406
      %766 = vmatmul.bf16.gmra.mxu0 %v717
      %v767 = vpop.f32.mrf.mxu0
      %v768 = vadd.f32 %v94, %v767
      %v769 = vpop.f32.mrf.mxu0
      %770 = vdwg.mxu0
      %v771 = vxor.u32 %v729, 2147483648
      %v772 = vmul.f32 %v771, 1.442695
      %v773 = vpow.pop %v772
      %v774 = vadd.f32 %v773, 1.0
      %v775 = vrcp.pop %v774
      %v776 = vmul.f32 %v774, %v775
      %v777 = vsub.f32 1.0, %v776
      %v778 = vmul.f32 %v775, %v777
      %v779 = vadd.f32 %v775, %v778
      %vm780 = vweird.f32 %v774
      %vm781 = vweird.f32 %v775
      %vm782 = vmor %vm780, %vm781
      %v783 = vsel %vm782, %v775, %v779
      %v784 = vand.u32 2147483647, %v774
      %vm785 = vcmp.eq.f32.partialorder %v784, 8.507059e+37
      %v786 = vand.u32 %v774, 2147483648
      %v787 = vor.u32 1.1754944e-38, %v786
      %v788 = vsel %vm785, %v787, %v783
      %v789 = vmul.f32 1.0, %v788
      %v790 = vxor.u32 %v742, 2147483648
      %v791 = vmul.f32 %v790, 1.442695
      %v792 = vpow.pop %v791
      %v793 = vadd.f32 %v792, 1.0
      %v794 = vrcp.pop %v793
      %v795 = vmul.f32 %v793, %v794
      %v796 = vsub.f32 1.0, %v795
      %v797 = vmul.f32 %v794, %v796
      %v798 = vadd.f32 %v794, %v797
      %vm799 = vweird.f32 %v793
      %vm800 = vweird.f32 %v794
      %vm801 = vmor %vm799, %vm800
      %v802 = vsel %vm801, %v794, %v798
      %v803 = vand.u32 2147483647, %v793
      %vm804 = vcmp.eq.f32.partialorder %v803, 8.507059e+37
      %v805 = vand.u32 %v793, 2147483648
      %v806 = vor.u32 1.1754944e-38, %v805
      %v807 = vsel %vm804, %v806, %v802
      %v808 = vmul.f32 1.0, %v807
      %v809 = vtanh.pop %v755
      %v810 = vxor.u32 %v768, 2147483648
      %v811 = vmul.f32 %v810, 1.442695
      %v812 = vpow.pop %v811
      %v813 = vadd.f32 %v812, 1.0
      %v814 = vrcp.pop %v813
      %v815 = vmul.f32 %v813, %v814
      %v816 = vsub.f32 1.0, %v815
      %v817 = vmul.f32 %v814, %v816
      %v818 = vadd.f32 %v814, %v817
      %vm819 = vweird.f32 %v813
      %vm820 = vweird.f32 %v814
      %vm821 = vmor %vm819, %vm820
      %v822 = vsel %vm821, %v814, %v818
      %v823 = vand.u32 2147483647, %v813
      %vm824 = vcmp.eq.f32.partialorder %v823, 8.507059e+37
      %v825 = vand.u32 %v813, 2147483648
      %v826 = vor.u32 1.1754944e-38, %v825
      %v827 = vsel %vm824, %v826, %v822
      %v828 = vmul.f32 1.0, %v827
      %v829 = vmul.f32 %v808, %v554
      %v830 = vmul.f32 %v789, %v809
      %v831 = vadd.f32 %v829, %v830
      %v832 = vtanh.pop %v831
      %v833 = vmul.f32 %v828, %v832
      %v834 = vsel %vm562, %v833, %v553
      %v835 = vsel %vm562, %v831, %v554
      %s836 = sadd.s32 %s62, 2
      %v837 = vstv %s836
      %vm838 = vcmp.lt.s32.totalorder %v837, %v77
      %v839 = vsel %vm838, 1, 0
      %840 = vset.pattern.permute.xlu0 0
      %841 = vperm.xlu0 %840, %v839
      %v842 = vpop.permute.xlu0 %841
      %vm843 = vcmp.eq.s32.totalorder %v842, 1
      %v844 = vld [vmem:[%s1] sm:$0x2]
      %v845 = vld [vmem:[%s1 + $0x4] sm:$0x2]
      %v848 = vunpack.c.l.b16 %v844
      %v849 = vunpack.c.l.b16 %v845
      %v850 = vpack.c.b16 %v848, %v848
      %v851 = vpack.c.b16 %v849, %v849
      %v852 = vunpack.c.l.b16 %v850
      %v853 = vunpack.c.l.b16 %v851
      %v854 = vrot.slane %v853, 7
      %vm855 = vcmask 1043459
      %v856 = vsel %vm855, %v854, %v852
      %v857 = vpack.c.b16 %v856, %v856
      %v859 = vunpack.c.l.b16 %v707
      %v860 = vpack.c.b16 %v859, %v859
      %v861 = vrot.slane %v860, 7
      %862 = vrot.lane.b32.xlu0 %v861, 16
      %v863 = vpop.permute.xlu0 %862
      %v866 = vsel %vm132, %v857, %v863
      %v868 = vrot.slane %v866, 1
      %v870 = vsel %vm208, %v868, 0
      %872 = vmatpush.bf16.msra.mxu0 0
      %873 = vmatpush.bf16.msra.mxu0 0
      %874 = vmatpush.bf16.msra.mxu0 0
      %875 = vmatpush.bf16.msra.mxu0 0
      %876 = vmatpush.bf16.msra.mxu0 0
      %877 = vmatpush.bf16.msra.mxu0 %v192
      %878 = vmatpush.bf16.msra.mxu0 %v188
      %879 = vmatpush.bf16.msra.mxu0 %v184
      %880 = vmatmul.bf16.gmra.mxu0 %v870
      %v881 = vpop.f32.mrf.mxu0
      %v882 = vadd.f32 %v80, %v881
      %v883 = vpop.f32.mrf.mxu0
      %884 = vdwg.mxu0
      %885 = vmatpush.bf16.msra.mxu0 0
      %886 = vmatpush.bf16.msra.mxu0 0
      %887 = vmatpush.bf16.msra.mxu0 0
      %888 = vmatpush.bf16.msra.mxu0 0
      %889 = vmatpush.bf16.msra.mxu0 0
      %890 = vmatpush.bf16.msra.mxu0 %v193
      %891 = vmatpush.bf16.msra.mxu0 %v189
      %892 = vmatpush.bf16.msra.mxu0 %v185
      %893 = vmatmul.bf16.gmra.mxu0 %v870
      %v894 = vpop.f32.mrf.mxu0
      %v895 = vadd.f32 %v81, %v894
      %v896 = vpop.f32.mrf.mxu0
      %897 = vdwg.mxu0
      %898 = vmatpush.bf16.msra.mxu0 0
      %899 = vmatpush.bf16.msra.mxu0 0
      %900 = vmatpush.bf16.msra.mxu0 0
      %901 = vmatpush.bf16.msra.mxu0 0
      %902 = vmatpush.bf16.msra.mxu0 0
      %903 = vmatpush.bf16.msra.mxu0 %v194
      %904 = vmatpush.bf16.msra.mxu0 %v190
      %905 = vmatpush.bf16.msra.mxu0 %v186
      %906 = vmatmul.bf16.gmra.mxu0 %v870
      %v907 = vpop.f32.mrf.mxu0
      %v908 = vadd.f32 %v82, %v907
      %v909 = vpop.f32.mrf.mxu0
      %910 = vdwg.mxu0
      %911 = vmatpush.bf16.msra.mxu0 0
      %912 = vmatpush.bf16.msra.mxu0 0
      %913 = vmatpush.bf16.msra.mxu0 0
      %914 = vmatpush.bf16.msra.mxu0 0
      %915 = vmatpush.bf16.msra.mxu0 0
      %916 = vmatpush.bf16.msra.mxu0 %v195
      %917 = vmatpush.bf16.msra.mxu0 %v191
      %918 = vmatpush.bf16.msra.mxu0 %v187
      %919 = vmatmul.bf16.gmra.mxu0 %v870
      %v920 = vpop.f32.mrf.mxu0
      %v921 = vadd.f32 %v83, %v920
      %v922 = vpop.f32.mrf.mxu0
      %923 = vdwg.mxu0
      %v924 = vxor.u32 %v882, 2147483648
      %v925 = vmul.f32 %v924, 1.442695
      %v926 = vpow.pop %v925
      %v927 = vadd.f32 %v926, 1.0
      %v928 = vrcp.pop %v927
      %v929 = vmul.f32 %v927, %v928
      %v930 = vsub.f32 1.0, %v929
      %v931 = vmul.f32 %v928, %v930
      %v932 = vadd.f32 %v928, %v931
      %vm933 = vweird.f32 %v927
      %vm934 = vweird.f32 %v928
      %vm935 = vmor %vm933, %vm934
      %v936 = vsel %vm935, %v928, %v932
      %v937 = vand.u32 2147483647, %v927
      %vm938 = vcmp.eq.f32.partialorder %v937, 8.507059e+37
      %v939 = vand.u32 %v927, 2147483648
      %v940 = vor.u32 1.1754944e-38, %v939
      %v941 = vsel %vm938, %v940, %v936
      %v942 = vmul.f32 1.0, %v941
      %v943 = vxor.u32 %v895, 2147483648
      %v944 = vmul.f32 %v943, 1.442695
      %v945 = vpow.pop %v944
      %v946 = vadd.f32 %v945, 1.0
      %v947 = vrcp.pop %v946
      %v948 = vmul.f32 %v946, %v947
      %v949 = vsub.f32 1.0, %v948
      %v950 = vmul.f32 %v947, %v949
      %v951 = vadd.f32 %v947, %v950
      %vm952 = vweird.f32 %v946
      %vm953 = vweird.f32 %v947
      %vm954 = vmor %vm952, %vm953
      %v955 = vsel %vm954, %v947, %v951
      %v956 = vand.u32 2147483647, %v946
      %vm957 = vcmp.eq.f32.partialorder %v956, 8.507059e+37
      %v958 = vand.u32 %v946, 2147483648
      %v959 = vor.u32 1.1754944e-38, %v958
      %v960 = vsel %vm957, %v959, %v955
      %v961 = vmul.f32 1.0, %v960
      %v962 = vtanh.pop %v908
      %v963 = vxor.u32 %v921, 2147483648
      %v964 = vmul.f32 %v963, 1.442695
      %v965 = vpow.pop %v964
      %v966 = vadd.f32 %v965, 1.0
      %v967 = vrcp.pop %v966
      %v968 = vmul.f32 %v966, %v967
      %v969 = vsub.f32 1.0, %v968
      %v970 = vmul.f32 %v967, %v969
      %v971 = vadd.f32 %v967, %v970
      %vm972 = vweird.f32 %v966
      %vm973 = vweird.f32 %v967
      %vm974 = vmor %vm972, %vm973
      %v975 = vsel %vm974, %v967, %v971
      %v976 = vand.u32 2147483647, %v966
      %vm977 = vcmp.eq.f32.partialorder %v976, 8.507059e+37
      %v978 = vand.u32 %v966, 2147483648
      %v979 = vor.u32 1.1754944e-38, %v978
      %v980 = vsel %vm977, %v979, %v975
      %v981 = vmul.f32 1.0, %v980
      %v982 = vmul.f32 %v961, %v706
      %v983 = vmul.f32 %v942, %v962
      %v984 = vadd.f32 %v982, %v983
      %v985 = vtanh.pop %v984
      %v986 = vmul.f32 %v981, %v985
      %v987 = vsel %vm843, %v986, %v705
      %v988 = vsel %vm843, %v984, %v706
      %v989 = vpack.c.bf16 %v987, %v987
      %v990 = vpack.c.bf16 %v834, %v834
      %v992 = vunpack.c.l.b16 %v990
      %v993 = vpack.c.b16 %v992, %v992
      %994 = vrot.lane.b32.xlu0 %v993, 32
      %v995 = vpop.permute.xlu0 %994
      %v998 = vsel %vm335, %v989, %v995
      %v999 = vsel %vm435, %v998, 0
      %1001 = vmatpush.bf16.msra.mxu0 0
      %1002 = vmatpush.bf16.msra.mxu0 0
      %1003 = vmatpush.bf16.msra.mxu0 0
      %1004 = vmatpush.bf16.msra.mxu0 0
      %1005 = vmatpush.bf16.msra.mxu0 %v415
      %1006 = vmatpush.bf16.msra.mxu0 %v411
      %1007 = vmatpush.bf16.msra.mxu0 %v407
      %1008 = vmatpush.bf16.msra.mxu0 %v403
      %1009 = vmatmul.bf16.gmra.mxu0 %v999
      %v1010 = vpop.f32.mrf.mxu0
      %v1011 = vadd.f32 %v91, %v1010
      %v1012 = vpop.f32.mrf.mxu0
      %1013 = vdwg.mxu0
      %1014 = vmatpush.bf16.msra.mxu0 0
      %1015 = vmatpush.bf16.msra.mxu0 0
      %1016 = vmatpush.bf16.msra.mxu0 0
      %1017 = vmatpush.bf16.msra.mxu0 0
      %1018 = vmatpush.bf16.msra.mxu0 %v416
      %1019 = vmatpush.bf16.msra.mxu0 %v412
      %1020 = vmatpush.bf16.msra.mxu0 %v408
      %1021 = vmatpush.bf16.msra.mxu0 %v404
      %1022 = vmatmul.bf16.gmra.mxu0 %v999
      %v1023 = vpop.f32.mrf.mxu0
      %v1024 = vadd.f32 %v92, %v1023
      %v1025 = vpop.f32.mrf.mxu0
      %1026 = vdwg.mxu0
      %1027 = vmatpush.bf16.msra.mxu0 0
      %1028 = vmatpush.bf16.msra.mxu0 0
      %1029 = vmatpush.bf16.msra.mxu0 0
      %1030 = vmatpush.bf16.msra.mxu0 0
      %1031 = vmatpush.bf16.msra.mxu0 %v417
      %1032 = vmatpush.bf16.msra.mxu0 %v413
      %1033 = vmatpush.bf16.msra.mxu0 %v409
      %1034 = vmatpush.bf16.msra.mxu0 %v405
      %1035 = vmatmul.bf16.gmra.mxu0 %v999
      %v1036 = vpop.f32.mrf.mxu0
      %v1037 = vadd.f32 %v93, %v1036
      %v1038 = vpop.f32.mrf.mxu0
      %1039 = vdwg.mxu0
      %1040 = vmatpush.bf16.msra.mxu0 0
      %1041 = vmatpush.bf16.msra.mxu0 0
      %1042 = vmatpush.bf16.msra.mxu0 0
      %1043 = vmatpush.bf16.msra.mxu0 0
      %1044 = vmatpush.bf16.msra.mxu0 %v418
      %1045 = vmatpush.bf16.msra.mxu0 %v414
      %1046 = vmatpush.bf16.msra.mxu0 %v410
      %1047 = vmatpush.bf16.msra.mxu0 %v406
      %1048 = vmatmul.bf16.gmra.mxu0 %v999
      %v1049 = vpop.f32.mrf.mxu0
      %v1050 = vadd.f32 %v94, %v1049
      %v1051 = vpop.f32.mrf.mxu0
      %1052 = vdwg.mxu0
      %v1053 = vxor.u32 %v1011, 2147483648
      %v1054 = vmul.f32 %v1053, 1.442695
      %v1055 = vpow.pop %v1054
      %v1056 = vadd.f32 %v1055, 1.0
      %v1057 = vrcp.pop %v1056
      %v1058 = vmul.f32 %v1056, %v1057
      %v1059 = vsub.f32 1.0, %v1058
      %v1060 = vmul.f32 %v1057, %v1059
      %v1061 = vadd.f32 %v1057, %v1060
      %vm1062 = vweird.f32 %v1056
      %vm1063 = vweird.f32 %v1057
      %vm1064 = vmor %vm1062, %vm1063
      %v1065 = vsel %vm1064, %v1057, %v1061
      %v1066 = vand.u32 2147483647, %v1056
      %vm1067 = vcmp.eq.f32.partialorder %v1066, 8.507059e+37
      %v1068 = vand.u32 %v1056, 2147483648
      %v1069 = vor.u32 1.1754944e-38, %v1068
      %v1070 = vsel %vm1067, %v1069, %v1065
      %v1071 = vmul.f32 1.0, %v1070
      %v1072 = vxor.u32 %v1024, 2147483648
      %v1073 = vmul.f32 %v1072, 1.442695
      %v1074 = vpow.pop %v1073
      %v1075 = vadd.f32 %v1074, 1.0
      %v1076 = vrcp.pop %v1075
      %v1077 = vmul.f32 %v1075, %v1076
      %v1078 = vsub.f32 1.0, %v1077
      %v1079 = vmul.f32 %v1076, %v1078
      %v1080 = vadd.f32 %v1076, %v1079
      %vm1081 = vweird.f32 %v1075
      %vm1082 = vweird.f32 %v1076
      %vm1083 = vmor %vm1081, %vm1082
      %v1084 = vsel %vm1083, %v1076, %v1080
      %v1085 = vand.u32 2147483647, %v1075
      %vm1086 = vcmp.eq.f32.partialorder %v1085, 8.507059e+37
      %v1087 = vand.u32 %v1075, 2147483648
      %v1088 = vor.u32 1.1754944e-38, %v1087
      %v1089 = vsel %vm1086, %v1088, %v1084
      %v1090 = vmul.f32 1.0, %v1089
      %v1091 = vtanh.pop %v1037
      %v1092 = vxor.u32 %v1050, 2147483648
      %v1093 = vmul.f32 %v1092, 1.442695
      %v1094 = vpow.pop %v1093
      %v1095 = vadd.f32 %v1094, 1.0
      %v1096 = vrcp.pop %v1095
      %v1097 = vmul.f32 %v1095, %v1096
      %v1098 = vsub.f32 1.0, %v1097
      %v1099 = vmul.f32 %v1096, %v1098
      %v1100 = vadd.f32 %v1096, %v1099
      %vm1101 = vweird.f32 %v1095
      %vm1102 = vweird.f32 %v1096
      %vm1103 = vmor %vm1101, %vm1102
      %v1104 = vsel %vm1103, %v1096, %v1100
      %v1105 = vand.u32 2147483647, %v1095
      %vm1106 = vcmp.eq.f32.partialorder %v1105, 8.507059e+37
      %v1107 = vand.u32 %v1095, 2147483648
      %v1108 = vor.u32 1.1754944e-38, %v1107
      %v1109 = vsel %vm1106, %v1108, %v1104
      %v1110 = vmul.f32 1.0, %v1109
      %v1111 = vmul.f32 %v1090, %v835
      %v1112 = vmul.f32 %v1071, %v1091
      %v1113 = vadd.f32 %v1111, %v1112
      %v1114 = vtanh.pop %v1113
      %v1115 = vmul.f32 %v1110, %v1114
      %v1116 = vsel %vm843, %v1115, %v834
      %v1117 = vsel %vm843, %v1113, %v835
      %s1118 = sadd.s32 %s62, 3
      %v1119 = vstv %s1118
      %vm1120 = vcmp.lt.s32.totalorder %v1119, %v77
      %v1121 = vsel %vm1120, 1, 0
      %1122 = vset.pattern.permute.xlu0 0
      %1123 = vperm.xlu0 %1122, %v1121
      %v1124 = vpop.permute.xlu0 %1123
      %vm1125 = vcmp.eq.s32.totalorder %v1124, 1
      %vm1126 = vcmask 1044484
      %v1127 = vsel %vm1126, %v854, %v852
      %v1128 = vpack.c.b16 %v1127, %v1127
      %v1130 = vunpack.c.l.b16 %v989
      %v1131 = vpack.c.b16 %v1130, %v1130
      %v1133 = vshrl.u32 %v1131, 16
      %v1135 = vrot.slane %v1133, 6
      %v1136 = vshll.u32 %v1131, 16
      %v1138 = vrot.slane %v1136, 7
      %v1139 = vor.u32 %v1135, %v1138
      %1140 = vrot.lane.b32.xlu0 %v1139, 16
      %v1141 = vpop.permute.xlu0 %1140
      %v1144 = vsel %vm132, %v1128, %v1141
      %v1145 = vshrl.u32 %v1144, 16
      %v1147 = vrot.slane %v1145, 1
      %v1148 = vshll.u32 %v1144, 16
      %v1150 = vrot.slane %v1148, 2
      %v1151 = vor.u32 %v1147, %v1150
      %v1153 = vsel %vm208, %v1151, 0
      %1155 = vmatpush.bf16.msra.mxu0 0
      %1156 = vmatpush.bf16.msra.mxu0 0
      %1157 = vmatpush.bf16.msra.mxu0 0
      %1158 = vmatpush.bf16.msra.mxu0 0
      %1159 = vmatpush.bf16.msra.mxu0 0
      %1160 = vmatpush.bf16.msra.mxu0 %v192
      %1161 = vmatpush.bf16.msra.mxu0 %v188
      %1162 = vmatpush.bf16.msra.mxu0 %v184
      %1163 = vmatmul.bf16.gmra.mxu0 %v1153
      %v1164 = vpop.f32.mrf.mxu0
      %v1165 = vadd.f32 %v80, %v1164
      %v1166 = vpop.f32.mrf.mxu0
      %1167 = vdwg.mxu0
      %1168 = vmatpush.bf16.msra.mxu0 0
      %1169 = vmatpush.bf16.msra.mxu0 0
      %1170 = vmatpush.bf16.msra.mxu0 0
      %1171 = vmatpush.bf16.msra.mxu0 0
      %1172 = vmatpush.bf16.msra.mxu0 0
      %1173 = vmatpush.bf16.msra.mxu0 %v193
      %1174 = vmatpush.bf16.msra.mxu0 %v189
      %1175 = vmatpush.bf16.msra.mxu0 %v185
      %1176 = vmatmul.bf16.gmra.mxu0 %v1153
      %v1177 = vpop.f32.mrf.mxu0
      %v1178 = vadd.f32 %v81, %v1177
      %v1179 = vpop.f32.mrf.mxu0
      %1180 = vdwg.mxu0
      %1181 = vmatpush.bf16.msra.mxu0 0
      %1182 = vmatpush.bf16.msra.mxu0 0
      %1183 = vmatpush.bf16.msra.mxu0 0
      %1184 = vmatpush.bf16.msra.mxu0 0
      %1185 = vmatpush.bf16.msra.mxu0 0
      %1186 = vmatpush.bf16.msra.mxu0 %v194
      %1187 = vmatpush.bf16.msra.mxu0 %v190
      %1188 = vmatpush.bf16.msra.mxu0 %v186
      %1189 = vmatmul.bf16.gmra.mxu0 %v1153
      %v1190 = vpop.f32.mrf.mxu0
      %v1191 = vadd.f32 %v82, %v1190
      %v1192 = vpop.f32.mrf.mxu0
      %1193 = vdwg.mxu0
      %1194 = vmatpush.bf16.msra.mxu0 0
      %1195 = vmatpush.bf16.msra.mxu0 0
      %1196 = vmatpush.bf16.msra.mxu0 0
      %1197 = vmatpush.bf16.msra.mxu0 0
      %1198 = vmatpush.bf16.msra.mxu0 0
      %1199 = vmatpush.bf16.msra.mxu0 %v195
      %1200 = vmatpush.bf16.msra.mxu0 %v191
      %1201 = vmatpush.bf16.msra.mxu0 %v187
      %1202 = vmatmul.bf16.gmra.mxu0 %v1153
      %v1203 = vpop.f32.mrf.mxu0
      %v1204 = vadd.f32 %v83, %v1203
      %v1205 = vpop.f32.mrf.mxu0
      %1206 = vdwg.mxu0
      %v1207 = vxor.u32 %v1165, 2147483648
      %v1208 = vmul.f32 %v1207, 1.442695
      %v1209 = vpow.pop %v1208
      %v1210 = vadd.f32 %v1209, 1.0
      %v1211 = vrcp.pop %v1210
      %v1212 = vmul.f32 %v1210, %v1211
      %v1213 = vsub.f32 1.0, %v1212
      %v1214 = vmul.f32 %v1211, %v1213
      %v1215 = vadd.f32 %v1211, %v1214
      %vm1216 = vweird.f32 %v1210
      %vm1217 = vweird.f32 %v1211
      %vm1218 = vmor %vm1216, %vm1217
      %v1219 = vsel %vm1218, %v1211, %v1215
      %v1220 = vand.u32 2147483647, %v1210
      %vm1221 = vcmp.eq.f32.partialorder %v1220, 8.507059e+37
      %v1222 = vand.u32 %v1210, 2147483648
      %v1223 = vor.u32 1.1754944e-38, %v1222
      %v1224 = vsel %vm1221, %v1223, %v1219
      %v1225 = vmul.f32 1.0, %v1224
      %v1226 = vxor.u32 %v1178, 2147483648
      %v1227 = vmul.f32 %v1226, 1.442695
      %v1228 = vpow.pop %v1227
      %v1229 = vadd.f32 %v1228, 1.0
      %v1230 = vrcp.pop %v1229
      %v1231 = vmul.f32 %v1229, %v1230
      %v1232 = vsub.f32 1.0, %v1231
      %v1233 = vmul.f32 %v1230, %v1232
      %v1234 = vadd.f32 %v1230, %v1233
      %vm1235 = vweird.f32 %v1229
      %vm1236 = vweird.f32 %v1230
      %vm1237 = vmor %vm1235, %vm1236
      %v1238 = vsel %vm1237, %v1230, %v1234
      %v1239 = vand.u32 2147483647, %v1229
      %vm1240 = vcmp.eq.f32.partialorder %v1239, 8.507059e+37
      %v1241 = vand.u32 %v1229, 2147483648
      %v1242 = vor.u32 1.1754944e-38, %v1241
      %v1243 = vsel %vm1240, %v1242, %v1238
      %v1244 = vmul.f32 1.0, %v1243
      %v1245 = vtanh.pop %v1191
      %v1246 = vxor.u32 %v1204, 2147483648
      %v1247 = vmul.f32 %v1246, 1.442695
      %v1248 = vpow.pop %v1247
      %v1249 = vadd.f32 %v1248, 1.0
      %v1250 = vrcp.pop %v1249
      %v1251 = vmul.f32 %v1249, %v1250
      %v1252 = vsub.f32 1.0, %v1251
      %v1253 = vmul.f32 %v1250, %v1252
      %v1254 = vadd.f32 %v1250, %v1253
      %vm1255 = vweird.f32 %v1249
      %vm1256 = vweird.f32 %v1250
      %vm1257 = vmor %vm1255, %vm1256
      %v1258 = vsel %vm1257, %v1250, %v1254
      %v1259 = vand.u32 2147483647, %v1249
      %vm1260 = vcmp.eq.f32.partialorder %v1259, 8.507059e+37
      %v1261 = vand.u32 %v1249, 2147483648
      %v1262 = vor.u32 1.1754944e-38, %v1261
      %v1263 = vsel %vm1260, %v1262, %v1258
      %v1264 = vmul.f32 1.0, %v1263
      %v1265 = vmul.f32 %v1244, %v988
      %v1266 = vmul.f32 %v1225, %v1245
      %v1267 = vadd.f32 %v1265, %v1266
      %v1268 = vtanh.pop %v1267
      %v1269 = vmul.f32 %v1264, %v1268
      %v1270 = vsel %vm1125, %v1269, %v987
      %v1271 = vsel %vm1125, %v1267, %v988
      %v1272 = vpack.c.bf16 %v1270, %v1270
      %v1273 = vpack.c.bf16 %v1116, %v1116
      %v1275 = vunpack.c.l.b16 %v1273
      %v1276 = vpack.c.b16 %v1275, %v1275
      %1277 = vrot.lane.b32.xlu0 %v1276, 32
      %v1278 = vpop.permute.xlu0 %1277
      %v1281 = vsel %vm335, %v1272, %v1278
      %v1282 = vsel %vm435, %v1281, 0
      %1284 = vmatpush.bf16.msra.mxu0 0
      %1285 = vmatpush.bf16.msra.mxu0 0
      %1286 = vmatpush.bf16.msra.mxu0 0
      %1287 = vmatpush.bf16.msra.mxu0 0
      %1288 = vmatpush.bf16.msra.mxu0 %v415
      %1289 = vmatpush.bf16.msra.mxu0 %v411
      %1290 = vmatpush.bf16.msra.mxu0 %v407
      %1291 = vmatpush.bf16.msra.mxu0 %v403
      %1292 = vmatmul.bf16.gmra.mxu0 %v1282
      %v1293 = vpop.f32.mrf.mxu0
      %v1294 = vadd.f32 %v91, %v1293
      %v1295 = vpop.f32.mrf.mxu0
      %1296 = vdwg.mxu0
      %1297 = vmatpush.bf16.msra.mxu0 0
      %1298 = vmatpush.bf16.msra.mxu0 0
      %1299 = vmatpush.bf16.msra.mxu0 0
      %1300 = vmatpush.bf16.msra.mxu0 0
      %1301 = vmatpush.bf16.msra.mxu0 %v416
      %1302 = vmatpush.bf16.msra.mxu0 %v412
      %1303 = vmatpush.bf16.msra.mxu0 %v408
      %1304 = vmatpush.bf16.msra.mxu0 %v404
      %1305 = vmatmul.bf16.gmra.mxu0 %v1282
      %v1306 = vpop.f32.mrf.mxu0
      %v1307 = vadd.f32 %v92, %v1306
      %v1308 = vpop.f32.mrf.mxu0
      %1309 = vdwg.mxu0
      %1310 = vmatpush.bf16.msra.mxu0 0
      %1311 = vmatpush.bf16.msra.mxu0 0
      %1312 = vmatpush.bf16.msra.mxu0 0
      %1313 = vmatpush.bf16.msra.mxu0 0
      %1314 = vmatpush.bf16.msra.mxu0 %v417
      %1315 = vmatpush.bf16.msra.mxu0 %v413
      %1316 = vmatpush.bf16.msra.mxu0 %v409
      %1317 = vmatpush.bf16.msra.mxu0 %v405
      %1318 = vmatmul.bf16.gmra.mxu0 %v1282
      %v1319 = vpop.f32.mrf.mxu0
      %v1320 = vadd.f32 %v93, %v1319
      %v1321 = vpop.f32.mrf.mxu0
      %1322 = vdwg.mxu0
      %1323 = vmatpush.bf16.msra.mxu0 0
      %1324 = vmatpush.bf16.msra.mxu0 0
      %1325 = vmatpush.bf16.msra.mxu0 0
      %1326 = vmatpush.bf16.msra.mxu0 0
      %1327 = vmatpush.bf16.msra.mxu0 %v418
      %1328 = vmatpush.bf16.msra.mxu0 %v414
      %1329 = vmatpush.bf16.msra.mxu0 %v410
      %1330 = vmatpush.bf16.msra.mxu0 %v406
      %1331 = vmatmul.bf16.gmra.mxu0 %v1282
      %v1332 = vpop.f32.mrf.mxu0
      %v1333 = vadd.f32 %v94, %v1332
      %v1334 = vpop.f32.mrf.mxu0
      %1335 = vdwg.mxu0
      %v1336 = vxor.u32 %v1294, 2147483648
      %v1337 = vmul.f32 %v1336, 1.442695
      %v1338 = vpow.pop %v1337
      %v1339 = vadd.f32 %v1338, 1.0
      %v1340 = vrcp.pop %v1339
      %v1341 = vmul.f32 %v1339, %v1340
      %v1342 = vsub.f32 1.0, %v1341
      %v1343 = vmul.f32 %v1340, %v1342
      %v1344 = vadd.f32 %v1340, %v1343
      %vm1345 = vweird.f32 %v1339
      %vm1346 = vweird.f32 %v1340
      %vm1347 = vmor %vm1345, %vm1346
      %v1348 = vsel %vm1347, %v1340, %v1344
      %v1349 = vand.u32 2147483647, %v1339
      %vm1350 = vcmp.eq.f32.partialorder %v1349, 8.507059e+37
      %v1351 = vand.u32 %v1339, 2147483648
      %v1352 = vor.u32 1.1754944e-38, %v1351
      %v1353 = vsel %vm1350, %v1352, %v1348
      %v1354 = vmul.f32 1.0, %v1353
      %v1355 = vxor.u32 %v1307, 2147483648
      %v1356 = vmul.f32 %v1355, 1.442695
      %v1357 = vpow.pop %v1356
      %v1358 = vadd.f32 %v1357, 1.0
      %v1359 = vrcp.pop %v1358
      %v1360 = vmul.f32 %v1358, %v1359
      %v1361 = vsub.f32 1.0, %v1360
      %v1362 = vmul.f32 %v1359, %v1361
      %v1363 = vadd.f32 %v1359, %v1362
      %vm1364 = vweird.f32 %v1358
      %vm1365 = vweird.f32 %v1359
      %vm1366 = vmor %vm1364, %vm1365
      %v1367 = vsel %vm1366, %v1359, %v1363
      %v1368 = vand.u32 2147483647, %v1358
      %vm1369 = vcmp.eq.f32.partialorder %v1368, 8.507059e+37
      %v1370 = vand.u32 %v1358, 2147483648
      %v1371 = vor.u32 1.1754944e-38, %v1370
      %v1372 = vsel %vm1369, %v1371, %v1367
      %v1373 = vmul.f32 1.0, %v1372
      %v1374 = vtanh.pop %v1320
      %v1375 = vxor.u32 %v1333, 2147483648
      %v1376 = vmul.f32 %v1375, 1.442695
      %v1377 = vpow.pop %v1376
      %v1378 = vadd.f32 %v1377, 1.0
      %v1379 = vrcp.pop %v1378
      %v1380 = vmul.f32 %v1378, %v1379
      %v1381 = vsub.f32 1.0, %v1380
      %v1382 = vmul.f32 %v1379, %v1381
      %v1383 = vadd.f32 %v1379, %v1382
      %vm1384 = vweird.f32 %v1378
      %vm1385 = vweird.f32 %v1379
      %vm1386 = vmor %vm1384, %vm1385
      %v1387 = vsel %vm1386, %v1379, %v1383
      %v1388 = vand.u32 2147483647, %v1378
      %vm1389 = vcmp.eq.f32.partialorder %v1388, 8.507059e+37
      %v1390 = vand.u32 %v1378, 2147483648
      %v1391 = vor.u32 1.1754944e-38, %v1390
      %v1392 = vsel %vm1389, %v1391, %v1387
      %v1393 = vmul.f32 1.0, %v1392
      %v1394 = vmul.f32 %v1373, %v1117
      %v1395 = vmul.f32 %v1354, %v1374
      %v1396 = vadd.f32 %v1394, %v1395
      %v1397 = vtanh.pop %v1396
      %v1398 = vmul.f32 %v1393, %v1397
      %v1399 = vsel %vm1125, %v1398, %v1116
      %v1400 = vsel %vm1125, %v1396, %v1117
      %s1401 = sadd.s32 %s62, 4
      %v1402 = vstv %s1401
      %vm1403 = vcmp.lt.s32.totalorder %v1402, %v77
      %v1404 = vsel %vm1403, 1, 0
      %1405 = vset.pattern.permute.xlu0 0
      %1406 = vperm.xlu0 %1405, %v1404
      %v1407 = vpop.permute.xlu0 %1406
      %vm1408 = vcmp.eq.s32.totalorder %v1407, 1
      %v1409 = vld [vmem:[%s1] sm:$0x4]
      %v1410 = vld [vmem:[%s1 + $0x4] sm:$0x4]
      %v1413 = vunpack.c.l.b16 %v1409
      %v1414 = vunpack.c.l.b16 %v1410
      %v1415 = vpack.c.b16 %v1413, %v1413
      %v1416 = vpack.c.b16 %v1414, %v1414
      %v1417 = vunpack.c.l.b16 %v1415
      %v1418 = vunpack.c.l.b16 %v1416
      %v1419 = vrot.slane %v1418, 7
      %vm1420 = vcmask 1045509
      %v1421 = vsel %vm1420, %v1419, %v1417
      %v1422 = vpack.c.b16 %v1421, %v1421
      %v1424 = vunpack.c.l.b16 %v1272
      %v1425 = vpack.c.b16 %v1424, %v1424
      %v1426 = vrot.slane %v1425, 6
      %1427 = vrot.lane.b32.xlu0 %v1426, 16
      %v1428 = vpop.permute.xlu0 %1427
      %v1431 = vsel %vm132, %v1422, %v1428
      %v1433 = vrot.slane %v1431, 2
      %v1435 = vsel %vm208, %v1433, 0
      %1437 = vmatpush.bf16.msra.mxu0 0
      %1438 = vmatpush.bf16.msra.mxu0 0
      %1439 = vmatpush.bf16.msra.mxu0 0
      %1440 = vmatpush.bf16.msra.mxu0 0
      %1441 = vmatpush.bf16.msra.mxu0 0
      %1442 = vmatpush.bf16.msra.mxu0 %v192
      %1443 = vmatpush.bf16.msra.mxu0 %v188
      %1444 = vmatpush.bf16.msra.mxu0 %v184
      %1445 = vmatmul.bf16.gmra.mxu0 %v1435
      %v1446 = vpop.f32.mrf.mxu0
      %v1447 = vadd.f32 %v80, %v1446
      %v1448 = vpop.f32.mrf.mxu0
      %1449 = vdwg.mxu0
      %1450 = vmatpush.bf16.msra.mxu0 0
      %1451 = vmatpush.bf16.msra.mxu0 0
      %1452 = vmatpush.bf16.msra.mxu0 0
      %1453 = vmatpush.bf16.msra.mxu0 0
      %1454 = vmatpush.bf16.msra.mxu0 0
      %1455 = vmatpush.bf16.msra.mxu0 %v193
      %1456 = vmatpush.bf16.msra.mxu0 %v189
      %1457 = vmatpush.bf16.msra.mxu0 %v185
      %1458 = vmatmul.bf16.gmra.mxu0 %v1435
      %v1459 = vpop.f32.mrf.mxu0
      %v1460 = vadd.f32 %v81, %v1459
      %v1461 = vpop.f32.mrf.mxu0
      %1462 = vdwg.mxu0
      %1463 = vmatpush.bf16.msra.mxu0 0
      %1464 = vmatpush.bf16.msra.mxu0 0
      %1465 = vmatpush.bf16.msra.mxu0 0
      %1466 = vmatpush.bf16.msra.mxu0 0
      %1467 = vmatpush.bf16.msra.mxu0 0
      %1468 = vmatpush.bf16.msra.mxu0 %v194
      %1469 = vmatpush.bf16.msra.mxu0 %v190
      %1470 = vmatpush.bf16.msra.mxu0 %v186
      %1471 = vmatmul.bf16.gmra.mxu0 %v1435
      %v1472 = vpop.f32.mrf.mxu0
      %v1473 = vadd.f32 %v82, %v1472
      %v1474 = vpop.f32.mrf.mxu0
      %1475 = vdwg.mxu0
      %1476 = vmatpush.bf16.msra.mxu0 0
      %1477 = vmatpush.bf16.msra.mxu0 0
      %1478 = vmatpush.bf16.msra.mxu0 0
      %1479 = vmatpush.bf16.msra.mxu0 0
      %1480 = vmatpush.bf16.msra.mxu0 0
      %1481 = vmatpush.bf16.msra.mxu0 %v195
      %1482 = vmatpush.bf16.msra.mxu0 %v191
      %1483 = vmatpush.bf16.msra.mxu0 %v187
      %1484 = vmatmul.bf16.gmra.mxu0 %v1435
      %v1485 = vpop.f32.mrf.mxu0
      %v1486 = vadd.f32 %v83, %v1485
      %v1487 = vpop.f32.mrf.mxu0
      %1488 = vdwg.mxu0
      %v1489 = vxor.u32 %v1447, 2147483648
      %v1490 = vmul.f32 %v1489, 1.442695
      %v1491 = vpow.pop %v1490
      %v1492 = vadd.f32 %v1491, 1.0
      %v1493 = vrcp.pop %v1492
      %v1494 = vmul.f32 %v1492, %v1493
      %v1495 = vsub.f32 1.0, %v1494
      %v1496 = vmul.f32 %v1493, %v1495
      %v1497 = vadd.f32 %v1493, %v1496
      %vm1498 = vweird.f32 %v1492
      %vm1499 = vweird.f32 %v1493
      %vm1500 = vmor %vm1498, %vm1499
      %v1501 = vsel %vm1500, %v1493, %v1497
      %v1502 = vand.u32 2147483647, %v1492
      %vm1503 = vcmp.eq.f32.partialorder %v1502, 8.507059e+37
      %v1504 = vand.u32 %v1492, 2147483648
      %v1505 = vor.u32 1.1754944e-38, %v1504
      %v1506 = vsel %vm1503, %v1505, %v1501
      %v1507 = vmul.f32 1.0, %v1506
      %v1508 = vxor.u32 %v1460, 2147483648
      %v1509 = vmul.f32 %v1508, 1.442695
      %v1510 = vpow.pop %v1509
      %v1511 = vadd.f32 %v1510, 1.0
      %v1512 = vrcp.pop %v1511
      %v1513 = vmul.f32 %v1511, %v1512
      %v1514 = vsub.f32 1.0, %v1513
      %v1515 = vmul.f32 %v1512, %v1514
      %v1516 = vadd.f32 %v1512, %v1515
      %vm1517 = vweird.f32 %v1511
      %vm1518 = vweird.f32 %v1512
      %vm1519 = vmor %vm1517, %vm1518
      %v1520 = vsel %vm1519, %v1512, %v1516
      %v1521 = vand.u32 2147483647, %v1511
      %vm1522 = vcmp.eq.f32.partialorder %v1521, 8.507059e+37
      %v1523 = vand.u32 %v1511, 2147483648
      %v1524 = vor.u32 1.1754944e-38, %v1523
      %v1525 = vsel %vm1522, %v1524, %v1520
      %v1526 = vmul.f32 1.0, %v1525
      %v1527 = vtanh.pop %v1473
      %v1528 = vxor.u32 %v1486, 2147483648
      %v1529 = vmul.f32 %v1528, 1.442695
      %v1530 = vpow.pop %v1529
      %v1531 = vadd.f32 %v1530, 1.0
      %v1532 = vrcp.pop %v1531
      %v1533 = vmul.f32 %v1531, %v1532
      %v1534 = vsub.f32 1.0, %v1533
      %v1535 = vmul.f32 %v1532, %v1534
      %v1536 = vadd.f32 %v1532, %v1535
      %vm1537 = vweird.f32 %v1531
      %vm1538 = vweird.f32 %v1532
      %vm1539 = vmor %vm1537, %vm1538
      %v1540 = vsel %vm1539, %v1532, %v1536
      %v1541 = vand.u32 2147483647, %v1531
      %vm1542 = vcmp.eq.f32.partialorder %v1541, 8.507059e+37
      %v1543 = vand.u32 %v1531, 2147483648
      %v1544 = vor.u32 1.1754944e-38, %v1543
      %v1545 = vsel %vm1542, %v1544, %v1540
      %v1546 = vmul.f32 1.0, %v1545
      %v1547 = vmul.f32 %v1526, %v1271
      %v1548 = vmul.f32 %v1507, %v1527
      %v1549 = vadd.f32 %v1547, %v1548
      %v1550 = vtanh.pop %v1549
      %v1551 = vmul.f32 %v1546, %v1550
      %v1552 = vsel %vm1408, %v1551, %v1270
      %v1553 = vsel %vm1408, %v1549, %v1271
      %v1554 = vpack.c.bf16 %v1552, %v1552
      %v1555 = vpack.c.bf16 %v1399, %v1399
      %v1557 = vunpack.c.l.b16 %v1555
      %v1558 = vpack.c.b16 %v1557, %v1557
      %1559 = vrot.lane.b32.xlu0 %v1558, 32
      %v1560 = vpop.permute.xlu0 %1559
      %v1563 = vsel %vm335, %v1554, %v1560
      %v1564 = vsel %vm435, %v1563, 0
      %1566 = vmatpush.bf16.msra.mxu0 0
      %1567 = vmatpush.bf16.msra.mxu0 0
      %1568 = vmatpush.bf16.msra.mxu0 0
      %1569 = vmatpush.bf16.msra.mxu0 0
      %1570 = vmatpush.bf16.msra.mxu0 %v415
      %1571 = vmatpush.bf16.msra.mxu0 %v411
      %1572 = vmatpush.bf16.msra.mxu0 %v407
      %1573 = vmatpush.bf16.msra.mxu0 %v403
      %1574 = vmatmul.bf16.gmra.mxu0 %v1564
      %v1575 = vpop.f32.mrf.mxu0
      %v1576 = vadd.f32 %v91, %v1575
      %v1577 = vpop.f32.mrf.mxu0
      %1578 = vdwg.mxu0
      %1579 = vmatpush.bf16.msra.mxu0 0
      %1580 = vmatpush.bf16.msra.mxu0 0
      %1581 = vmatpush.bf16.msra.mxu0 0
      %1582 = vmatpush.bf16.msra.mxu0 0
      %1583 = vmatpush.bf16.msra.mxu0 %v416
      %1584 = vmatpush.bf16.msra.mxu0 %v412
      %1585 = vmatpush.bf16.msra.mxu0 %v408
      %1586 = vmatpush.bf16.msra.mxu0 %v404
      %1587 = vmatmul.bf16.gmra.mxu0 %v1564
      %v1588 = vpop.f32.mrf.mxu0
      %v1589 = vadd.f32 %v92, %v1588
      %v1590 = vpop.f32.mrf.mxu0
      %1591 = vdwg.mxu0
      %1592 = vmatpush.bf16.msra.mxu0 0
      %1593 = vmatpush.bf16.msra.mxu0 0
      %1594 = vmatpush.bf16.msra.mxu0 0
      %1595 = vmatpush.bf16.msra.mxu0 0
      %1596 = vmatpush.bf16.msra.mxu0 %v417
      %1597 = vmatpush.bf16.msra.mxu0 %v413
      %1598 = vmatpush.bf16.msra.mxu0 %v409
      %1599 = vmatpush.bf16.msra.mxu0 %v405
      %1600 = vmatmul.bf16.gmra.mxu0 %v1564
      %v1601 = vpop.f32.mrf.mxu0
      %v1602 = vadd.f32 %v93, %v1601
      %v1603 = vpop.f32.mrf.mxu0
      %1604 = vdwg.mxu0
      %1605 = vmatpush.bf16.msra.mxu0 0
      %1606 = vmatpush.bf16.msra.mxu0 0
      %1607 = vmatpush.bf16.msra.mxu0 0
      %1608 = vmatpush.bf16.msra.mxu0 0
      %1609 = vmatpush.bf16.msra.mxu0 %v418
      %1610 = vmatpush.bf16.msra.mxu0 %v414
      %1611 = vmatpush.bf16.msra.mxu0 %v410
      %1612 = vmatpush.bf16.msra.mxu0 %v406
      %1613 = vmatmul.bf16.gmra.mxu0 %v1564
      %v1614 = vpop.f32.mrf.mxu0
      %v1615 = vadd.f32 %v94, %v1614
      %v1616 = vpop.f32.mrf.mxu0
      %1617 = vdwg.mxu0
      %v1618 = vxor.u32 %v1576, 2147483648
      %v1619 = vmul.f32 %v1618, 1.442695
      %v1620 = vpow.pop %v1619
      %v1621 = vadd.f32 %v1620, 1.0
      %v1622 = vrcp.pop %v1621
      %v1623 = vmul.f32 %v1621, %v1622
      %v1624 = vsub.f32 1.0, %v1623
      %v1625 = vmul.f32 %v1622, %v1624
      %v1626 = vadd.f32 %v1622, %v1625
      %vm1627 = vweird.f32 %v1621
      %vm1628 = vweird.f32 %v1622
      %vm1629 = vmor %vm1627, %vm1628
      %v1630 = vsel %vm1629, %v1622, %v1626
      %v1631 = vand.u32 2147483647, %v1621
      %vm1632 = vcmp.eq.f32.partialorder %v1631, 8.507059e+37
      %v1633 = vand.u32 %v1621, 2147483648
      %v1634 = vor.u32 1.1754944e-38, %v1633
      %v1635 = vsel %vm1632, %v1634, %v1630
      %v1636 = vmul.f32 1.0, %v1635
      %v1637 = vxor.u32 %v1589, 2147483648
      %v1638 = vmul.f32 %v1637, 1.442695
      %v1639 = vpow.pop %v1638
      %v1640 = vadd.f32 %v1639, 1.0
      %v1641 = vrcp.pop %v1640
      %v1642 = vmul.f32 %v1640, %v1641
      %v1643 = vsub.f32 1.0, %v1642
      %v1644 = vmul.f32 %v1641, %v1643
      %v1645 = vadd.f32 %v1641, %v1644
      %vm1646 = vweird.f32 %v1640
      %vm1647 = vweird.f32 %v1641
      %vm1648 = vmor %vm1646, %vm1647
      %v1649 = vsel %vm1648, %v1641, %v1645
      %v1650 = vand.u32 2147483647, %v1640
      %vm1651 = vcmp.eq.f32.partialorder %v1650, 8.507059e+37
      %v1652 = vand.u32 %v1640, 2147483648
      %v1653 = vor.u32 1.1754944e-38, %v1652
      %v1654 = vsel %vm1651, %v1653, %v1649
      %v1655 = vmul.f32 1.0, %v1654
      %v1656 = vtanh.pop %v1602
      %v1657 = vxor.u32 %v1615, 2147483648
      %v1658 = vmul.f32 %v1657, 1.442695
      %v1659 = vpow.pop %v1658
      %v1660 = vadd.f32 %v1659, 1.0
      %v1661 = vrcp.pop %v1660
      %v1662 = vmul.f32 %v1660, %v1661
      %v1663 = vsub.f32 1.0, %v1662
      %v1664 = vmul.f32 %v1661, %v1663
      %v1665 = vadd.f32 %v1661, %v1664
      %vm1666 = vweird.f32 %v1660
      %vm1667 = vweird.f32 %v1661
      %vm1668 = vmor %vm1666, %vm1667
      %v1669 = vsel %vm1668, %v1661, %v1665
      %v1670 = vand.u32 2147483647, %v1660
      %vm1671 = vcmp.eq.f32.partialorder %v1670, 8.507059e+37
      %v1672 = vand.u32 %v1660, 2147483648
      %v1673 = vor.u32 1.1754944e-38, %v1672
      %v1674 = vsel %vm1671, %v1673, %v1669
      %v1675 = vmul.f32 1.0, %v1674
      %v1676 = vmul.f32 %v1655, %v1400
      %v1677 = vmul.f32 %v1636, %v1656
      %v1678 = vadd.f32 %v1676, %v1677
      %v1679 = vtanh.pop %v1678
      %v1680 = vmul.f32 %v1675, %v1679
      %v1681 = vsel %vm1408, %v1680, %v1399
      %v1682 = vsel %vm1408, %v1678, %v1400
      %s1683 = sadd.s32 %s62, 5
      %v1684 = vstv %s1683
      %vm1685 = vcmp.lt.s32.totalorder %v1684, %v77
      %v1686 = vsel %vm1685, 1, 0
      %1687 = vset.pattern.permute.xlu0 0
      %1688 = vperm.xlu0 %1687, %v1686
      %v1689 = vpop.permute.xlu0 %1688
      %vm1690 = vcmp.eq.s32.totalorder %v1689, 1
      %vm1691 = vcmask 1046534
      %v1692 = vsel %vm1691, %v1419, %v1417
      %v1693 = vpack.c.b16 %v1692, %v1692
      %v1695 = vunpack.c.l.b16 %v1554
      %v1696 = vpack.c.b16 %v1695, %v1695
      %v1698 = vshrl.u32 %v1696, 16
      %v1700 = vrot.slane %v1698, 5
      %v1701 = vshll.u32 %v1696, 16
      %v1703 = vrot.slane %v1701, 6
      %v1704 = vor.u32 %v1700, %v1703
      %1705 = vrot.lane.b32.xlu0 %v1704, 16
      %v1706 = vpop.permute.xlu0 %1705
      %v1709 = vsel %vm132, %v1693, %v1706
      %v1710 = vshrl.u32 %v1709, 16
      %v1712 = vrot.slane %v1710, 2
      %v1713 = vshll.u32 %v1709, 16
      %v1715 = vrot.slane %v1713, 3
      %v1716 = vor.u32 %v1712, %v1715
      %v1718 = vsel %vm208, %v1716, 0
      %1720 = vmatpush.bf16.msra.mxu0 0
      %1721 = vmatpush.bf16.msra.mxu0 0
      %1722 = vmatpush.bf16.msra.mxu0 0
      %1723 = vmatpush.bf16.msra.mxu0 0
      %1724 = vmatpush.bf16.msra.mxu0 0
      %1725 = vmatpush.bf16.msra.mxu0 %v192
      %1726 = vmatpush.bf16.msra.mxu0 %v188
      %1727 = vmatpush.bf16.msra.mxu0 %v184
      %1728 = vmatmul.bf16.gmra.mxu0 %v1718
      %v1729 = vpop.f32.mrf.mxu0
      %v1730 = vadd.f32 %v80, %v1729
      %v1731 = vpop.f32.mrf.mxu0
      %1732 = vdwg.mxu0
      %1733 = vmatpush.bf16.msra.mxu0 0
      %1734 = vmatpush.bf16.msra.mxu0 0
      %1735 = vmatpush.bf16.msra.mxu0 0
      %1736 = vmatpush.bf16.msra.mxu0 0
      %1737 = vmatpush.bf16.msra.mxu0 0
      %1738 = vmatpush.bf16.msra.mxu0 %v193
      %1739 = vmatpush.bf16.msra.mxu0 %v189
      %1740 = vmatpush.bf16.msra.mxu0 %v185
      %1741 = vmatmul.bf16.gmra.mxu0 %v1718
      %v1742 = vpop.f32.mrf.mxu0
      %v1743 = vadd.f32 %v81, %v1742
      %v1744 = vpop.f32.mrf.mxu0
      %1745 = vdwg.mxu0
      %1746 = vmatpush.bf16.msra.mxu0 0
      %1747 = vmatpush.bf16.msra.mxu0 0
      %1748 = vmatpush.bf16.msra.mxu0 0
      %1749 = vmatpush.bf16.msra.mxu0 0
      %1750 = vmatpush.bf16.msra.mxu0 0
      %1751 = vmatpush.bf16.msra.mxu0 %v194
      %1752 = vmatpush.bf16.msra.mxu0 %v190
      %1753 = vmatpush.bf16.msra.mxu0 %v186
      %1754 = vmatmul.bf16.gmra.mxu0 %v1718
      %v1755 = vpop.f32.mrf.mxu0
      %v1756 = vadd.f32 %v82, %v1755
      %v1757 = vpop.f32.mrf.mxu0
      %1758 = vdwg.mxu0
      %1759 = vmatpush.bf16.msra.mxu0 0
      %1760 = vmatpush.bf16.msra.mxu0 0
      %1761 = vmatpush.bf16.msra.mxu0 0
      %1762 = vmatpush.bf16.msra.mxu0 0
      %1763 = vmatpush.bf16.msra.mxu0 0
      %1764 = vmatpush.bf16.msra.mxu0 %v195
      %1765 = vmatpush.bf16.msra.mxu0 %v191
      %1766 = vmatpush.bf16.msra.mxu0 %v187
      %1767 = vmatmul.bf16.gmra.mxu0 %v1718
      %v1768 = vpop.f32.mrf.mxu0
      %v1769 = vadd.f32 %v83, %v1768
      %v1770 = vpop.f32.mrf.mxu0
      %1771 = vdwg.mxu0
      %v1772 = vxor.u32 %v1730, 2147483648
      %v1773 = vmul.f32 %v1772, 1.442695
      %v1774 = vpow.pop %v1773
      %v1775 = vadd.f32 %v1774, 1.0
      %v1776 = vrcp.pop %v1775
      %v1777 = vmul.f32 %v1775, %v1776
      %v1778 = vsub.f32 1.0, %v1777
      %v1779 = vmul.f32 %v1776, %v1778
      %v1780 = vadd.f32 %v1776, %v1779
      %vm1781 = vweird.f32 %v1775
      %vm1782 = vweird.f32 %v1776
      %vm1783 = vmor %vm1781, %vm1782
      %v1784 = vsel %vm1783, %v1776, %v1780
      %v1785 = vand.u32 2147483647, %v1775
      %vm1786 = vcmp.eq.f32.partialorder %v1785, 8.507059e+37
      %v1787 = vand.u32 %v1775, 2147483648
      %v1788 = vor.u32 1.1754944e-38, %v1787
      %v1789 = vsel %vm1786, %v1788, %v1784
      %v1790 = vmul.f32 1.0, %v1789
      %v1791 = vxor.u32 %v1743, 2147483648
      %v1792 = vmul.f32 %v1791, 1.442695
      %v1793 = vpow.pop %v1792
      %v1794 = vadd.f32 %v1793, 1.0
      %v1795 = vrcp.pop %v1794
      %v1796 = vmul.f32 %v1794, %v1795
      %v1797 = vsub.f32 1.0, %v1796
      %v1798 = vmul.f32 %v1795, %v1797
      %v1799 = vadd.f32 %v1795, %v1798
      %vm1800 = vweird.f32 %v1794
      %vm1801 = vweird.f32 %v1795
      %vm1802 = vmor %vm1800, %vm1801
      %v1803 = vsel %vm1802, %v1795, %v1799
      %v1804 = vand.u32 2147483647, %v1794
      %vm1805 = vcmp.eq.f32.partialorder %v1804, 8.507059e+37
      %v1806 = vand.u32 %v1794, 2147483648
      %v1807 = vor.u32 1.1754944e-38, %v1806
      %v1808 = vsel %vm1805, %v1807, %v1803
      %v1809 = vmul.f32 1.0, %v1808
      %v1810 = vtanh.pop %v1756
      %v1811 = vxor.u32 %v1769, 2147483648
      %v1812 = vmul.f32 %v1811, 1.442695
      %v1813 = vpow.pop %v1812
      %v1814 = vadd.f32 %v1813, 1.0
      %v1815 = vrcp.pop %v1814
      %v1816 = vmul.f32 %v1814, %v1815
      %v1817 = vsub.f32 1.0, %v1816
      %v1818 = vmul.f32 %v1815, %v1817
      %v1819 = vadd.f32 %v1815, %v1818
      %vm1820 = vweird.f32 %v1814
      %vm1821 = vweird.f32 %v1815
      %vm1822 = vmor %vm1820, %vm1821
      %v1823 = vsel %vm1822, %v1815, %v1819
      %v1824 = vand.u32 2147483647, %v1814
      %vm1825 = vcmp.eq.f32.partialorder %v1824, 8.507059e+37
      %v1826 = vand.u32 %v1814, 2147483648
      %v1827 = vor.u32 1.1754944e-38, %v1826
      %v1828 = vsel %vm1825, %v1827, %v1823
      %v1829 = vmul.f32 1.0, %v1828
      %v1830 = vmul.f32 %v1809, %v1553
      %v1831 = vmul.f32 %v1790, %v1810
      %v1832 = vadd.f32 %v1830, %v1831
      %v1833 = vtanh.pop %v1832
      %v1834 = vmul.f32 %v1829, %v1833
      %v1835 = vsel %vm1690, %v1834, %v1552
      %v1836 = vsel %vm1690, %v1832, %v1553
      %v1837 = vpack.c.bf16 %v1835, %v1835
      %v1838 = vpack.c.bf16 %v1681, %v1681
      %v1840 = vunpack.c.l.b16 %v1838
      %v1841 = vpack.c.b16 %v1840, %v1840
      %1842 = vrot.lane.b32.xlu0 %v1841, 32
      %v1843 = vpop.permute.xlu0 %1842
      %v1846 = vsel %vm335, %v1837, %v1843
      %v1847 = vsel %vm435, %v1846, 0
      %1849 = vmatpush.bf16.msra.mxu0 0
      %1850 = vmatpush.bf16.msra.mxu0 0
      %1851 = vmatpush.bf16.msra.mxu0 0
      %1852 = vmatpush.bf16.msra.mxu0 0
      %1853 = vmatpush.bf16.msra.mxu0 %v415
      %1854 = vmatpush.bf16.msra.mxu0 %v411
      %1855 = vmatpush.bf16.msra.mxu0 %v407
      %1856 = vmatpush.bf16.msra.mxu0 %v403
      %1857 = vmatmul.bf16.gmra.mxu0 %v1847
      %v1858 = vpop.f32.mrf.mxu0
      %v1859 = vadd.f32 %v91, %v1858
      %v1860 = vpop.f32.mrf.mxu0
      %1861 = vdwg.mxu0
      %1862 = vmatpush.bf16.msra.mxu0 0
      %1863 = vmatpush.bf16.msra.mxu0 0
      %1864 = vmatpush.bf16.msra.mxu0 0
      %1865 = vmatpush.bf16.msra.mxu0 0
      %1866 = vmatpush.bf16.msra.mxu0 %v416
      %1867 = vmatpush.bf16.msra.mxu0 %v412
      %1868 = vmatpush.bf16.msra.mxu0 %v408
      %1869 = vmatpush.bf16.msra.mxu0 %v404
      %1870 = vmatmul.bf16.gmra.mxu0 %v1847
      %v1871 = vpop.f32.mrf.mxu0
      %v1872 = vadd.f32 %v92, %v1871
      %v1873 = vpop.f32.mrf.mxu0
      %1874 = vdwg.mxu0
      %1875 = vmatpush.bf16.msra.mxu0 0
      %1876 = vmatpush.bf16.msra.mxu0 0
      %1877 = vmatpush.bf16.msra.mxu0 0
      %1878 = vmatpush.bf16.msra.mxu0 0
      %1879 = vmatpush.bf16.msra.mxu0 %v417
      %1880 = vmatpush.bf16.msra.mxu0 %v413
      %1881 = vmatpush.bf16.msra.mxu0 %v409
      %1882 = vmatpush.bf16.msra.mxu0 %v405
      %1883 = vmatmul.bf16.gmra.mxu0 %v1847
      %v1884 = vpop.f32.mrf.mxu0
      %v1885 = vadd.f32 %v93, %v1884
      %v1886 = vpop.f32.mrf.mxu0
      %1887 = vdwg.mxu0
      %1888 = vmatpush.bf16.msra.mxu0 0
      %1889 = vmatpush.bf16.msra.mxu0 0
      %1890 = vmatpush.bf16.msra.mxu0 0
      %1891 = vmatpush.bf16.msra.mxu0 0
      %1892 = vmatpush.bf16.msra.mxu0 %v418
      %1893 = vmatpush.bf16.msra.mxu0 %v414
      %1894 = vmatpush.bf16.msra.mxu0 %v410
      %1895 = vmatpush.bf16.msra.mxu0 %v406
      %1896 = vmatmul.bf16.gmra.mxu0 %v1847
      %v1897 = vpop.f32.mrf.mxu0
      %v1898 = vadd.f32 %v94, %v1897
      %v1899 = vpop.f32.mrf.mxu0
      %1900 = vdwg.mxu0
      %v1901 = vxor.u32 %v1859, 2147483648
      %v1902 = vmul.f32 %v1901, 1.442695
      %v1903 = vpow.pop %v1902
      %v1904 = vadd.f32 %v1903, 1.0
      %v1905 = vrcp.pop %v1904
      %v1906 = vmul.f32 %v1904, %v1905
      %v1907 = vsub.f32 1.0, %v1906
      %v1908 = vmul.f32 %v1905, %v1907
      %v1909 = vadd.f32 %v1905, %v1908
      %vm1910 = vweird.f32 %v1904
      %vm1911 = vweird.f32 %v1905
      %vm1912 = vmor %vm1910, %vm1911
      %v1913 = vsel %vm1912, %v1905, %v1909
      %v1914 = vand.u32 2147483647, %v1904
      %vm1915 = vcmp.eq.f32.partialorder %v1914, 8.507059e+37
      %v1916 = vand.u32 %v1904, 2147483648
      %v1917 = vor.u32 1.1754944e-38, %v1916
      %v1918 = vsel %vm1915, %v1917, %v1913
      %v1919 = vmul.f32 1.0, %v1918
      %v1920 = vxor.u32 %v1872, 2147483648
      %v1921 = vmul.f32 %v1920, 1.442695
      %v1922 = vpow.pop %v1921
      %v1923 = vadd.f32 %v1922, 1.0
      %v1924 = vrcp.pop %v1923
      %v1925 = vmul.f32 %v1923, %v1924
      %v1926 = vsub.f32 1.0, %v1925
      %v1927 = vmul.f32 %v1924, %v1926
      %v1928 = vadd.f32 %v1924, %v1927
      %vm1929 = vweird.f32 %v1923
      %vm1930 = vweird.f32 %v1924
      %vm1931 = vmor %vm1929, %vm1930
      %v1932 = vsel %vm1931, %v1924, %v1928
      %v1933 = vand.u32 2147483647, %v1923
      %vm1934 = vcmp.eq.f32.partialorder %v1933, 8.507059e+37
      %v1935 = vand.u32 %v1923, 2147483648
      %v1936 = vor.u32 1.1754944e-38, %v1935
      %v1937 = vsel %vm1934, %v1936, %v1932
      %v1938 = vmul.f32 1.0, %v1937
      %v1939 = vtanh.pop %v1885
      %v1940 = vxor.u32 %v1898, 2147483648
      %v1941 = vmul.f32 %v1940, 1.442695
      %v1942 = vpow.pop %v1941
      %v1943 = vadd.f32 %v1942, 1.0
      %v1944 = vrcp.pop %v1943
      %v1945 = vmul.f32 %v1943, %v1944
      %v1946 = vsub.f32 1.0, %v1945
      %v1947 = vmul.f32 %v1944, %v1946
      %v1948 = vadd.f32 %v1944, %v1947
      %vm1949 = vweird.f32 %v1943
      %vm1950 = vweird.f32 %v1944
      %vm1951 = vmor %vm1949, %vm1950
      %v1952 = vsel %vm1951, %v1944, %v1948
      %v1953 = vand.u32 2147483647, %v1943
      %vm1954 = vcmp.eq.f32.partialorder %v1953, 8.507059e+37
      %v1955 = vand.u32 %v1943, 2147483648
      %v1956 = vor.u32 1.1754944e-38, %v1955
      %v1957 = vsel %vm1954, %v1956, %v1952
      %v1958 = vmul.f32 1.0, %v1957
      %v1959 = vmul.f32 %v1938, %v1682
      %v1960 = vmul.f32 %v1919, %v1939
      %v1961 = vadd.f32 %v1959, %v1960
      %v1962 = vtanh.pop %v1961
      %v1963 = vmul.f32 %v1958, %v1962
      %v1964 = vsel %vm1690, %v1963, %v1681
      %v1965 = vsel %vm1690, %v1961, %v1682
      %s1966 = sadd.s32 %s62, 6
      %v1967 = vstv %s1966
      %vm1968 = vcmp.lt.s32.totalorder %v1967, %v77
      %v1969 = vsel %vm1968, 1, 0
      %1970 = vset.pattern.permute.xlu0 0
      %1971 = vperm.xlu0 %1970, %v1969
      %v1972 = vpop.permute.xlu0 %1971
      %vm1973 = vcmp.eq.s32.totalorder %v1972, 1
      %v1974 = vld [vmem:[%s1] sm:$0x8]
      %v1975 = vld [vmem:[%s1 + $0x4] sm:$0x8]
      %v1978 = vunpack.c.l.b16 %v1974
      %v1979 = vunpack.c.l.b16 %v1975
      %v1980 = vpack.c.b16 %v1978, %v1978
      %v1981 = vpack.c.b16 %v1979, %v1979
      %v1982 = vunpack.c.l.b16 %v1980
      %v1983 = vunpack.c.l.b16 %v1981
      %v1984 = vrot.slane %v1983, 7
      %vm1985 = vcmask 1047559
      %v1986 = vsel %vm1985, %v1984, %v1982
      %v1987 = vpack.c.b16 %v1986, %v1986
      %v1989 = vunpack.c.l.b16 %v1837
      %v1990 = vpack.c.b16 %v1989, %v1989
      %v1991 = vrot.slane %v1990, 5
      %1992 = vrot.lane.b32.xlu0 %v1991, 16
      %v1993 = vpop.permute.xlu0 %1992
      %v1996 = vsel %vm132, %v1987, %v1993
      %v1998 = vrot.slane %v1996, 3
      %v2000 = vsel %vm208, %v1998, 0
      %2002 = vmatpush.bf16.msra.mxu0 0
      %2003 = vmatpush.bf16.msra.mxu0 0
      %2004 = vmatpush.bf16.msra.mxu0 0
      %2005 = vmatpush.bf16.msra.mxu0 0
      %2006 = vmatpush.bf16.msra.mxu0 0
      %2007 = vmatpush.bf16.msra.mxu0 %v192
      %2008 = vmatpush.bf16.msra.mxu0 %v188
      %2009 = vmatpush.bf16.msra.mxu0 %v184
      %2010 = vmatmul.bf16.gmra.mxu0 %v2000
      %v2011 = vpop.f32.mrf.mxu0
      %v2012 = vadd.f32 %v80, %v2011
      %v2013 = vpop.f32.mrf.mxu0
      %2014 = vdwg.mxu0
      %2015 = vmatpush.bf16.msra.mxu0 0
      %2016 = vmatpush.bf16.msra.mxu0 0
      %2017 = vmatpush.bf16.msra.mxu0 0
      %2018 = vmatpush.bf16.msra.mxu0 0
      %2019 = vmatpush.bf16.msra.mxu0 0
      %2020 = vmatpush.bf16.msra.mxu0 %v193
      %2021 = vmatpush.bf16.msra.mxu0 %v189
      %2022 = vmatpush.bf16.msra.mxu0 %v185
      %2023 = vmatmul.bf16.gmra.mxu0 %v2000
      %v2024 = vpop.f32.mrf.mxu0
      %v2025 = vadd.f32 %v81, %v2024
      %v2026 = vpop.f32.mrf.mxu0
      %2027 = vdwg.mxu0
      %2028 = vmatpush.bf16.msra.mxu0 0
      %2029 = vmatpush.bf16.msra.mxu0 0
      %2030 = vmatpush.bf16.msra.mxu0 0
      %2031 = vmatpush.bf16.msra.mxu0 0
      %2032 = vmatpush.bf16.msra.mxu0 0
      %2033 = vmatpush.bf16.msra.mxu0 %v194
      %2034 = vmatpush.bf16.msra.mxu0 %v190
      %2035 = vmatpush.bf16.msra.mxu0 %v186
      %2036 = vmatmul.bf16.gmra.mxu0 %v2000
      %v2037 = vpop.f32.mrf.mxu0
      %v2038 = vadd.f32 %v82, %v2037
      %v2039 = vpop.f32.mrf.mxu0
      %2040 = vdwg.mxu0
      %2041 = vmatpush.bf16.msra.mxu0 0
      %2042 = vmatpush.bf16.msra.mxu0 0
      %2043 = vmatpush.bf16.msra.mxu0 0
      %2044 = vmatpush.bf16.msra.mxu0 0
      %2045 = vmatpush.bf16.msra.mxu0 0
      %2046 = vmatpush.bf16.msra.mxu0 %v195
      %2047 = vmatpush.bf16.msra.mxu0 %v191
      %2048 = vmatpush.bf16.msra.mxu0 %v187
      %2049 = vmatmul.bf16.gmra.mxu0 %v2000
      %v2050 = vpop.f32.mrf.mxu0
      %v2051 = vadd.f32 %v83, %v2050
      %v2052 = vpop.f32.mrf.mxu0
      %2053 = vdwg.mxu0
      %v2054 = vxor.u32 %v2012, 2147483648
      %v2055 = vmul.f32 %v2054, 1.442695
      %v2056 = vpow.pop %v2055
      %v2057 = vadd.f32 %v2056, 1.0
      %v2058 = vrcp.pop %v2057
      %v2059 = vmul.f32 %v2057, %v2058
      %v2060 = vsub.f32 1.0, %v2059
      %v2061 = vmul.f32 %v2058, %v2060
      %v2062 = vadd.f32 %v2058, %v2061
      %vm2063 = vweird.f32 %v2057
      %vm2064 = vweird.f32 %v2058
      %vm2065 = vmor %vm2063, %vm2064
      %v2066 = vsel %vm2065, %v2058, %v2062
      %v2067 = vand.u32 2147483647, %v2057
      %vm2068 = vcmp.eq.f32.partialorder %v2067, 8.507059e+37
      %v2069 = vand.u32 %v2057, 2147483648
      %v2070 = vor.u32 1.1754944e-38, %v2069
      %v2071 = vsel %vm2068, %v2070, %v2066
      %v2072 = vmul.f32 1.0, %v2071
      %v2073 = vxor.u32 %v2025, 2147483648
      %v2074 = vmul.f32 %v2073, 1.442695
      %v2075 = vpow.pop %v2074
      %v2076 = vadd.f32 %v2075, 1.0
      %v2077 = vrcp.pop %v2076
      %v2078 = vmul.f32 %v2076, %v2077
      %v2079 = vsub.f32 1.0, %v2078
      %v2080 = vmul.f32 %v2077, %v2079
      %v2081 = vadd.f32 %v2077, %v2080
      %vm2082 = vweird.f32 %v2076
      %vm2083 = vweird.f32 %v2077
      %vm2084 = vmor %vm2082, %vm2083
      %v2085 = vsel %vm2084, %v2077, %v2081
      %v2086 = vand.u32 2147483647, %v2076
      %vm2087 = vcmp.eq.f32.partialorder %v2086, 8.507059e+37
      %v2088 = vand.u32 %v2076, 2147483648
      %v2089 = vor.u32 1.1754944e-38, %v2088
      %v2090 = vsel %vm2087, %v2089, %v2085
      %v2091 = vmul.f32 1.0, %v2090
      %v2092 = vtanh.pop %v2038
      %v2093 = vxor.u32 %v2051, 2147483648
      %v2094 = vmul.f32 %v2093, 1.442695
      %v2095 = vpow.pop %v2094
      %v2096 = vadd.f32 %v2095, 1.0
      %v2097 = vrcp.pop %v2096
      %v2098 = vmul.f32 %v2096, %v2097
      %v2099 = vsub.f32 1.0, %v2098
      %v2100 = vmul.f32 %v2097, %v2099
      %v2101 = vadd.f32 %v2097, %v2100
      %vm2102 = vweird.f32 %v2096
      %vm2103 = vweird.f32 %v2097
      %vm2104 = vmor %vm2102, %vm2103
      %v2105 = vsel %vm2104, %v2097, %v2101
      %v2106 = vand.u32 2147483647, %v2096
      %vm2107 = vcmp.eq.f32.partialorder %v2106, 8.507059e+37
      %v2108 = vand.u32 %v2096, 2147483648
      %v2109 = vor.u32 1.1754944e-38, %v2108
      %v2110 = vsel %vm2107, %v2109, %v2105
      %v2111 = vmul.f32 1.0, %v2110
      %v2112 = vmul.f32 %v2091, %v1836
      %v2113 = vmul.f32 %v2072, %v2092
      %v2114 = vadd.f32 %v2112, %v2113
      %v2115 = vtanh.pop %v2114
      %v2116 = vmul.f32 %v2111, %v2115
      %v2117 = vsel %vm1973, %v2116, %v1835
      %v2118 = vsel %vm1973, %v2114, %v1836
      %v2119 = vpack.c.bf16 %v2117, %v2117
      %v2120 = vpack.c.bf16 %v1964, %v1964
      %v2122 = vunpack.c.l.b16 %v2120
      %v2123 = vpack.c.b16 %v2122, %v2122
      %2124 = vrot.lane.b32.xlu0 %v2123, 32
      %v2125 = vpop.permute.xlu0 %2124
      %v2128 = vsel %vm335, %v2119, %v2125
      %v2129 = vsel %vm435, %v2128, 0
      %2131 = vmatpush.bf16.msra.mxu0 0
      %2132 = vmatpush.bf16.msra.mxu0 0
      %2133 = vmatpush.bf16.msra.mxu0 0
      %2134 = vmatpush.bf16.msra.mxu0 0
      %2135 = vmatpush.bf16.msra.mxu0 %v415
      %2136 = vmatpush.bf16.msra.mxu0 %v411
      %2137 = vmatpush.bf16.msra.mxu0 %v407
      %2138 = vmatpush.bf16.msra.mxu0 %v403
      %2139 = vmatmul.bf16.gmra.mxu0 %v2129
      %v2140 = vpop.f32.mrf.mxu0
      %v2141 = vadd.f32 %v91, %v2140
      %v2142 = vpop.f32.mrf.mxu0
      %2143 = vdwg.mxu0
      %2144 = vmatpush.bf16.msra.mxu0 0
      %2145 = vmatpush.bf16.msra.mxu0 0
      %2146 = vmatpush.bf16.msra.mxu0 0
      %2147 = vmatpush.bf16.msra.mxu0 0
      %2148 = vmatpush.bf16.msra.mxu0 %v416
      %2149 = vmatpush.bf16.msra.mxu0 %v412
      %2150 = vmatpush.bf16.msra.mxu0 %v408
      %2151 = vmatpush.bf16.msra.mxu0 %v404
      %2152 = vmatmul.bf16.gmra.mxu0 %v2129
      %v2153 = vpop.f32.mrf.mxu0
      %v2154 = vadd.f32 %v92, %v2153
      %v2155 = vpop.f32.mrf.mxu0
      %2156 = vdwg.mxu0
      %2157 = vmatpush.bf16.msra.mxu0 0
      %2158 = vmatpush.bf16.msra.mxu0 0
      %2159 = vmatpush.bf16.msra.mxu0 0
      %2160 = vmatpush.bf16.msra.mxu0 0
      %2161 = vmatpush.bf16.msra.mxu0 %v417
      %2162 = vmatpush.bf16.msra.mxu0 %v413
      %2163 = vmatpush.bf16.msra.mxu0 %v409
      %2164 = vmatpush.bf16.msra.mxu0 %v405
      %2165 = vmatmul.bf16.gmra.mxu0 %v2129
      %v2166 = vpop.f32.mrf.mxu0
      %v2167 = vadd.f32 %v93, %v2166
      %v2168 = vpop.f32.mrf.mxu0
      %2169 = vdwg.mxu0
      %2170 = vmatpush.bf16.msra.mxu0 0
      %2171 = vmatpush.bf16.msra.mxu0 0
      %2172 = vmatpush.bf16.msra.mxu0 0
      %2173 = vmatpush.bf16.msra.mxu0 0
      %2174 = vmatpush.bf16.msra.mxu0 %v418
      %2175 = vmatpush.bf16.msra.mxu0 %v414
      %2176 = vmatpush.bf16.msra.mxu0 %v410
      %2177 = vmatpush.bf16.msra.mxu0 %v406
      %2178 = vmatmul.bf16.gmra.mxu0 %v2129
      %v2179 = vpop.f32.mrf.mxu0
      %v2180 = vadd.f32 %v94, %v2179
      %v2181 = vpop.f32.mrf.mxu0
      %2182 = vdwg.mxu0
      %v2183 = vxor.u32 %v2141, 2147483648
      %v2184 = vmul.f32 %v2183, 1.442695
      %v2185 = vpow.pop %v2184
      %v2186 = vadd.f32 %v2185, 1.0
      %v2187 = vrcp.pop %v2186
      %v2188 = vmul.f32 %v2186, %v2187
      %v2189 = vsub.f32 1.0, %v2188
      %v2190 = vmul.f32 %v2187, %v2189
      %v2191 = vadd.f32 %v2187, %v2190
      %vm2192 = vweird.f32 %v2186
      %vm2193 = vweird.f32 %v2187
      %vm2194 = vmor %vm2192, %vm2193
      %v2195 = vsel %vm2194, %v2187, %v2191
      %v2196 = vand.u32 2147483647, %v2186
      %vm2197 = vcmp.eq.f32.partialorder %v2196, 8.507059e+37
      %v2198 = vand.u32 %v2186, 2147483648
      %v2199 = vor.u32 1.1754944e-38, %v2198
      %v2200 = vsel %vm2197, %v2199, %v2195
      %v2201 = vmul.f32 1.0, %v2200
      %v2202 = vxor.u32 %v2154, 2147483648
      %v2203 = vmul.f32 %v2202, 1.442695
      %v2204 = vpow.pop %v2203
      %v2205 = vadd.f32 %v2204, 1.0
      %v2206 = vrcp.pop %v2205
      %v2207 = vmul.f32 %v2205, %v2206
      %v2208 = vsub.f32 1.0, %v2207
      %v2209 = vmul.f32 %v2206, %v2208
      %v2210 = vadd.f32 %v2206, %v2209
      %vm2211 = vweird.f32 %v2205
      %vm2212 = vweird.f32 %v2206
      %vm2213 = vmor %vm2211, %vm2212
      %v2214 = vsel %vm2213, %v2206, %v2210
      %v2215 = vand.u32 2147483647, %v2205
      %vm2216 = vcmp.eq.f32.partialorder %v2215, 8.507059e+37
      %v2217 = vand.u32 %v2205, 2147483648
      %v2218 = vor.u32 1.1754944e-38, %v2217
      %v2219 = vsel %vm2216, %v2218, %v2214
      %v2220 = vmul.f32 1.0, %v2219
      %v2221 = vtanh.pop %v2167
      %v2222 = vxor.u32 %v2180, 2147483648
      %v2223 = vmul.f32 %v2222, 1.442695
      %v2224 = vpow.pop %v2223
      %v2225 = vadd.f32 %v2224, 1.0
      %v2226 = vrcp.pop %v2225
      %v2227 = vmul.f32 %v2225, %v2226
      %v2228 = vsub.f32 1.0, %v2227
      %v2229 = vmul.f32 %v2226, %v2228
      %v2230 = vadd.f32 %v2226, %v2229
      %vm2231 = vweird.f32 %v2225
      %vm2232 = vweird.f32 %v2226
      %vm2233 = vmor %vm2231, %vm2232
      %v2234 = vsel %vm2233, %v2226, %v2230
      %v2235 = vand.u32 2147483647, %v2225
      %vm2236 = vcmp.eq.f32.partialorder %v2235, 8.507059e+37
      %v2237 = vand.u32 %v2225, 2147483648
      %v2238 = vor.u32 1.1754944e-38, %v2237
      %v2239 = vsel %vm2236, %v2238, %v2234
      %v2240 = vmul.f32 1.0, %v2239
      %v2241 = vmul.f32 %v2220, %v1965
      %v2242 = vmul.f32 %v2201, %v2221
      %v2243 = vadd.f32 %v2241, %v2242
      %v2244 = vtanh.pop %v2243
      %v2245 = vmul.f32 %v2240, %v2244
      %v2246 = vsel %vm1973, %v2245, %v1964
      %v2247 = vsel %vm1973, %v2243, %v1965
      %s2248 = sadd.s32 %s62, 7
      %v2249 = vstv %s2248
      %vm2250 = vcmp.lt.s32.totalorder %v2249, %v77
      %v2251 = vsel %vm2250, 1, 0
      %2252 = vset.pattern.permute.xlu0 0
      %2253 = vperm.xlu0 %2252, %v2251
      %v2254 = vpop.permute.xlu0 %2253
      %vm2255 = vcmp.eq.s32.totalorder %v2254, 1
      %v2256 = vpack.c.b16 %v1984, %v1982
      %v2258 = vunpack.c.l.b16 %v2119
      %v2259 = vpack.c.b16 %v2258, %v2258
      %v2261 = vshrl.u32 %v2259, 16
      %v2263 = vrot.slane %v2261, 4
      %v2264 = vshll.u32 %v2259, 16
      %v2266 = vrot.slane %v2264, 5
      %v2267 = vor.u32 %v2263, %v2266
      %2268 = vrot.lane.b32.xlu0 %v2267, 16
      %v2269 = vpop.permute.xlu0 %2268
      %v2272 = vsel %vm132, %v2256, %v2269
      %v2273 = vshrl.u32 %v2272, 16
      %v2275 = vrot.slane %v2273, 3
      %v2276 = vshll.u32 %v2272, 16
      %v2278 = vrot.slane %v2276, 4
      %v2279 = vor.u32 %v2275, %v2278
      %v2281 = vsel %vm208, %v2279, 0
      %2283 = vmatpush.bf16.msra.mxu0 0
      %2284 = vmatpush.bf16.msra.mxu0 0
      %2285 = vmatpush.bf16.msra.mxu0 0
      %2286 = vmatpush.bf16.msra.mxu0 0
      %2287 = vmatpush.bf16.msra.mxu0 0
      %2288 = vmatpush.bf16.msra.mxu0 %v192
      %2289 = vmatpush.bf16.msra.mxu0 %v188
      %2290 = vmatpush.bf16.msra.mxu0 %v184
      %2291 = vmatmul.bf16.gmra.mxu0 %v2281
      %v2292 = vpop.f32.mrf.mxu0
      %v2293 = vadd.f32 %v80, %v2292
      %v2294 = vpop.f32.mrf.mxu0
      %2295 = vdwg.mxu0
      %2296 = vmatpush.bf16.msra.mxu0 0
      %2297 = vmatpush.bf16.msra.mxu0 0
      %2298 = vmatpush.bf16.msra.mxu0 0
      %2299 = vmatpush.bf16.msra.mxu0 0
      %2300 = vmatpush.bf16.msra.mxu0 0
      %2301 = vmatpush.bf16.msra.mxu0 %v193
      %2302 = vmatpush.bf16.msra.mxu0 %v189
      %2303 = vmatpush.bf16.msra.mxu0 %v185
      %2304 = vmatmul.bf16.gmra.mxu0 %v2281
      %v2305 = vpop.f32.mrf.mxu0
      %v2306 = vadd.f32 %v81, %v2305
      %v2307 = vpop.f32.mrf.mxu0
      %2308 = vdwg.mxu0
      %2309 = vmatpush.bf16.msra.mxu0 0
      %2310 = vmatpush.bf16.msra.mxu0 0
      %2311 = vmatpush.bf16.msra.mxu0 0
      %2312 = vmatpush.bf16.msra.mxu0 0
      %2313 = vmatpush.bf16.msra.mxu0 0
      %2314 = vmatpush.bf16.msra.mxu0 %v194
      %2315 = vmatpush.bf16.msra.mxu0 %v190
      %2316 = vmatpush.bf16.msra.mxu0 %v186
      %2317 = vmatmul.bf16.gmra.mxu0 %v2281
      %v2318 = vpop.f32.mrf.mxu0
      %v2319 = vadd.f32 %v82, %v2318
      %v2320 = vpop.f32.mrf.mxu0
      %2321 = vdwg.mxu0
      %2322 = vmatpush.bf16.msra.mxu0 0
      %2323 = vmatpush.bf16.msra.mxu0 0
      %2324 = vmatpush.bf16.msra.mxu0 0
      %2325 = vmatpush.bf16.msra.mxu0 0
      %2326 = vmatpush.bf16.msra.mxu0 0
      %2327 = vmatpush.bf16.msra.mxu0 %v195
      %2328 = vmatpush.bf16.msra.mxu0 %v191
      %2329 = vmatpush.bf16.msra.mxu0 %v187
      %2330 = vmatmul.bf16.gmra.mxu0 %v2281
      %v2331 = vpop.f32.mrf.mxu0
      %v2332 = vadd.f32 %v83, %v2331
      %v2333 = vpop.f32.mrf.mxu0
      %2334 = vdwg.mxu0
      %v2335 = vxor.u32 %v2293, 2147483648
      %v2336 = vmul.f32 %v2335, 1.442695
      %v2337 = vpow.pop %v2336
      %v2338 = vadd.f32 %v2337, 1.0
      %v2339 = vrcp.pop %v2338
      %v2340 = vmul.f32 %v2338, %v2339
      %v2341 = vsub.f32 1.0, %v2340
      %v2342 = vmul.f32 %v2339, %v2341
      %v2343 = vadd.f32 %v2339, %v2342
      %vm2344 = vweird.f32 %v2338
      %vm2345 = vweird.f32 %v2339
      %vm2346 = vmor %vm2344, %vm2345
      %v2347 = vsel %vm2346, %v2339, %v2343
      %v2348 = vand.u32 2147483647, %v2338
      %vm2349 = vcmp.eq.f32.partialorder %v2348, 8.507059e+37
      %v2350 = vand.u32 %v2338, 2147483648
      %v2351 = vor.u32 1.1754944e-38, %v2350
      %v2352 = vsel %vm2349, %v2351, %v2347
      %v2353 = vmul.f32 1.0, %v2352
      %v2354 = vxor.u32 %v2306, 2147483648
      %v2355 = vmul.f32 %v2354, 1.442695
      %v2356 = vpow.pop %v2355
      %v2357 = vadd.f32 %v2356, 1.0
      %v2358 = vrcp.pop %v2357
      %v2359 = vmul.f32 %v2357, %v2358
      %v2360 = vsub.f32 1.0, %v2359
      %v2361 = vmul.f32 %v2358, %v2360
      %v2362 = vadd.f32 %v2358, %v2361
      %vm2363 = vweird.f32 %v2357
      %vm2364 = vweird.f32 %v2358
      %vm2365 = vmor %vm2363, %vm2364
      %v2366 = vsel %vm2365, %v2358, %v2362
      %v2367 = vand.u32 2147483647, %v2357
      %vm2368 = vcmp.eq.f32.partialorder %v2367, 8.507059e+37
      %v2369 = vand.u32 %v2357, 2147483648
      %v2370 = vor.u32 1.1754944e-38, %v2369
      %v2371 = vsel %vm2368, %v2370, %v2366
      %v2372 = vmul.f32 1.0, %v2371
      %v2373 = vtanh.pop %v2319
      %v2374 = vxor.u32 %v2332, 2147483648
      %v2375 = vmul.f32 %v2374, 1.442695
      %v2376 = vpow.pop %v2375
      %v2377 = vadd.f32 %v2376, 1.0
      %v2378 = vrcp.pop %v2377
      %v2379 = vmul.f32 %v2377, %v2378
      %v2380 = vsub.f32 1.0, %v2379
      %v2381 = vmul.f32 %v2378, %v2380
      %v2382 = vadd.f32 %v2378, %v2381
      %vm2383 = vweird.f32 %v2377
      %vm2384 = vweird.f32 %v2378
      %vm2385 = vmor %vm2383, %vm2384
      %v2386 = vsel %vm2385, %v2378, %v2382
      %v2387 = vand.u32 2147483647, %v2377
      %vm2388 = vcmp.eq.f32.partialorder %v2387, 8.507059e+37
      %v2389 = vand.u32 %v2377, 2147483648
      %v2390 = vor.u32 1.1754944e-38, %v2389
      %v2391 = vsel %vm2388, %v2390, %v2386
      %v2392 = vmul.f32 1.0, %v2391
      %v2393 = vmul.f32 %v2372, %v2118
      %v2394 = vmul.f32 %v2353, %v2373
      %v2395 = vadd.f32 %v2393, %v2394
      %v2396 = vtanh.pop %v2395
      %v2397 = vmul.f32 %v2392, %v2396
      %v2398 = vsel %vm2255, %v2397, %v2117
      %v2399 = vsel %vm2255, %v2395, %v2118
      %v2400 = vpack.c.bf16 %v2398, %v2398
      %v2401 = vpack.c.bf16 %v2246, %v2246
      %v2403 = vunpack.c.l.b16 %v2401
      %v2404 = vpack.c.b16 %v2403, %v2403
      %2405 = vrot.lane.b32.xlu0 %v2404, 32
      %v2406 = vpop.permute.xlu0 %2405
      %v2409 = vsel %vm335, %v2400, %v2406
      %v2410 = vsel %vm435, %v2409, 0
      %2412 = vmatpush.bf16.msra.mxu0 0
      %2413 = vmatpush.bf16.msra.mxu0 0
      %2414 = vmatpush.bf16.msra.mxu0 0
      %2415 = vmatpush.bf16.msra.mxu0 0
      %2416 = vmatpush.bf16.msra.mxu0 %v415
      %2417 = vmatpush.bf16.msra.mxu0 %v411
      %2418 = vmatpush.bf16.msra.mxu0 %v407
      %2419 = vmatpush.bf16.msra.mxu0 %v403
      %2420 = vmatmul.bf16.gmra.mxu0 %v2410
      %v2421 = vpop.f32.mrf.mxu0
      %v2422 = vadd.f32 %v91, %v2421
      %v2423 = vpop.f32.mrf.mxu0
      %2424 = vdwg.mxu0
      %2425 = vmatpush.bf16.msra.mxu0 0
      %2426 = vmatpush.bf16.msra.mxu0 0
      %2427 = vmatpush.bf16.msra.mxu0 0
      %2428 = vmatpush.bf16.msra.mxu0 0
      %2429 = vmatpush.bf16.msra.mxu0 %v416
      %2430 = vmatpush.bf16.msra.mxu0 %v412
      %2431 = vmatpush.bf16.msra.mxu0 %v408
      %2432 = vmatpush.bf16.msra.mxu0 %v404
      %2433 = vmatmul.bf16.gmra.mxu0 %v2410
      %v2434 = vpop.f32.mrf.mxu0
      %v2435 = vadd.f32 %v92, %v2434
      %v2436 = vpop.f32.mrf.mxu0
      %2437 = vdwg.mxu0
      %2438 = vmatpush.bf16.msra.mxu0 0
      %2439 = vmatpush.bf16.msra.mxu0 0
      %2440 = vmatpush.bf16.msra.mxu0 0
      %2441 = vmatpush.bf16.msra.mxu0 0
      %2442 = vmatpush.bf16.msra.mxu0 %v417
      %2443 = vmatpush.bf16.msra.mxu0 %v413
      %2444 = vmatpush.bf16.msra.mxu0 %v409
      %2445 = vmatpush.bf16.msra.mxu0 %v405
      %2446 = vmatmul.bf16.gmra.mxu0 %v2410
      %v2447 = vpop.f32.mrf.mxu0
      %v2448 = vadd.f32 %v93, %v2447
      %v2449 = vpop.f32.mrf.mxu0
      %2450 = vdwg.mxu0
      %2451 = vmatpush.bf16.msra.mxu0 0
      %2452 = vmatpush.bf16.msra.mxu0 0
      %2453 = vmatpush.bf16.msra.mxu0 0
      %2454 = vmatpush.bf16.msra.mxu0 0
      %2455 = vmatpush.bf16.msra.mxu0 %v418
      %2456 = vmatpush.bf16.msra.mxu0 %v414
      %2457 = vmatpush.bf16.msra.mxu0 %v410
      %2458 = vmatpush.bf16.msra.mxu0 %v406
      %2459 = vmatmul.bf16.gmra.mxu0 %v2410
      %v2460 = vpop.f32.mrf.mxu0
      %v2461 = vadd.f32 %v94, %v2460
      %v2462 = vpop.f32.mrf.mxu0
      %2463 = vdwg.mxu0
      %v2464 = vxor.u32 %v2422, 2147483648
      %v2465 = vmul.f32 %v2464, 1.442695
      %v2466 = vpow.pop %v2465
      %v2467 = vadd.f32 %v2466, 1.0
      %v2468 = vrcp.pop %v2467
      %v2469 = vmul.f32 %v2467, %v2468
      %v2470 = vsub.f32 1.0, %v2469
      %v2471 = vmul.f32 %v2468, %v2470
      %v2472 = vadd.f32 %v2468, %v2471
      %vm2473 = vweird.f32 %v2467
      %vm2474 = vweird.f32 %v2468
      %vm2475 = vmor %vm2473, %vm2474
      %v2476 = vsel %vm2475, %v2468, %v2472
      %v2477 = vand.u32 2147483647, %v2467
      %vm2478 = vcmp.eq.f32.partialorder %v2477, 8.507059e+37
      %v2479 = vand.u32 %v2467, 2147483648
      %v2480 = vor.u32 1.1754944e-38, %v2479
      %v2481 = vsel %vm2478, %v2480, %v2476
      %v2482 = vmul.f32 1.0, %v2481
      %v2483 = vxor.u32 %v2435, 2147483648
      %v2484 = vmul.f32 %v2483, 1.442695
      %v2485 = vpow.pop %v2484
      %v2486 = vadd.f32 %v2485, 1.0
      %v2487 = vrcp.pop %v2486
      %v2488 = vmul.f32 %v2486, %v2487
      %v2489 = vsub.f32 1.0, %v2488
      %v2490 = vmul.f32 %v2487, %v2489
      %v2491 = vadd.f32 %v2487, %v2490
      %vm2492 = vweird.f32 %v2486
      %vm2493 = vweird.f32 %v2487
      %vm2494 = vmor %vm2492, %vm2493
      %v2495 = vsel %vm2494, %v2487, %v2491
      %v2496 = vand.u32 2147483647, %v2486
      %vm2497 = vcmp.eq.f32.partialorder %v2496, 8.507059e+37
      %v2498 = vand.u32 %v2486, 2147483648
      %v2499 = vor.u32 1.1754944e-38, %v2498
      %v2500 = vsel %vm2497, %v2499, %v2495
      %v2501 = vmul.f32 1.0, %v2500
      %v2502 = vtanh.pop %v2448
      %v2503 = vxor.u32 %v2461, 2147483648
      %v2504 = vmul.f32 %v2503, 1.442695
      %v2505 = vpow.pop %v2504
      %v2506 = vadd.f32 %v2505, 1.0
      %v2507 = vrcp.pop %v2506
      %v2508 = vmul.f32 %v2506, %v2507
      %v2509 = vsub.f32 1.0, %v2508
      %v2510 = vmul.f32 %v2507, %v2509
      %v2511 = vadd.f32 %v2507, %v2510
      %vm2512 = vweird.f32 %v2506
      %vm2513 = vweird.f32 %v2507
      %vm2514 = vmor %vm2512, %vm2513
      %v2515 = vsel %vm2514, %v2507, %v2511
      %v2516 = vand.u32 2147483647, %v2506
      %vm2517 = vcmp.eq.f32.partialorder %v2516, 8.507059e+37
      %v2518 = vand.u32 %v2506, 2147483648
      %v2519 = vor.u32 1.1754944e-38, %v2518
      %v2520 = vsel %vm2517, %v2519, %v2515
      %v2521 = vmul.f32 1.0, %v2520
      %v2522 = vmul.f32 %v2501, %v2247
      %v2523 = vmul.f32 %v2482, %v2502
      %v2524 = vadd.f32 %v2522, %v2523
      %v2525 = vtanh.pop %v2524
      %v2526 = vmul.f32 %v2521, %v2525
      %v2527 = vsel %vm2255, %v2526, %v2246
      %v2528 = vsel %vm2255, %v2524, %v2247
      %vm2529 = vcmask 254976
      %2530 = vst.msk [vmem:[#allocation2] sm:$0x3] %vm2529, %v2398
      %2531 = vst.msk [vmem:[#allocation3] sm:$0x3] %vm2529, %v2399
      %2532 = vst.msk [vmem:[%s100] sm:$0x3] %vm2529, %v2527
      %2533 = vst.msk [vmem:[%s103] sm:$0x3] %vm2529, %v2528
      %s2534 = sadd.s32 %s62, 8
      %p2535 = scmp.ge.s32.totalorder %s2534, %s63
      // Predicated region
      $region46: #{tpu_custom_call.1} parent=44 // pred_check
        %p2536 = pneg %p2535
      $region47: #{tpu_custom_call.1} parent=44 // pred_check_branch
        %2538 = sbr.rel (%p2536) target = $region49
      $region48: #{tpu_custom_call.1} parent=44 // pred_region
        %v2539 = vld [vmem:[%s6] sm:$0xff]
        %v2540 = vld [vmem:[%s6 + $0x8] sm:$0xff]
        %v2541 = vld [vmem:[%s6 + $0x10] sm:$0xff]
        %v2542 = vld [vmem:[%s6 + $0x18] sm:$0xff]
        %v2543 = vld [vmem:[%s7] sm:$0x1]
        %v2545 = vperm.slane %v2543, 0
        %v2548 = vsel %vm335, %v2527, 0
        %2550 = vmatpush.msra.mxu0 0.0
        %2551 = vmatpush.msra.mxu0 0.0
        %2552 = vmatpush.msra.mxu0 0.0
        %2553 = vmatpush.msra.mxu0 0.0
        %2554 = vmatpush.msra.mxu0 0.0
        %2555 = vmatpush.msra.mxu0 0.0
        %2556 = vmatpush.msra.mxu0 0.0
        %2557 = vmatpush.msra.mxu0 0.0
        %2558 = vmatpush.msra.mxu0 0.0
        %2559 = vmatpush.msra.mxu0 0.0
        %2560 = vmatpush.msra.mxu0 0.0
        %2561 = vmatpush.msra.mxu0 0.0
        %2562 = vmatpush.msra.mxu0 %v2542
        %2563 = vmatpush.msra.mxu0 %v2541
        %2564 = vmatpush.msra.mxu0 %v2540
        %2565 = vmatpush.msra.mxu0 %v2539
        %2566 = vmatmul.f32.gmra.mxu0 %v2548
        %v2567 = vpop.f32.mrf.mxu0
        %v2568 = vadd.f32 %v2545, %v2567
        %2569 = vdwg.mxu0
        %v2570 = vxor.u32 %v2568, 2147483648
        %v2571 = vmul.f32 %v2570, 1.442695
        %v2572 = vpow.pop %v2571
        %v2573 = vadd.f32 %v2572, 1.0
        %v2574 = vrcp.pop %v2573
        %v2575 = vmul.f32 %v2573, %v2574
        %v2576 = vsub.f32 1.0, %v2575
        %v2577 = vmul.f32 %v2574, %v2576
        %v2578 = vadd.f32 %v2574, %v2577
        %vm2579 = vweird.f32 %v2573
        %vm2580 = vweird.f32 %v2574
        %vm2581 = vmor %vm2579, %vm2580
        %v2582 = vsel %vm2581, %v2574, %v2578
        %v2583 = vand.u32 2147483647, %v2573
        %vm2584 = vcmp.eq.f32.partialorder %v2583, 8.507059e+37
        %v2585 = vand.u32 %v2573, 2147483648
        %v2586 = vor.u32 1.1754944e-38, %v2585
        %v2587 = vsel %vm2584, %v2586, %v2582
        %v2588 = vmul.f32 1.0, %v2587
        %vm2589 = vcmask 25600
        %2590 = vst.msk [vmem:[#allocation11] sm:$0x3] %vm2589, %v2588
      $region49: #{tpu_custom_call.1} parent=44 // pred_fallthru
        _
    $region45: #{tpu_custom_call.1} parent=1 // pred_fallthru
      _
    // Predicated region
    $region50: #{tpu_custom_call.1} parent=1 // pred_check
      _
    $region51: #{tpu_custom_call.1} parent=1 // pred_check_branch
      %2592 = sbr.rel (0) target = $region53
    $region52: #{tpu_custom_call.1} parent=1 // pred_region
      %2594 = vsyncadd [#allocation8], 0
      %s2596 = sshll.u32 [#allocation11], 4
      %s2597 = int_to_ptr.vmem [resolvable:$true] %s2596
      %s2598 = sshll.u32 %s8, 4
      %s2599 = int_to_ptr.hbm [resolvable:$true] %s2598
      %2601 = dma.vmem_to_hbm [thread:$0]  %s2597, 32, %s2599, [#allocation8]
    $region53: #{tpu_custom_call.1} parent=1 // pred_fallthru
      _
    // Predicated region
    $region54: #{tpu_custom_call.1} parent=1 // pred_check
      _
    $region55: #{tpu_custom_call.1} parent=1 // pred_check_branch
      %2603 = sbr.rel (0) target = $region57
    $region56: #{tpu_custom_call.1} parent=1 // pred_region
      %2605 = dma.done [#allocation8], 32
    $region57: #{tpu_custom_call.1} parent=1 // pred_fallthru
      _
    %2606 = vsyncpa [#allocation7], 1
    %2607 = vsyncpa [#allocation10], 1
    %2608 = vsyncpa [#allocation8], 1

</llo_original>
